<compile_context>
chip_gen: v6e
topology: v6e:2x2x1
jax: 0.10.0
libtpu: 0.0.40
codegen_flags: <defaults>
</compile_context>

<pallas_src>
import functools

import jax
import jax.numpy as jnp
import numpy as np
from jax import lax
from jax.experimental import pallas as pl
from jax.experimental.pallas import tpu as pltpu

EPS = 1e-5  # PyTorch nn.LayerNorm default eps


def _layernorm(x, gamma, beta):
    mu = jnp.mean(x, axis=-1, keepdims=True)
    xc = x - mu
    var = jnp.mean(xc * xc, axis=-1, keepdims=True)
    return xc * lax.rsqrt(var + EPS) * gamma + beta


def _layer_kernel(x_full_ref, x_tile_ref, ln1_g_ref, ln1_b_ref,
                  wq_ref, wkv_ref, wo_ref, bo_ref,
                  ln2_g_ref, ln2_b_ref, w1_ref, fb1_ref, w2_ref, fb2_ref,
                  o_ref, xn_scr, k_scr, v_scr,
                  *, heads, dim_head, block_q, compute_dtype):
    """One full transformer layer for one (batch, query-tile) grid step."""
    cd = compute_dtype
    inner = heads * dim_head
    scale = dim_head ** -0.5
    q_idx = pl.program_id(1)

    # ---- once per batch element (q innermost, "arbitrary"): full-sequence LayerNorm and a
    # single fused (N,D)@(D,2*inner) K/V projection into VMEM scratch, reused by all q tiles.
    @pl.when(q_idx == 0)
    def _():
        xn = _layernorm(x_full_ref[0], ln1_g_ref[...], ln1_b_ref[...]).astype(cd)
        xn_scr[...] = xn
        kv = jnp.dot(xn, wkv_ref[...], preferred_element_type=jnp.float32)   # (N, 2*inner)
        k_scr[...] = kv[:, :inner].astype(cd)
        v_scr[...] = kv[:, inner:].astype(cd)

    # ---- attention for this query tile ----
    x_tile = x_tile_ref[0].astype(jnp.float32)                # (TQ, D) residual source
    row0 = pl.multiple_of(q_idx * block_q, block_q)
    xn_q = xn_scr[pl.ds(row0, block_q), :]                    # (TQ, D) pre-normed (sliced)

    # one wide Q projection; per-head views below are static 128-aligned lane slices (free)
    q_all = (jnp.dot(xn_q, wq_ref[...], preferred_element_type=jnp.float32)
             * scale).astype(cd)                              # (TQ, inner)

    ctx_heads = []
    for h in range(heads):
        lo, hi = h * dim_head, (h + 1) * dim_head
        q_h = q_all[:, lo:hi]                                 # (TQ, dh)
        k_h = k_scr[:, lo:hi]                                 # (N, dh)
        v_h = v_scr[:, lo:hi]                                 # (N, dh)
        dots = lax.dot_general(q_h, k_h, (((1,), (1,)), ((), ())),
                               preferred_element_type=jnp.float32)            # (TQ, N)
        m = jnp.max(dots, axis=-1, keepdims=True)
        e = jnp.exp(dots - m)
        s = jnp.sum(e, axis=-1, keepdims=True)
        attn = (e / s).astype(cd)                             # softmax stays f32 until cast
        ctx_heads.append(jnp.dot(attn, v_h, preferred_element_type=jnp.float32))

    # lane-aligned concat over heads, then ONE output-projection matmul with K=heads*dim_head
    # (mathematically identical to concat(h d) @ W_out; accumulation stays in the MXU).
    ctx = jnp.concatenate(ctx_heads, axis=-1).astype(cd)      # (TQ, inner)
    y = jnp.dot(ctx, wo_ref[...], preferred_element_type=jnp.float32) + bo_ref[...]
    x1 = x_tile + y                                           # (TQ, D) residual

    # ---- PreNorm + FeedForward + residual ----
    # TODO(synk): for very large mlp_dim on v7x, K-tile W1/W2 over an extra grid axis instead
    # of keeping them fully resident.
    xn2 = _layernorm(x1, ln2_g_ref[...], ln2_b_ref[...]).astype(cd)
    hid = jnp.dot(xn2, w1_ref[...], preferred_element_type=jnp.float32) + fb1_ref[...]
    hid = 0.5 * hid * (1.0 + lax.erf(hid * 0.7071067811865476))   # exact GELU (torch default)
    y2 = jnp.dot(hid.astype(cd), w2_ref[...], preferred_element_type=jnp.float32) + fb2_ref[...]

    o_ref[0] = (x1 + y2).astype(o_ref.dtype)


def _is_v5e():
    try:
        kind = jax.devices()[0].device_kind.lower()
        return ("v5 lite" in kind) or ("v5e" in kind) or ("v5litepod" in kind)
    except Exception:
        return False


def _default_block_q(N):
    # v6e/v7x MXU is 256-wide -> prefer 256-row query tiles; v5e (4x128^2) saturates at 128.
    pref = 128 if _is_v5e() else 256
    for bq in (pref, 128, 64, 32, 16, 8):
        if N % bq == 0:
            return bq
    return N


def _layer_cost(B, N, D, heads, dim_head, H, w_bytes):
    inner = heads * dim_head
    flops = B * (4 * N * D * inner        # K,V projection (once per batch element)
                 + 2 * N * D * inner      # Q projection
                 + 4 * N * N * inner      # QK^T and attn @ V
                 + 2 * N * inner * D      # output projection
                 + 4 * N * D * H)         # MLP
    transcendentals = B * (heads * N * N + N * H)             # exp + erf
    bytes_accessed = (B * 3 * N * D * 4                       # x (full + tiles) + output
                      + (4 * D * inner + 2 * D * H) * w_bytes # weights read once
                      + (7 * D + H) * 4)                      # LN params + biases
    return pl.CostEstimate(flops=int(flops), transcendentals=int(transcendentals),
                           bytes_accessed=int(bytes_accessed))


def _vmem_limit_bytes(N, D, inner, H, block_q, w_bytes):
    weights = (4 * D * inner + 2 * D * H) * w_bytes            # wq + wkv + wo + w1 + w2
    acts = 2 * N * D * 4 + 4 * block_q * D * 4                 # x_full + x_tile/out buffers
    scratch = (N * D + 2 * N * inner) * w_bytes                # xn, K, V scratch
    temps = block_q * (3 * N + 2 * H + 4 * inner + 4 * D) * 4  # scores/exp/hidden temporaries
    need = int(1.4 * (2 * weights + acts + scratch + temps))   # assume double-buffered weights
    cap = 100 * 1024 * 1024                                    # safe on v5e/v6e (128 MiB VMEM)
    try:
        cap = min(cap, int(pltpu.get_tpu_info().vmem_capacity_bytes * 0.8))  # v7x: 64 MiB part
    except Exception:
        pass
    return int(min(cap, max(need, 32 * 1024 * 1024)))


def transformer_layer(x, attn_p, ff_p, heads, dim_head, *, block_q=None,
                      compute_dtype=jnp.float32, single_buffer_weights=True):
    """PreNorm(Attention)+residual then PreNorm(FF)+residual, one fused pallas_call."""
    B, N, D = x.shape
    inner = heads * dim_head
    H = ff_p["w1"].shape[1]
    if block_q is None:
        block_q = _default_block_q(N)
    assert N % block_q == 0, "sequence length must be divisible by block_q"
    assert block_q % 8 == 0 or block_q == N, "block_q must be a multiple of 8 (sublanes)"
    n_q = N // block_q

    # Wrapper-side layout plumbing: split the fused QKV weight into W_q and the fused
    # [W_k | W_v] slab, and cast matmul operands to compute_dtype (bf16 => 2x MXU rate and
    # half the weight VMEM/HBM traffic; accumulation stays f32 in-kernel).
    w_qkv = attn_p["w_qkv"]
    wq = w_qkv[:, :inner].astype(compute_dtype)                # (D, inner)
    wkv = w_qkv[:, inner:].astype(compute_dtype)               # (D, 2*inner) = [W_k | W_v]
    wo = attn_p["w_out"].astype(compute_dtype)                 # (inner, D)
    w1 = ff_p["w1"].astype(compute_dtype)
    w2 = ff_p["w2"].astype(compute_dtype)
    # TODO(synk): optional fp8 storage of W1/W2 on v7x (upcast in-kernel) to halve MLP weight
    # VMEM/HBM traffic.

    kernel = functools.partial(_layer_kernel, heads=heads, dim_head=dim_head,
                               block_q=block_q, compute_dtype=compute_dtype)
    w_bytes = jnp.dtype(compute_dtype).itemsize
    cost = _layer_cost(B, N, D, heads, dim_head, H, w_bytes)
    vmem_limit = _vmem_limit_bytes(N, D, inner, H, block_q, w_bytes)

    operands = (x, x, attn_p["ln_g"], attn_p["ln_b"], wq, wkv, wo, attn_p["b_out"],
                ff_p["ln_g"], ff_p["ln_b"], w1, ff_p["b1"], w2, ff_p["b2"])

    def build(use_single_buffer):
        def const(shape):
            nd = len(shape)
            idx = lambda b, q, _nd=nd: (0,) * _nd
            if use_single_buffer:
                # constant index map -> the block never changes; one resident buffer suffices
                # (halves weight VMEM vs. default double-buffering).
                return pl.BlockSpec(shape, idx, pipeline_mode=pl.Buffered(1))
            return pl.BlockSpec(shape, idx)

        in_specs = [
            pl.BlockSpec((1, N, D), lambda b, q: (b, 0, 0)),        # x: full seq (K/V source)
            pl.BlockSpec((1, block_q, D), lambda b, q: (b, q, 0)),  # x: query tile (residual)
            const((1, D)), const((1, D)),                           # attn LayerNorm gamma/beta
            const((D, inner)),                                      # W_q
            const((D, 2 * inner)),                                  # [W_k | W_v] fused
            const((inner, D)),                                      # W_out
            const((1, D)),                                          # b_out
            const((1, D)), const((1, D)),                           # ff LayerNorm gamma/beta
            const((D, H)), const((1, H)),                           # W1, b1
            const((H, D)), const((1, D)),                           # W2, b2
        ]
        return pl.pallas_call(
            kernel,
            out_shape=jax.ShapeDtypeStruct((B, N, D), x.dtype),
            grid=(B, n_q),
            in_specs=in_specs,
            out_specs=pl.BlockSpec((1, block_q, D), lambda b, q: (b, q, 0)),
            scratch_shapes=[
                pltpu.VMEM((N, D), compute_dtype),      # pre-normed full sequence
                pltpu.VMEM((N, inner), compute_dtype),  # K (all heads, lane-contiguous)
                pltpu.VMEM((N, inner), compute_dtype),  # V (all heads, lane-contiguous)
            ],
            compiler_params=pltpu.CompilerParams(
                dimension_semantics=("parallel", "arbitrary"),
                vmem_limit_bytes=vmem_limit),
            cost_estimate=cost,
        )

    if single_buffer_weights and hasattr(pl, "Buffered"):
        try:
            return build(True)(*operands)
        except Exception:
            pass  # jax without pipeline_mode / Buffered(1): fall back to default buffering
    return build(False)(*operands)


def transformer_forward(x, layers, heads, dim_head, *, block_q=None,
                        compute_dtype=jnp.float32):
    for attn_p, ff_p in layers:
        x = transformer_layer(x, attn_p, ff_p, heads, dim_head,
                              block_q=block_q, compute_dtype=compute_dtype)
    return x


# ----------------- pure-JAX reference (for correctness check) -----------------
def _ref_layernorm(x, g, b):
    mu = jnp.mean(x, axis=-1, keepdims=True)
    var = jnp.mean((x - mu) ** 2, axis=-1, keepdims=True)
    return (x - mu) / jnp.sqrt(var + EPS) * g + b


def _ref_forward(x, layers, heads, dim_head):
    for attn_p, ff_p in layers:
        xn = _ref_layernorm(x, attn_p["ln_g"], attn_p["ln_b"])
        qkv = xn @ attn_p["w_qkv"]
        inner = heads * dim_head
        q, k, v = jnp.split(qkv, 3, axis=-1)
        B, N, _ = x.shape
        q = q.reshape(B, N, heads, dim_head).transpose(0, 2, 1, 3)
        k = k.reshape(B, N, heads, dim_head).transpose(0, 2, 1, 3)
        v = v.reshape(B, N, heads, dim_head).transpose(0, 2, 1, 3)
        dots = jnp.einsum("bhid,bhjd->bhij", q, k) * (dim_head ** -0.5)
        attn = jax.nn.softmax(dots, axis=-1)
        out = jnp.einsum("bhij,bhjd->bhid", attn, v)
        out = out.transpose(0, 2, 1, 3).reshape(B, N, inner)
        x = out @ attn_p["w_out"] + attn_p["b_out"] + x

        xn = _ref_layernorm(x, ff_p["ln_g"], ff_p["ln_b"])
        h = xn @ ff_p["w1"] + ff_p["b1"]
        h = jax.nn.gelu(h, approximate=False)
        x = h @ ff_p["w2"] + ff_p["b2"] + x
    return x


# ----------------- deterministic parameter init -----------------
def init_params(key, dim, depth, heads, dim_head, mlp_dim):
    inner = heads * dim_head
    layers = []
    for _ in range(depth):
        keys = jax.random.split(key, 12)
        key = keys[0]
        attn_p = {
            "ln_g": 1.0 + 0.1 * jax.random.normal(keys[1], (1, dim), jnp.float32),
            "ln_b": 0.1 * jax.random.normal(keys[2], (1, dim), jnp.float32),
            "w_qkv": 0.05 * jax.random.normal(keys[3], (dim, 3 * inner), jnp.float32),
            "w_out": 0.05 * jax.random.normal(keys[4], (inner, dim), jnp.float32),
            "b_out": 0.05 * jax.random.normal(keys[5], (1, dim), jnp.float32),
        }
        ff_p = {
            "ln_g": 1.0 + 0.1 * jax.random.normal(keys[6], (1, dim), jnp.float32),
            "ln_b": 0.1 * jax.random.normal(keys[7], (1, dim), jnp.float32),
            "w1": 0.05 * jax.random.normal(keys[8], (dim, mlp_dim), jnp.float32),
            "b1": 0.05 * jax.random.normal(keys[9], (1, mlp_dim), jnp.float32),
            "w2": 0.05 * jax.random.normal(keys[10], (mlp_dim, dim), jnp.float32),
            "b2": 0.05 * jax.random.normal(keys[11], (1, dim), jnp.float32),
        }
        layers.append((attn_p, ff_p))
    return layers


if __name__ == "__main__":
    # Lane/sublane-friendly small config: D, mlp_dim multiples of 128; N multiple of 8;
    # dim_head = 128 so per-head lane slices are whole-vreg and every matmul is lane-dense.
    B, N, DIM = 2, 16, 128
    DEPTH, HEADS, DIM_HEAD, MLP_DIM = 2, 2, 128, 256
    BLOCK_Q = 8   # two query tiles per batch element -> exercises K/V scratch reuse across q

    key = jax.random.PRNGKey(0)
    kx, kp = jax.random.split(key)
    x = jax.random.normal(kx, (B, N, DIM), jnp.float32)
    layers = init_params(kp, DIM, DEPTH, HEADS, DIM_HEAD, MLP_DIM)

    # f32 path: tight check against the pure-JAX reference.
    out = jax.block_until_ready(
        transformer_forward(x, layers, HEADS, DIM_HEAD, block_q=BLOCK_Q))
    ref = jax.block_until_ready(_ref_forward(x, layers, HEADS, DIM_HEAD))
    np.testing.assert_allclose(np.asarray(out), np.asarray(ref), rtol=1e-3, atol=1e-3)

    # bf16-MXU path (weights + matmul operands bf16, f32 accumulation): loose sanity check.
    out_bf16 = jax.block_until_ready(
        transformer_forward(x, layers, HEADS, DIM_HEAD, block_q=BLOCK_Q,
                            compute_dtype=jnp.bfloat16))
    np.testing.assert_allclose(np.asarray(out_bf16), np.asarray(ref), rtol=1e-1, atol=1e-1)

    print("KERNEL_OK")
</pallas_src>

<mosaic_0001>
module attributes {stable_mosaic.version = 11 : i64} {
  func.func @_layer_kernel(%arg0: i32, %arg1: i32, %arg2: memref<1x16x128xf32, #tpu.memory_space<vmem>>, %arg3: memref<1x8x128xf32, #tpu.memory_space<vmem>>, %arg4: memref<1x128xf32, #tpu.memory_space<vmem>>, %arg5: memref<1x128xf32, #tpu.memory_space<vmem>>, %arg6: memref<128x256xf32, #tpu.memory_space<vmem>>, %arg7: memref<128x512xf32, #tpu.memory_space<vmem>>, %arg8: memref<256x128xf32, #tpu.memory_space<vmem>>, %arg9: memref<1x128xf32, #tpu.memory_space<vmem>>, %arg10: memref<1x128xf32, #tpu.memory_space<vmem>>, %arg11: memref<1x128xf32, #tpu.memory_space<vmem>>, %arg12: memref<128x256xf32, #tpu.memory_space<vmem>>, %arg13: memref<1x256xf32, #tpu.memory_space<vmem>>, %arg14: memref<256x128xf32, #tpu.memory_space<vmem>>, %arg15: memref<1x128xf32, #tpu.memory_space<vmem>>, %arg16: memref<1x8x128xf32, #tpu.memory_space<vmem>>, %arg17: memref<16x128xf32, #tpu.memory_space<vmem>>, %arg18: memref<16x256xf32, #tpu.memory_space<vmem>>, %arg19: memref<16x256xf32, #tpu.memory_space<vmem>>) attributes {dimension_semantics = [#tpu.dimension_semantics<parallel>, #tpu.dimension_semantics<arbitrary>], iteration_bounds = array<i64: 2, 2>, scalar_prefetch = 0 : i64, scratch_operands = 3 : i64, tpu.core_type = #tpu.core_type<tc>, window_params = [{transform_indices = @transform_0, window_bounds = array<i64: 1, 16, 128>}, {transform_indices = @transform_1, window_bounds = array<i64: 1, 8, 128>}, {pipeline_mode = #tpu.pipeline_mode<synchronous>, transform_indices = @transform_2, window_bounds = array<i64: 1, 128>}, {pipeline_mode = #tpu.pipeline_mode<synchronous>, transform_indices = @transform_3, window_bounds = array<i64: 1, 128>}, {pipeline_mode = #tpu.pipeline_mode<synchronous>, transform_indices = @transform_4, window_bounds = array<i64: 128, 256>}, {pipeline_mode = #tpu.pipeline_mode<synchronous>, transform_indices = @transform_5, window_bounds = array<i64: 128, 512>}, {pipeline_mode = #tpu.pipeline_mode<synchronous>, transform_indices = @transform_6, window_bounds = array<i64: 256, 128>}, {pipeline_mode = #tpu.pipeline_mode<synchronous>, transform_indices = @transform_7, window_bounds = array<i64: 1, 128>}, {pipeline_mode = #tpu.pipeline_mode<synchronous>, transform_indices = @transform_8, window_bounds = array<i64: 1, 128>}, {pipeline_mode = #tpu.pipeline_mode<synchronous>, transform_indices = @transform_9, window_bounds = array<i64: 1, 128>}, {pipeline_mode = #tpu.pipeline_mode<synchronous>, transform_indices = @transform_10, window_bounds = array<i64: 128, 256>}, {pipeline_mode = #tpu.pipeline_mode<synchronous>, transform_indices = @transform_11, window_bounds = array<i64: 1, 256>}, {pipeline_mode = #tpu.pipeline_mode<synchronous>, transform_indices = @transform_12, window_bounds = array<i64: 256, 128>}, {pipeline_mode = #tpu.pipeline_mode<synchronous>, transform_indices = @transform_13, window_bounds = array<i64: 1, 128>}, {transform_indices = @transform_14, window_bounds = array<i64: 1, 8, 128>}]} {
    %c0_i32 = arith.constant 0 : i32
    %0 = arith.cmpi eq, %arg1, %c0_i32 : i32
    %1 = arith.extui %0 : i1 to i32
    %c0_i32_0 = arith.constant 0 : i32
    %2 = arith.cmpi ne, %1, %c0_i32_0 : i32
    scf.if %2 {
      %c0_52 = arith.constant 0 : index
      %c0_53 = arith.constant 0 : index
      %c0_54 = arith.constant 0 : index
      %92 = vector.load %arg2[%c0_52, %c0_53, %c0_54] : memref<1x16x128xf32, #tpu.memory_space<vmem>>, vector<1x16x128xf32>
      %93 = vector.shape_cast %92 : vector<1x16x128xf32> to vector<16x128xf32>
      %c0_55 = arith.constant 0 : index
      %c0_56 = arith.constant 0 : index
      %94 = vector.load %arg4[%c0_55, %c0_56] : memref<1x128xf32, #tpu.memory_space<vmem>>, vector<1x128xf32>
      %c0_57 = arith.constant 0 : index
      %c0_58 = arith.constant 0 : index
      %95 = vector.load %arg5[%c0_57, %c0_58] : memref<1x128xf32, #tpu.memory_space<vmem>>, vector<1x128xf32>
      %cst_59 = arith.constant dense<0.000000e+00> : vector<16xf32>
      %96 = vector.multi_reduction <add>, %93, %cst_59 [1] : vector<16x128xf32> to vector<16xf32>
      %97 = vector.shape_cast %96 : vector<16xf32> to vector<16x1xf32>
      %cst_60 = arith.constant 1.280000e+02 : f32
      %98 = vector.broadcast %cst_60 : f32 to vector<16x1xf32>
      %99 = arith.divf %97, %98 : vector<16x1xf32>
      %100 = vector.broadcast %99 : vector<16x1xf32> to vector<16x128xf32>
      %101 = arith.subf %93, %100 : vector<16x128xf32>
      %102 = arith.mulf %101, %101 : vector<16x128xf32>
      %cst_61 = arith.constant dense<0.000000e+00> : vector<16xf32>
      %103 = vector.multi_reduction <add>, %102, %cst_61 [1] : vector<16x128xf32> to vector<16xf32>
      %104 = vector.shape_cast %103 : vector<16xf32> to vector<16x1xf32>
      %cst_62 = arith.constant 1.280000e+02 : f32
      %105 = vector.broadcast %cst_62 : f32 to vector<16x1xf32>
      %106 = arith.divf %104, %105 : vector<16x1xf32>
      %cst_63 = arith.constant 9.99999974E-6 : f32
      %107 = vector.broadcast %cst_63 : f32 to vector<16x1xf32>
      %108 = arith.addf %106, %107 : vector<16x1xf32>
      %109 = math.rsqrt %108 : vector<16x1xf32>
      %110 = vector.broadcast %109 : vector<16x1xf32> to vector<16x128xf32>
      %111 = arith.mulf %101, %110 : vector<16x128xf32>
      %112 = vector.broadcast %94 : vector<1x128xf32> to vector<16x128xf32>
      %113 = arith.mulf %111, %112 : vector<16x128xf32>
      %114 = vector.broadcast %95 : vector<1x128xf32> to vector<16x128xf32>
      %115 = arith.addf %113, %114 : vector<16x128xf32>
      %c0_64 = arith.constant 0 : index
      %c0_65 = arith.constant 0 : index
      %116 = vector.load %arg17[%c0_64, %c0_65] : memref<16x128xf32, #tpu.memory_space<vmem>>, vector<16x128xf32>
      tpu.vector_store %arg17[%c0_64, %c0_65], %115 {strides = array<i32>} : memref<16x128xf32, #tpu.memory_space<vmem>>, vector<16x128xf32>,
      %c0_66 = arith.constant 0 : index
      %c0_67 = arith.constant 0 : index
      %117 = vector.load %arg7[%c0_66, %c0_67] : memref<128x512xf32, #tpu.memory_space<vmem>>, vector<128x512xf32>
      %cst_68 = arith.constant dense<0.000000e+00> : vector<16x512xf32>
      %118 = tpu.matmul %115, %117, %cst_68 {dimension_numbers = #tpu.dot_dimension_numbers<[1], [0], [0], [1], [0, 0, 1, 1], [], []>} : vector<16x128xf32>, vector<128x512xf32>, vector<16x512xf32> -> vector<16x512xf32>
      %119 = vector.extract_strided_slice %118 {offsets = [0, 0], sizes = [16, 256], strides = [1, 1]} : vector<16x512xf32> to vector<16x256xf32>
      %c0_69 = arith.constant 0 : index
      %c0_70 = arith.constant 0 : index
      %120 = vector.load %arg18[%c0_69, %c0_70] : memref<16x256xf32, #tpu.memory_space<vmem>>, vector<16x256xf32>
      tpu.vector_store %arg18[%c0_69, %c0_70], %119 {strides = array<i32>} : memref<16x256xf32, #tpu.memory_space<vmem>>, vector<16x256xf32>,
      %121 = vector.extract_strided_slice %118 {offsets = [0, 256], sizes = [16, 256], strides = [1, 1]} : vector<16x512xf32> to vector<16x256xf32>
      %c0_71 = arith.constant 0 : index
      %c0_72 = arith.constant 0 : index
      %122 = vector.load %arg19[%c0_71, %c0_72] : memref<16x256xf32, #tpu.memory_space<vmem>>, vector<16x256xf32>
      tpu.vector_store %arg19[%c0_71, %c0_72], %121 {strides = array<i32>} : memref<16x256xf32, #tpu.memory_space<vmem>>, vector<16x256xf32>,
    } else {
    }
    %c0 = arith.constant 0 : index
    %c0_1 = arith.constant 0 : index
    %c0_2 = arith.constant 0 : index
    %3 = vector.load %arg3[%c0, %c0_1, %c0_2] : memref<1x8x128xf32, #tpu.memory_space<vmem>>, vector<1x8x128xf32>
    %4 = vector.shape_cast %3 : vector<1x8x128xf32> to vector<8x128xf32>
    %c8_i32 = arith.constant 8 : i32
    %5 = arith.muli %arg1, %c8_i32 : i32
    %6 = tpu.assume_multiple %5, 8 : i32
    %7 = arith.index_cast %6 : i32 to index
    %c0_3 = arith.constant 0 : index
    %8 = vector.load %arg17[%7, %c0_3] : memref<16x128xf32, #tpu.memory_space<vmem>>, vector<8x128xf32>
    %c0_4 = arith.constant 0 : index
    %c0_5 = arith.constant 0 : index
    %9 = vector.load %arg6[%c0_4, %c0_5] : memref<128x256xf32, #tpu.memory_space<vmem>>, vector<128x256xf32>
    %cst = arith.constant dense<0.000000e+00> : vector<8x256xf32>
    %10 = tpu.matmul %8, %9, %cst {dimension_numbers = #tpu.dot_dimension_numbers<[1], [0], [0], [1], [0, 0, 1, 1], [], []>} : vector<8x128xf32>, vector<128x256xf32>, vector<8x256xf32> -> vector<8x256xf32>
    %cst_6 = arith.constant 0.0883883461 : f32
    %11 = vector.broadcast %cst_6 : f32 to vector<8x256xf32>
    %12 = arith.mulf %10, %11 : vector<8x256xf32>
    %13 = vector.extract_strided_slice %12 {offsets = [0, 0], sizes = [8, 128], strides = [1, 1]} : vector<8x256xf32> to vector<8x128xf32>
    %c0_7 = arith.constant 0 : index
    %c0_8 = arith.constant 0 : index
    %14 = vector.load %arg18[%c0_7, %c0_8] : memref<16x256xf32, #tpu.memory_space<vmem>>, vector<16x128xf32>
    %c0_9 = arith.constant 0 : index
    %c0_10 = arith.constant 0 : index
    %15 = vector.load %arg19[%c0_9, %c0_10] : memref<16x256xf32, #tpu.memory_space<vmem>>, vector<16x128xf32>
    %cst_11 = arith.constant dense<0.000000e+00> : vector<8x16xf32>
    %16 = tpu.matmul %13, %14, %cst_11 {dimension_numbers = #tpu.dot_dimension_numbers<[1], [1], [0], [0], [0, 0, 1, 0], [], []>} : vector<8x128xf32>, vector<16x128xf32>, vector<8x16xf32> -> vector<8x16xf32>
    %cst_12 = arith.constant dense<0xFF800000> : vector<8xf32>
    %17 = vector.multi_reduction <maximumf>, %16, %cst_12 [1] : vector<8x16xf32> to vector<8xf32>
    %18 = vector.shape_cast %17 : vector<8xf32> to vector<8x1xf32>
    %19 = vector.broadcast %18 : vector<8x1xf32> to vector<8x16xf32>
    %20 = arith.subf %16, %19 : vector<8x16xf32>
    %21 = math.exp %20 : vector<8x16xf32>
    %cst_13 = arith.constant dense<0.000000e+00> : vector<8xf32>
    %22 = vector.multi_reduction <add>, %21, %cst_13 [1] : vector<8x16xf32> to vector<8xf32>
    %23 = vector.shape_cast %22 : vector<8xf32> to vector<8x1xf32>
    %24 = vector.broadcast %23 : vector<8x1xf32> to vector<8x16xf32>
    %25 = arith.divf %21, %24 : vector<8x16xf32>
    %cst_14 = arith.constant dense<0.000000e+00> : vector<8x128xf32>
    %26 = tpu.matmul %25, %15, %cst_14 {dimension_numbers = #tpu.dot_dimension_numbers<[1], [0], [0], [1], [0, 0, 1, 1], [], []>} : vector<8x16xf32>, vector<16x128xf32>, vector<8x128xf32> -> vector<8x128xf32>
    %27 = vector.extract_strided_slice %12 {offsets = [0, 128], sizes = [8, 128], strides = [1, 1]} : vector<8x256xf32> to vector<8x128xf32>
    %c0_15 = arith.constant 0 : index
    %c128 = arith.constant 128 : index
    %28 = vector.load %arg18[%c0_15, %c128] : memref<16x256xf32, #tpu.memory_space<vmem>>, vector<16x128xf32>
    %c0_16 = arith.constant 0 : index
    %c128_17 = arith.constant 128 : index
    %29 = vector.load %arg19[%c0_16, %c128_17] : memref<16x256xf32, #tpu.memory_space<vmem>>, vector<16x128xf32>
    %cst_18 = arith.constant dense<0.000000e+00> : vector<8x16xf32>
    %30 = tpu.matmul %27, %28, %cst_18 {dimension_numbers = #tpu.dot_dimension_numbers<[1], [1], [0], [0], [0, 0, 1, 0], [], []>} : vector<8x128xf32>, vector<16x128xf32>, vector<8x16xf32> -> vector<8x16xf32>
    %cst_19 = arith.constant dense<0xFF800000> : vector<8xf32>
    %31 = vector.multi_reduction <maximumf>, %30, %cst_19 [1] : vector<8x16xf32> to vector<8xf32>
    %32 = vector.shape_cast %31 : vector<8xf32> to vector<8x1xf32>
    %33 = vector.broadcast %32 : vector<8x1xf32> to vector<8x16xf32>
    %34 = arith.subf %30, %33 : vector<8x16xf32>
    %35 = math.exp %34 : vector<8x16xf32>
    %cst_20 = arith.constant dense<0.000000e+00> : vector<8xf32>
    %36 = vector.multi_reduction <add>, %35, %cst_20 [1] : vector<8x16xf32> to vector<8xf32>
    %37 = vector.shape_cast %36 : vector<8xf32> to vector<8x1xf32>
    %38 = vector.broadcast %37 : vector<8x1xf32> to vector<8x16xf32>
    %39 = arith.divf %35, %38 : vector<8x16xf32>
    %cst_21 = arith.constant dense<0.000000e+00> : vector<8x128xf32>
    %40 = tpu.matmul %39, %29, %cst_21 {dimension_numbers = #tpu.dot_dimension_numbers<[1], [0], [0], [1], [0, 0, 1, 1], [], []>} : vector<8x16xf32>, vector<16x128xf32>, vector<8x128xf32> -> vector<8x128xf32>
    %41 = tpu.concatenate %26, %40 in 1 : vector<8x128xf32>, vector<8x128xf32> -> vector<8x256xf32>
    %c0_22 = arith.constant 0 : index
    %c0_23 = arith.constant 0 : index
    %42 = vector.load %arg8[%c0_22, %c0_23] : memref<256x128xf32, #tpu.memory_space<vmem>>, vector<256x128xf32>
    %cst_24 = arith.constant dense<0.000000e+00> : vector<8x128xf32>
    %43 = tpu.matmul %41, %42, %cst_24 {dimension_numbers = #tpu.dot_dimension_numbers<[1], [0], [0], [1], [0, 0, 1, 1], [], []>} : vector<8x256xf32>, vector<256x128xf32>, vector<8x128xf32> -> vector<8x128xf32>
    %c0_25 = arith.constant 0 : index
    %c0_26 = arith.constant 0 : index
    %44 = vector.load %arg9[%c0_25, %c0_26] : memref<1x128xf32, #tpu.memory_space<vmem>>, vector<1x128xf32>
    %45 = vector.broadcast %44 : vector<1x128xf32> to vector<8x128xf32>
    %46 = arith.addf %43, %45 : vector<8x128xf32>
    %47 = arith.addf %4, %46 : vector<8x128xf32>
    %c0_27 = arith.constant 0 : index
    %c0_28 = arith.constant 0 : index
    %48 = vector.load %arg10[%c0_27, %c0_28] : memref<1x128xf32, #tpu.memory_space<vmem>>, vector<1x128xf32>
    %c0_29 = arith.constant 0 : index
    %c0_30 = arith.constant 0 : index
    %49 = vector.load %arg11[%c0_29, %c0_30] : memref<1x128xf32, #tpu.memory_space<vmem>>, vector<1x128xf32>
    %cst_31 = arith.constant dense<0.000000e+00> : vector<8xf32>
    %50 = vector.multi_reduction <add>, %47, %cst_31 [1] : vector<8x128xf32> to vector<8xf32>
    %51 = vector.shape_cast %50 : vector<8xf32> to vector<8x1xf32>
    %cst_32 = arith.constant 1.280000e+02 : f32
    %52 = vector.broadcast %cst_32 : f32 to vector<8x1xf32>
    %53 = arith.divf %51, %52 : vector<8x1xf32>
    %54 = vector.broadcast %53 : vector<8x1xf32> to vector<8x128xf32>
    %55 = arith.subf %47, %54 : vector<8x128xf32>
    %56 = arith.mulf %55, %55 : vector<8x128xf32>
    %cst_33 = arith.constant dense<0.000000e+00> : vector<8xf32>
    %57 = vector.multi_reduction <add>, %56, %cst_33 [1] : vector<8x128xf32> to vector<8xf32>
    %58 = vector.shape_cast %57 : vector<8xf32> to vector<8x1xf32>
    %cst_34 = arith.constant 1.280000e+02 : f32
    %59 = vector.broadcast %cst_34 : f32 to vector<8x1xf32>
    %60 = arith.divf %58, %59 : vector<8x1xf32>
    %cst_35 = arith.constant 9.99999974E-6 : f32
    %61 = vector.broadcast %cst_35 : f32 to vector<8x1xf32>
    %62 = arith.addf %60, %61 : vector<8x1xf32>
    %63 = math.rsqrt %62 : vector<8x1xf32>
    %64 = vector.broadcast %63 : vector<8x1xf32> to vector<8x128xf32>
    %65 = arith.mulf %55, %64 : vector<8x128xf32>
    %66 = vector.broadcast %48 : vector<1x128xf32> to vector<8x128xf32>
    %67 = arith.mulf %65, %66 : vector<8x128xf32>
    %68 = vector.broadcast %49 : vector<1x128xf32> to vector<8x128xf32>
    %69 = arith.addf %67, %68 : vector<8x128xf32>
    %c0_36 = arith.constant 0 : index
    %c0_37 = arith.constant 0 : index
    %70 = vector.load %arg12[%c0_36, %c0_37] : memref<128x256xf32, #tpu.memory_space<vmem>>, vector<128x256xf32>
    %cst_38 = arith.constant dense<0.000000e+00> : vector<8x256xf32>
    %71 = tpu.matmul %69, %70, %cst_38 {dimension_numbers = #tpu.dot_dimension_numbers<[1], [0], [0], [1], [0, 0, 1, 1], [], []>} : vector<8x128xf32>, vector<128x256xf32>, vector<8x256xf32> -> vector<8x256xf32>
    %c0_39 = arith.constant 0 : index
    %c0_40 = arith.constant 0 : index
    %72 = vector.load %arg13[%c0_39, %c0_40] : memref<1x256xf32, #tpu.memory_space<vmem>>, vector<1x256xf32>
    %73 = vector.broadcast %72 : vector<1x256xf32> to vector<8x256xf32>
    %74 = arith.addf %71, %73 : vector<8x256xf32>
    %cst_41 = arith.constant 5.000000e-01 : f32
    %75 = vector.broadcast %cst_41 : f32 to vector<8x256xf32>
    %76 = arith.mulf %75, %74 : vector<8x256xf32>
    %cst_42 = arith.constant 0.707106769 : f32
    %77 = vector.broadcast %cst_42 : f32 to vector<8x256xf32>
    %78 = arith.mulf %74, %77 : vector<8x256xf32>
    %79 = math.erf %78 : vector<8x256xf32>
    %cst_43 = arith.constant 1.000000e+00 : f32
    %80 = vector.broadcast %cst_43 : f32 to vector<8x256xf32>
    %81 = arith.addf %80, %79 : vector<8x256xf32>
    %82 = arith.mulf %76, %81 : vector<8x256xf32>
    %c0_44 = arith.constant 0 : index
    %c0_45 = arith.constant 0 : index
    %83 = vector.load %arg14[%c0_44, %c0_45] : memref<256x128xf32, #tpu.memory_space<vmem>>, vector<256x128xf32>
    %cst_46 = arith.constant dense<0.000000e+00> : vector<8x128xf32>
    %84 = tpu.matmul %82, %83, %cst_46 {dimension_numbers = #tpu.dot_dimension_numbers<[1], [0], [0], [1], [0, 0, 1, 1], [], []>} : vector<8x256xf32>, vector<256x128xf32>, vector<8x128xf32> -> vector<8x128xf32>
    %c0_47 = arith.constant 0 : index
    %c0_48 = arith.constant 0 : index
    %85 = vector.load %arg15[%c0_47, %c0_48] : memref<1x128xf32, #tpu.memory_space<vmem>>, vector<1x128xf32>
    %86 = vector.broadcast %85 : vector<1x128xf32> to vector<8x128xf32>
    %87 = arith.addf %84, %86 : vector<8x128xf32>
    %88 = arith.addf %47, %87 : vector<8x128xf32>
    %c0_49 = arith.constant 0 : index
    %c0_50 = arith.constant 0 : index
    %c0_51 = arith.constant 0 : index
    %89 = vector.load %arg16[%c0_49, %c0_50, %c0_51] : memref<1x8x128xf32, #tpu.memory_space<vmem>>, vector<1x8x128xf32>
    %90 = vector.shape_cast %89 : vector<1x8x128xf32> to vector<8x128xf32>
    %91 = vector.shape_cast %88 : vector<8x128xf32> to vector<1x8x128xf32>
    tpu.vector_store %arg16[%c0_49, %c0_50, %c0_51], %91 {strides = array<i32>} : memref<1x8x128xf32, #tpu.memory_space<vmem>>, vector<1x8x128xf32>,
    return
  }
  func.func @transform_0(%arg0: i32, %arg1: i32) -> (i32, i32, i32) {
    %c0_i32 = arith.constant 0 : i32
    %c0_i32_0 = arith.constant 0 : i32
    %c0_i32_1 = arith.constant 0 : i32
    return %arg0, %c0_i32, %c0_i32_0 : i32, i32, i32
  }
  func.func @transform_1(%arg0: i32, %arg1: i32) -> (i32, i32, i32) {
    %c0_i32 = arith.constant 0 : i32
    %c0_i32_0 = arith.constant 0 : i32
    return %arg0, %arg1, %c0_i32 : i32, i32, i32
  }
  func.func @transform_2(%arg0: i32, %arg1: i32) -> (i32, i32) {
    %c0_i32 = arith.constant 0 : i32
    %c0_i32_0 = arith.constant 0 : i32
    %c0_i32_1 = arith.constant 0 : i32
    return %c0_i32, %c0_i32_0 : i32, i32
  }
  func.func @transform_3(%arg0: i32, %arg1: i32) -> (i32, i32) {
    %c0_i32 = arith.constant 0 : i32
    %c0_i32_0 = arith.constant 0 : i32
    %c0_i32_1 = arith.constant 0 : i32
    return %c0_i32, %c0_i32_0 : i32, i32
  }
  func.func @transform_4(%arg0: i32, %arg1: i32) -> (i32, i32) {
    %c0_i32 = arith.constant 0 : i32
    %c0_i32_0 = arith.constant 0 : i32
    %c0_i32_1 = arith.constant 0 : i32
    return %c0_i32, %c0_i32_0 : i32, i32
  }
  func.func @transform_5(%arg0: i32, %arg1: i32) -> (i32, i32) {
    %c0_i32 = arith.constant 0 : i32
    %c0_i32_0 = arith.constant 0 : i32
    %c0_i32_1 = arith.constant 0 : i32
    return %c0_i32, %c0_i32_0 : i32, i32
  }
  func.func @transform_6(%arg0: i32, %arg1: i32) -> (i32, i32) {
    %c0_i32 = arith.constant 0 : i32
    %c0_i32_0 = arith.constant 0 : i32
    %c0_i32_1 = arith.constant 0 : i32
    return %c0_i32, %c0_i32_0 : i32, i32
  }
  func.func @transform_7(%arg0: i32, %arg1: i32) -> (i32, i32) {
    %c0_i32 = arith.constant 0 : i32
    %c0_i32_0 = arith.constant 0 : i32
    %c0_i32_1 = arith.constant 0 : i32
    return %c0_i32, %c0_i32_0 : i32, i32
  }
  func.func @transform_8(%arg0: i32, %arg1: i32) -> (i32, i32) {
    %c0_i32 = arith.constant 0 : i32
    %c0_i32_0 = arith.constant 0 : i32
    %c0_i32_1 = arith.constant 0 : i32
    return %c0_i32, %c0_i32_0 : i32, i32
  }
  func.func @transform_9(%arg0: i32, %arg1: i32) -> (i32, i32) {
    %c0_i32 = arith.constant 0 : i32
    %c0_i32_0 = arith.constant 0 : i32
    %c0_i32_1 = arith.constant 0 : i32
    return %c0_i32, %c0_i32_0 : i32, i32
  }
  func.func @transform_10(%arg0: i32, %arg1: i32) -> (i32, i32) {
    %c0_i32 = arith.constant 0 : i32
    %c0_i32_0 = arith.constant 0 : i32
    %c0_i32_1 = arith.constant 0 : i32
    return %c0_i32, %c0_i32_0 : i32, i32
  }
  func.func @transform_11(%arg0: i32, %arg1: i32) -> (i32, i32) {
    %c0_i32 = arith.constant 0 : i32
    %c0_i32_0 = arith.constant 0 : i32
    %c0_i32_1 = arith.constant 0 : i32
    return %c0_i32, %c0_i32_0 : i32, i32
  }
  func.func @transform_12(%arg0: i32, %arg1: i32) -> (i32, i32) {
    %c0_i32 = arith.constant 0 : i32
    %c0_i32_0 = arith.constant 0 : i32
    %c0_i32_1 = arith.constant 0 : i32
    return %c0_i32, %c0_i32_0 : i32, i32
  }
  func.func @transform_13(%arg0: i32, %arg1: i32) -> (i32, i32) {
    %c0_i32 = arith.constant 0 : i32
    %c0_i32_0 = arith.constant 0 : i32
    %c0_i32_1 = arith.constant 0 : i32
    return %c0_i32, %c0_i32_0 : i32, i32
  }
  func.func @transform_14(%arg0: i32, %arg1: i32) -> (i32, i32, i32) {
    %c0_i32 = arith.constant 0 : i32
    %c0_i32_0 = arith.constant 0 : i32
    return %arg0, %arg1, %c0_i32 : i32, i32, i32
  }
}

module attributes {stable_mosaic.version = 11 : i64} {
  func.func @_layer_kernel(%arg0: i32, %arg1: i32, %arg2: memref<1x16x128xf32, #tpu.memory_space<vmem>>, %arg3: memref<1x8x128xf32, #tpu.memory_space<vmem>>, %arg4: memref<1x128xf32, #tpu.memory_space<vmem>>, %arg5: memref<1x128xf32, #tpu.memory_space<vmem>>, %arg6: memref<128x256xf32, #tpu.memory_space<vmem>>, %arg7: memref<128x512xf32, #tpu.memory_space<vmem>>, %arg8: memref<256x128xf32, #tpu.memory_space<vmem>>, %arg9: memref<1x128xf32, #tpu.memory_space<vmem>>, %arg10: memref<1x128xf32, #tpu.memory_space<vmem>>, %arg11: memref<1x128xf32, #tpu.memory_space<vmem>>, %arg12: memref<128x256xf32, #tpu.memory_space<vmem>>, %arg13: memref<1x256xf32, #tpu.memory_space<vmem>>, %arg14: memref<256x128xf32, #tpu.memory_space<vmem>>, %arg15: memref<1x128xf32, #tpu.memory_space<vmem>>, %arg16: memref<1x8x128xf32, #tpu.memory_space<vmem>>, %arg17: memref<16x128xf32, #tpu.memory_space<vmem>>, %arg18: memref<16x256xf32, #tpu.memory_space<vmem>>, %arg19: memref<16x256xf32, #tpu.memory_space<vmem>>) attributes {dimension_semantics = [#tpu.dimension_semantics<parallel>, #tpu.dimension_semantics<arbitrary>], iteration_bounds = array<i64: 2, 2>, scalar_prefetch = 0 : i64, scratch_operands = 3 : i64, tpu.core_type = #tpu.core_type<tc>, window_params = [{transform_indices = @transform_0, window_bounds = array<i64: 1, 16, 128>}, {transform_indices = @transform_1, window_bounds = array<i64: 1, 8, 128>}, {pipeline_mode = #tpu.pipeline_mode<synchronous>, transform_indices = @transform_2, window_bounds = array<i64: 1, 128>}, {pipeline_mode = #tpu.pipeline_mode<synchronous>, transform_indices = @transform_3, window_bounds = array<i64: 1, 128>}, {pipeline_mode = #tpu.pipeline_mode<synchronous>, transform_indices = @transform_4, window_bounds = array<i64: 128, 256>}, {pipeline_mode = #tpu.pipeline_mode<synchronous>, transform_indices = @transform_5, window_bounds = array<i64: 128, 512>}, {pipeline_mode = #tpu.pipeline_mode<synchronous>, transform_indices = @transform_6, window_bounds = array<i64: 256, 128>}, {pipeline_mode = #tpu.pipeline_mode<synchronous>, transform_indices = @transform_7, window_bounds = array<i64: 1, 128>}, {pipeline_mode = #tpu.pipeline_mode<synchronous>, transform_indices = @transform_8, window_bounds = array<i64: 1, 128>}, {pipeline_mode = #tpu.pipeline_mode<synchronous>, transform_indices = @transform_9, window_bounds = array<i64: 1, 128>}, {pipeline_mode = #tpu.pipeline_mode<synchronous>, transform_indices = @transform_10, window_bounds = array<i64: 128, 256>}, {pipeline_mode = #tpu.pipeline_mode<synchronous>, transform_indices = @transform_11, window_bounds = array<i64: 1, 256>}, {pipeline_mode = #tpu.pipeline_mode<synchronous>, transform_indices = @transform_12, window_bounds = array<i64: 256, 128>}, {pipeline_mode = #tpu.pipeline_mode<synchronous>, transform_indices = @transform_13, window_bounds = array<i64: 1, 128>}, {transform_indices = @transform_14, window_bounds = array<i64: 1, 8, 128>}]} {
    %c0_i32 = arith.constant 0 : i32
    %0 = arith.cmpi eq, %arg1, %c0_i32 : i32
    %1 = arith.extui %0 : i1 to i32
    %c0_i32_0 = arith.constant 0 : i32
    %2 = arith.cmpi ne, %1, %c0_i32_0 : i32
    scf.if %2 {
      %c0_52 = arith.constant 0 : index
      %c0_53 = arith.constant 0 : index
      %c0_54 = arith.constant 0 : index
      %92 = vector.load %arg2[%c0_52, %c0_53, %c0_54] : memref<1x16x128xf32, #tpu.memory_space<vmem>>, vector<1x16x128xf32>
      %93 = vector.shape_cast %92 : vector<1x16x128xf32> to vector<16x128xf32>
      %c0_55 = arith.constant 0 : index
      %c0_56 = arith.constant 0 : index
      %94 = vector.load %arg4[%c0_55, %c0_56] : memref<1x128xf32, #tpu.memory_space<vmem>>, vector<1x128xf32>
      %c0_57 = arith.constant 0 : index
      %c0_58 = arith.constant 0 : index
      %95 = vector.load %arg5[%c0_57, %c0_58] : memref<1x128xf32, #tpu.memory_space<vmem>>, vector<1x128xf32>
      %cst_59 = arith.constant dense<0.000000e+00> : vector<16xf32>
      %96 = vector.multi_reduction <add>, %93, %cst_59 [1] : vector<16x128xf32> to vector<16xf32>
      %97 = vector.shape_cast %96 : vector<16xf32> to vector<16x1xf32>
      %cst_60 = arith.constant 1.280000e+02 : f32
      %98 = vector.broadcast %cst_60 : f32 to vector<16x1xf32>
      %99 = arith.divf %97, %98 : vector<16x1xf32>
      %100 = vector.broadcast %99 : vector<16x1xf32> to vector<16x128xf32>
      %101 = arith.subf %93, %100 : vector<16x128xf32>
      %102 = arith.mulf %101, %101 : vector<16x128xf32>
      %cst_61 = arith.constant dense<0.000000e+00> : vector<16xf32>
      %103 = vector.multi_reduction <add>, %102, %cst_61 [1] : vector<16x128xf32> to vector<16xf32>
      %104 = vector.shape_cast %103 : vector<16xf32> to vector<16x1xf32>
      %cst_62 = arith.constant 1.280000e+02 : f32
      %105 = vector.broadcast %cst_62 : f32 to vector<16x1xf32>
      %106 = arith.divf %104, %105 : vector<16x1xf32>
      %cst_63 = arith.constant 9.99999974E-6 : f32
      %107 = vector.broadcast %cst_63 : f32 to vector<16x1xf32>
      %108 = arith.addf %106, %107 : vector<16x1xf32>
      %109 = math.rsqrt %108 : vector<16x1xf32>
      %110 = vector.broadcast %109 : vector<16x1xf32> to vector<16x128xf32>
      %111 = arith.mulf %101, %110 : vector<16x128xf32>
      %112 = vector.broadcast %94 : vector<1x128xf32> to vector<16x128xf32>
      %113 = arith.mulf %111, %112 : vector<16x128xf32>
      %114 = vector.broadcast %95 : vector<1x128xf32> to vector<16x128xf32>
      %115 = arith.addf %113, %114 : vector<16x128xf32>
      %c0_64 = arith.constant 0 : index
      %c0_65 = arith.constant 0 : index
      %116 = vector.load %arg17[%c0_64, %c0_65] : memref<16x128xf32, #tpu.memory_space<vmem>>, vector<16x128xf32>
      tpu.vector_store %arg17[%c0_64, %c0_65], %115 {strides = array<i32>} : memref<16x128xf32, #tpu.memory_space<vmem>>, vector<16x128xf32>,
      %c0_66 = arith.constant 0 : index
      %c0_67 = arith.constant 0 : index
      %117 = vector.load %arg7[%c0_66, %c0_67] : memref<128x512xf32, #tpu.memory_space<vmem>>, vector<128x512xf32>
      %cst_68 = arith.constant dense<0.000000e+00> : vector<16x512xf32>
      %118 = tpu.matmul %115, %117, %cst_68 {dimension_numbers = #tpu.dot_dimension_numbers<[1], [0], [0], [1], [0, 0, 1, 1], [], []>} : vector<16x128xf32>, vector<128x512xf32>, vector<16x512xf32> -> vector<16x512xf32>
      %119 = vector.extract_strided_slice %118 {offsets = [0, 0], sizes = [16, 256], strides = [1, 1]} : vector<16x512xf32> to vector<16x256xf32>
      %c0_69 = arith.constant 0 : index
      %c0_70 = arith.constant 0 : index
      %120 = vector.load %arg18[%c0_69, %c0_70] : memref<16x256xf32, #tpu.memory_space<vmem>>, vector<16x256xf32>
      tpu.vector_store %arg18[%c0_69, %c0_70], %119 {strides = array<i32>} : memref<16x256xf32, #tpu.memory_space<vmem>>, vector<16x256xf32>,
      %121 = vector.extract_strided_slice %118 {offsets = [0, 256], sizes = [16, 256], strides = [1, 1]} : vector<16x512xf32> to vector<16x256xf32>
      %c0_71 = arith.constant 0 : index
      %c0_72 = arith.constant 0 : index
      %122 = vector.load %arg19[%c0_71, %c0_72] : memref<16x256xf32, #tpu.memory_space<vmem>>, vector<16x256xf32>
      tpu.vector_store %arg19[%c0_71, %c0_72], %121 {strides = array<i32>} : memref<16x256xf32, #tpu.memory_space<vmem>>, vector<16x256xf32>,
    } else {
    }
    %c0 = arith.constant 0 : index
    %c0_1 = arith.constant 0 : index
    %c0_2 = arith.constant 0 : index
    %3 = vector.load %arg3[%c0, %c0_1, %c0_2] : memref<1x8x128xf32, #tpu.memory_space<vmem>>, vector<1x8x128xf32>
    %4 = vector.shape_cast %3 : vector<1x8x128xf32> to vector<8x128xf32>
    %c8_i32 = arith.constant 8 : i32
    %5 = arith.muli %arg1, %c8_i32 : i32
    %6 = tpu.assume_multiple %5, 8 : i32
    %7 = arith.index_cast %6 : i32 to index
    %c0_3 = arith.constant 0 : index
    %8 = vector.load %arg17[%7, %c0_3] : memref<16x128xf32, #tpu.memory_space<vmem>>, vector<8x128xf32>
    %c0_4 = arith.constant 0 : index
    %c0_5 = arith.constant 0 : index
    %9 = vector.load %arg6[%c0_4, %c0_5] : memref<128x256xf32, #tpu.memory_space<vmem>>, vector<128x256xf32>
    %cst = arith.constant dense<0.000000e+00> : vector<8x256xf32>
    %10 = tpu.matmul %8, %9, %cst {dimension_numbers = #tpu.dot_dimension_numbers<[1], [0], [0], [1], [0, 0, 1, 1], [], []>} : vector<8x128xf32>, vector<128x256xf32>, vector<8x256xf32> -> vector<8x256xf32>
    %cst_6 = arith.constant 0.0883883461 : f32
    %11 = vector.broadcast %cst_6 : f32 to vector<8x256xf32>
    %12 = arith.mulf %10, %11 : vector<8x256xf32>
    %13 = vector.extract_strided_slice %12 {offsets = [0, 0], sizes = [8, 128], strides = [1, 1]} : vector<8x256xf32> to vector<8x128xf32>
    %c0_7 = arith.constant 0 : index
    %c0_8 = arith.constant 0 : index
    %14 = vector.load %arg18[%c0_7, %c0_8] : memref<16x256xf32, #tpu.memory_space<vmem>>, vector<16x128xf32>
    %c0_9 = arith.constant 0 : index
    %c0_10 = arith.constant 0 : index
    %15 = vector.load %arg19[%c0_9, %c0_10] : memref<16x256xf32, #tpu.memory_space<vmem>>, vector<16x128xf32>
    %cst_11 = arith.constant dense<0.000000e+00> : vector<8x16xf32>
    %16 = tpu.matmul %13, %14, %cst_11 {dimension_numbers = #tpu.dot_dimension_numbers<[1], [1], [0], [0], [0, 0, 1, 0], [], []>} : vector<8x128xf32>, vector<16x128xf32>, vector<8x16xf32> -> vector<8x16xf32>
    %cst_12 = arith.constant dense<0xFF800000> : vector<8xf32>
    %17 = vector.multi_reduction <maximumf>, %16, %cst_12 [1] : vector<8x16xf32> to vector<8xf32>
    %18 = vector.shape_cast %17 : vector<8xf32> to vector<8x1xf32>
    %19 = vector.broadcast %18 : vector<8x1xf32> to vector<8x16xf32>
    %20 = arith.subf %16, %19 : vector<8x16xf32>
    %21 = math.exp %20 : vector<8x16xf32>
    %cst_13 = arith.constant dense<0.000000e+00> : vector<8xf32>
    %22 = vector.multi_reduction <add>, %21, %cst_13 [1] : vector<8x16xf32> to vector<8xf32>
    %23 = vector.shape_cast %22 : vector<8xf32> to vector<8x1xf32>
    %24 = vector.broadcast %23 : vector<8x1xf32> to vector<8x16xf32>
    %25 = arith.divf %21, %24 : vector<8x16xf32>
    %cst_14 = arith.constant dense<0.000000e+00> : vector<8x128xf32>
    %26 = tpu.matmul %25, %15, %cst_14 {dimension_numbers = #tpu.dot_dimension_numbers<[1], [0], [0], [1], [0, 0, 1, 1], [], []>} : vector<8x16xf32>, vector<16x128xf32>, vector<8x128xf32> -> vector<8x128xf32>
    %27 = vector.extract_strided_slice %12 {offsets = [0, 128], sizes = [8, 128], strides = [1, 1]} : vector<8x256xf32> to vector<8x128xf32>
    %c0_15 = arith.constant 0 : index
    %c128 = arith.constant 128 : index
    %28 = vector.load %arg18[%c0_15, %c128] : memref<16x256xf32, #tpu.memory_space<vmem>>, vector<16x128xf32>
    %c0_16 = arith.constant 0 : index
    %c128_17 = arith.constant 128 : index
    %29 = vector.load %arg19[%c0_16, %c128_17] : memref<16x256xf32, #tpu.memory_space<vmem>>, vector<16x128xf32>
    %cst_18 = arith.constant dense<0.000000e+00> : vector<8x16xf32>
    %30 = tpu.matmul %27, %28, %cst_18 {dimension_numbers = #tpu.dot_dimension_numbers<[1], [1], [0], [0], [0, 0, 1, 0], [], []>} : vector<8x128xf32>, vector<16x128xf32>, vector<8x16xf32> -> vector<8x16xf32>
    %cst_19 = arith.constant dense<0xFF800000> : vector<8xf32>
    %31 = vector.multi_reduction <maximumf>, %30, %cst_19 [1] : vector<8x16xf32> to vector<8xf32>
    %32 = vector.shape_cast %31 : vector<8xf32> to vector<8x1xf32>
    %33 = vector.broadcast %32 : vector<8x1xf32> to vector<8x16xf32>
    %34 = arith.subf %30, %33 : vector<8x16xf32>
    %35 = math.exp %34 : vector<8x16xf32>
    %cst_20 = arith.constant dense<0.000000e+00> : vector<8xf32>
    %36 = vector.multi_reduction <add>, %35, %cst_20 [1] : vector<8x16xf32> to vector<8xf32>
    %37 = vector.shape_cast %36 : vector<8xf32> to vector<8x1xf32>
    %38 = vector.broadcast %37 : vector<8x1xf32> to vector<8x16xf32>
    %39 = arith.divf %35, %38 : vector<8x16xf32>
    %cst_21 = arith.constant dense<0.000000e+00> : vector<8x128xf32>
    %40 = tpu.matmul %39, %29, %cst_21 {dimension_numbers = #tpu.dot_dimension_numbers<[1], [0], [0], [1], [0, 0, 1, 1], [], []>} : vector<8x16xf32>, vector<16x128xf32>, vector<8x128xf32> -> vector<8x128xf32>
    %41 = tpu.concatenate %26, %40 in 1 : vector<8x128xf32>, vector<8x128xf32> -> vector<8x256xf32>
    %c0_22 = arith.constant 0 : index
    %c0_23 = arith.constant 0 : index
    %42 = vector.load %arg8[%c0_22, %c0_23] : memref<256x128xf32, #tpu.memory_space<vmem>>, vector<256x128xf32>
    %cst_24 = arith.constant dense<0.000000e+00> : vector<8x128xf32>
    %43 = tpu.matmul %41, %42, %cst_24 {dimension_numbers = #tpu.dot_dimension_numbers<[1], [0], [0], [1], [0, 0, 1, 1], [], []>} : vector<8x256xf32>, vector<256x128xf32>, vector<8x128xf32> -> vector<8x128xf32>
    %c0_25 = arith.constant 0 : index
    %c0_26 = arith.constant 0 : index
    %44 = vector.load %arg9[%c0_25, %c0_26] : memref<1x128xf32, #tpu.memory_space<vmem>>, vector<1x128xf32>
    %45 = vector.broadcast %44 : vector<1x128xf32> to vector<8x128xf32>
    %46 = arith.addf %43, %45 : vector<8x128xf32>
    %47 = arith.addf %4, %46 : vector<8x128xf32>
    %c0_27 = arith.constant 0 : index
    %c0_28 = arith.constant 0 : index
    %48 = vector.load %arg10[%c0_27, %c0_28] : memref<1x128xf32, #tpu.memory_space<vmem>>, vector<1x128xf32>
    %c0_29 = arith.constant 0 : index
    %c0_30 = arith.constant 0 : index
    %49 = vector.load %arg11[%c0_29, %c0_30] : memref<1x128xf32, #tpu.memory_space<vmem>>, vector<1x128xf32>
    %cst_31 = arith.constant dense<0.000000e+00> : vector<8xf32>
    %50 = vector.multi_reduction <add>, %47, %cst_31 [1] : vector<8x128xf32> to vector<8xf32>
    %51 = vector.shape_cast %50 : vector<8xf32> to vector<8x1xf32>
    %cst_32 = arith.constant 1.280000e+02 : f32
    %52 = vector.broadcast %cst_32 : f32 to vector<8x1xf32>
    %53 = arith.divf %51, %52 : vector<8x1xf32>
    %54 = vector.broadcast %53 : vector<8x1xf32> to vector<8x128xf32>
    %55 = arith.subf %47, %54 : vector<8x128xf32>
    %56 = arith.mulf %55, %55 : vector<8x128xf32>
    %cst_33 = arith.constant dense<0.000000e+00> : vector<8xf32>
    %57 = vector.multi_reduction <add>, %56, %cst_33 [1] : vector<8x128xf32> to vector<8xf32>
    %58 = vector.shape_cast %57 : vector<8xf32> to vector<8x1xf32>
    %cst_34 = arith.constant 1.280000e+02 : f32
    %59 = vector.broadcast %cst_34 : f32 to vector<8x1xf32>
    %60 = arith.divf %58, %59 : vector<8x1xf32>
    %cst_35 = arith.constant 9.99999974E-6 : f32
    %61 = vector.broadcast %cst_35 : f32 to vector<8x1xf32>
    %62 = arith.addf %60, %61 : vector<8x1xf32>
    %63 = math.rsqrt %62 : vector<8x1xf32>
    %64 = vector.broadcast %63 : vector<8x1xf32> to vector<8x128xf32>
    %65 = arith.mulf %55, %64 : vector<8x128xf32>
    %66 = vector.broadcast %48 : vector<1x128xf32> to vector<8x128xf32>
    %67 = arith.mulf %65, %66 : vector<8x128xf32>
    %68 = vector.broadcast %49 : vector<1x128xf32> to vector<8x128xf32>
    %69 = arith.addf %67, %68 : vector<8x128xf32>
    %c0_36 = arith.constant 0 : index
    %c0_37 = arith.constant 0 : index
    %70 = vector.load %arg12[%c0_36, %c0_37] : memref<128x256xf32, #tpu.memory_space<vmem>>, vector<128x256xf32>
    %cst_38 = arith.constant dense<0.000000e+00> : vector<8x256xf32>
    %71 = tpu.matmul %69, %70, %cst_38 {dimension_numbers = #tpu.dot_dimension_numbers<[1], [0], [0], [1], [0, 0, 1, 1], [], []>} : vector<8x128xf32>, vector<128x256xf32>, vector<8x256xf32> -> vector<8x256xf32>
    %c0_39 = arith.constant 0 : index
    %c0_40 = arith.constant 0 : index
    %72 = vector.load %arg13[%c0_39, %c0_40] : memref<1x256xf32, #tpu.memory_space<vmem>>, vector<1x256xf32>
    %73 = vector.broadcast %72 : vector<1x256xf32> to vector<8x256xf32>
    %74 = arith.addf %71, %73 : vector<8x256xf32>
    %cst_41 = arith.constant 5.000000e-01 : f32
    %75 = vector.broadcast %cst_41 : f32 to vector<8x256xf32>
    %76 = arith.mulf %75, %74 : vector<8x256xf32>
    %cst_42 = arith.constant 0.707106769 : f32
    %77 = vector.broadcast %cst_42 : f32 to vector<8x256xf32>
    %78 = arith.mulf %74, %77 : vector<8x256xf32>
    %79 = math.erf %78 : vector<8x256xf32>
    %cst_43 = arith.constant 1.000000e+00 : f32
    %80 = vector.broadcast %cst_43 : f32 to vector<8x256xf32>
    %81 = arith.addf %80, %79 : vector<8x256xf32>
    %82 = arith.mulf %76, %81 : vector<8x256xf32>
    %c0_44 = arith.constant 0 : index
    %c0_45 = arith.constant 0 : index
    %83 = vector.load %arg14[%c0_44, %c0_45] : memref<256x128xf32, #tpu.memory_space<vmem>>, vector<256x128xf32>
    %cst_46 = arith.constant dense<0.000000e+00> : vector<8x128xf32>
    %84 = tpu.matmul %82, %83, %cst_46 {dimension_numbers = #tpu.dot_dimension_numbers<[1], [0], [0], [1], [0, 0, 1, 1], [], []>} : vector<8x256xf32>, vector<256x128xf32>, vector<8x128xf32> -> vector<8x128xf32>
    %c0_47 = arith.constant 0 : index
    %c0_48 = arith.constant 0 : index
    %85 = vector.load %arg15[%c0_47, %c0_48] : memref<1x128xf32, #tpu.memory_space<vmem>>, vector<1x128xf32>
    %86 = vector.broadcast %85 : vector<1x128xf32> to vector<8x128xf32>
    %87 = arith.addf %84, %86 : vector<8x128xf32>
    %88 = arith.addf %47, %87 : vector<8x128xf32>
    %c0_49 = arith.constant 0 : index
    %c0_50 = arith.constant 0 : index
    %c0_51 = arith.constant 0 : index
    %89 = vector.load %arg16[%c0_49, %c0_50, %c0_51] : memref<1x8x128xf32, #tpu.memory_space<vmem>>, vector<1x8x128xf32>
    %90 = vector.shape_cast %89 : vector<1x8x128xf32> to vector<8x128xf32>
    %91 = vector.shape_cast %88 : vector<8x128xf32> to vector<1x8x128xf32>
    tpu.vector_store %arg16[%c0_49, %c0_50, %c0_51], %91 {strides = array<i32>} : memref<1x8x128xf32, #tpu.memory_space<vmem>>, vector<1x8x128xf32>,
    return
  }
  func.func @transform_0(%arg0: i32, %arg1: i32) -> (i32, i32, i32) {
    %c0_i32 = arith.constant 0 : i32
    %c0_i32_0 = arith.constant 0 : i32
    %c0_i32_1 = arith.constant 0 : i32
    return %arg0, %c0_i32, %c0_i32_0 : i32, i32, i32
  }
  func.func @transform_1(%arg0: i32, %arg1: i32) -> (i32, i32, i32) {
    %c0_i32 = arith.constant 0 : i32
    %c0_i32_0 = arith.constant 0 : i32
    return %arg0, %arg1, %c0_i32 : i32, i32, i32
  }
  func.func @transform_2(%arg0: i32, %arg1: i32) -> (i32, i32) {
    %c0_i32 = arith.constant 0 : i32
    %c0_i32_0 = arith.constant 0 : i32
    %c0_i32_1 = arith.constant 0 : i32
    return %c0_i32, %c0_i32_0 : i32, i32
  }
  func.func @transform_3(%arg0: i32, %arg1: i32) -> (i32, i32) {
    %c0_i32 = arith.constant 0 : i32
    %c0_i32_0 = arith.constant 0 : i32
    %c0_i32_1 = arith.constant 0 : i32
    return %c0_i32, %c0_i32_0 : i32, i32
  }
  func.func @transform_4(%arg0: i32, %arg1: i32) -> (i32, i32) {
    %c0_i32 = arith.constant 0 : i32
    %c0_i32_0 = arith.constant 0 : i32
    %c0_i32_1 = arith.constant 0 : i32
    return %c0_i32, %c0_i32_0 : i32, i32
  }
  func.func @transform_5(%arg0: i32, %arg1: i32) -> (i32, i32) {
    %c0_i32 = arith.constant 0 : i32
    %c0_i32_0 = arith.constant 0 : i32
    %c0_i32_1 = arith.constant 0 : i32
    return %c0_i32, %c0_i32_0 : i32, i32
  }
  func.func @transform_6(%arg0: i32, %arg1: i32) -> (i32, i32) {
    %c0_i32 = arith.constant 0 : i32
    %c0_i32_0 = arith.constant 0 : i32
    %c0_i32_1 = arith.constant 0 : i32
    return %c0_i32, %c0_i32_0 : i32, i32
  }
  func.func @transform_7(%arg0: i32, %arg1: i32) -> (i32, i32) {
    %c0_i32 = arith.constant 0 : i32
    %c0_i32_0 = arith.constant 0 : i32
    %c0_i32_1 = arith.constant 0 : i32
    return %c0_i32, %c0_i32_0 : i32, i32
  }
  func.func @transform_8(%arg0: i32, %arg1: i32) -> (i32, i32) {
    %c0_i32 = arith.constant 0 : i32
    %c0_i32_0 = arith.constant 0 : i32
    %c0_i32_1 = arith.constant 0 : i32
    return %c0_i32, %c0_i32_0 : i32, i32
  }
  func.func @transform_9(%arg0: i32, %arg1: i32) -> (i32, i32) {
    %c0_i32 = arith.constant 0 : i32
    %c0_i32_0 = arith.constant 0 : i32
    %c0_i32_1 = arith.constant 0 : i32
    return %c0_i32, %c0_i32_0 : i32, i32
  }
  func.func @transform_10(%arg0: i32, %arg1: i32) -> (i32, i32) {
    %c0_i32 = arith.constant 0 : i32
    %c0_i32_0 = arith.constant 0 : i32
    %c0_i32_1 = arith.constant 0 : i32
    return %c0_i32, %c0_i32_0 : i32, i32
  }
  func.func @transform_11(%arg0: i32, %arg1: i32) -> (i32, i32) {
    %c0_i32 = arith.constant 0 : i32
    %c0_i32_0 = arith.constant 0 : i32
    %c0_i32_1 = arith.constant 0 : i32
    return %c0_i32, %c0_i32_0 : i32, i32
  }
  func.func @transform_12(%arg0: i32, %arg1: i32) -> (i32, i32) {
    %c0_i32 = arith.constant 0 : i32
    %c0_i32_0 = arith.constant 0 : i32
    %c0_i32_1 = arith.constant 0 : i32
    return %c0_i32, %c0_i32_0 : i32, i32
  }
  func.func @transform_13(%arg0: i32, %arg1: i32) -> (i32, i32) {
    %c0_i32 = arith.constant 0 : i32
    %c0_i32_0 = arith.constant 0 : i32
    %c0_i32_1 = arith.constant 0 : i32
    return %c0_i32, %c0_i32_0 : i32, i32
  }
  func.func @transform_14(%arg0: i32, %arg1: i32) -> (i32, i32, i32) {
    %c0_i32 = arith.constant 0 : i32
    %c0_i32_0 = arith.constant 0 : i32
    return %arg0, %arg1, %c0_i32 : i32, i32, i32
  }
}

</mosaic_0001>

<llo_original>
// kernel: tpu_custom_call.1
$region0: #{tpu_custom_call.1}
  #allocation0 [shape = 'u32[]', space=smem, size = 0x4, offset = 0x4, fixed_abs, tag = 'smem constant byte address 0x4 - core index']
  #allocation1 [shape = 'u32[144,128]{1,0:T(1,128)}', space=vmem, size = 0x12000, scoped, tag = 'internal scratch']
  #allocation2 [shape = 'f32[16,128]{1,0:T(8,128)}', space=vmem, size = 0x2000, scoped, tag = 'scratch operand']
  #allocation3 [shape = 'f32[16,256]{1,0:T(8,128)}', space=vmem, size = 0x4000, scoped, tag = 'scratch operand']
  #allocation4 [shape = 'f32[16,256]{1,0:T(8,128)}', space=vmem, size = 0x4000, scoped, tag = 'scratch operand']
  %s0 = inlined_call_operand.hbm [shape: f32[2,16,128], index: 0, kind: input, shape index: {}]
  %s1 = inlined_call_operand.hbm [shape: f32[2,16,128], index: 1, kind: input, shape index: {}]
  %s2 = inlined_call_operand.vmem [shape: f32[1,128], index: 2, kind: input, shape index: {}]
  %s3 = inlined_call_operand.vmem [shape: f32[1,128], index: 3, kind: input, shape index: {}]
  %s4 = inlined_call_operand.hbm [shape: f32[128,256], index: 4, kind: input, shape index: {}]
  %s5 = inlined_call_operand.hbm [shape: f32[128,512], index: 5, kind: input, shape index: {}]
  %s6 = inlined_call_operand.hbm [shape: f32[256,128], index: 6, kind: input, shape index: {}]
  %s7 = inlined_call_operand.vmem [shape: f32[1,128], index: 7, kind: input, shape index: {}]
  %s8 = inlined_call_operand.vmem [shape: f32[1,128], index: 8, kind: input, shape index: {}]
  %s9 = inlined_call_operand.vmem [shape: f32[1,128], index: 9, kind: input, shape index: {}]
  %s10 = inlined_call_operand.hbm [shape: f32[128,256], index: 10, kind: input, shape index: {}]
  %s11 = inlined_call_operand.vmem [shape: f32[1,256], index: 11, kind: input, shape index: {}]
  %s12 = inlined_call_operand.hbm [shape: f32[256,128], index: 12, kind: input, shape index: {}]
  %s13 = inlined_call_operand.vmem [shape: f32[1,128], index: 13, kind: input, shape index: {}]
  %s14 = inlined_call_operand.hbm [shape: f32[2,16,128], index: 14, kind: output, shape index: {}]
  %s15 = sld [smem:[#allocation0]]
  $region121: #{tpu_custom_call.1} parent=0
    _
  %s17 = ssub.s32 1, %s15
  %s18 = scalar_select 0, %s17, %s15
  $region1: #{tpu_custom_call.1} parent=0
    #allocation5 [shape = 'u8[16384]{0}', space=vmem, size = 0x4000, scoped, tag = 'input window, operand 0']
    #allocation6 [shape = 's32[2]{0}', space=sflag, size = 0x8, scoped, tag = 'scoped memory for tpu_custom_call.1']
    #allocation7 [shape = 's32[2]{0}', space=sflag, size = 0x8, scoped, tag = 'scoped memory for tpu_custom_call.1']
    #allocation8 [shape = 'u8[8192]{0}', space=vmem, size = 0x2000, scoped, tag = 'input window, operand 1']
    #allocation9 [shape = 's32[2]{0}', space=sflag, size = 0x8, scoped, tag = 'scoped memory for tpu_custom_call.1']
    #allocation10 [shape = 'u8[131072]{0}', space=vmem, size = 0x20000, scoped, tag = 'input window, operand 4, single buffered']
    #allocation11 [shape = 'u8[262144]{0}', space=vmem, size = 0x40000, scoped, tag = 'input window, operand 5, single buffered']
    #allocation12 [shape = 's32[1]{0}', space=sflag, size = 0x4, scoped, tag = 'scoped memory for tpu_custom_call.1']
    #allocation13 [shape = 'u8[131072]{0}', space=vmem, size = 0x20000, scoped, tag = 'input window, operand 6, single buffered']
    #allocation14 [shape = 'u8[131072]{0}', space=vmem, size = 0x20000, scoped, tag = 'input window, operand 10, single buffered']
    #allocation15 [shape = 's32[1]{0}', space=sflag, size = 0x4, scoped, tag = 'scoped memory for tpu_custom_call.1']
    #allocation16 [shape = 'u8[131072]{0}', space=vmem, size = 0x20000, scoped, tag = 'input window, operand 12, single buffered']
    #allocation17 [shape = 'u8[8192]{0}', space=vmem, size = 0x2000, scoped, tag = 'output window, operand 0']
    %19 = vsyncpa [#allocation6], 0
    %s20 = scalar_lea.sflag [#allocation6], 1
    %21 = vsyncpa %s20, 0
    %22 = vsyncpa [#allocation9], 0
    %s23 = scalar_lea.sflag [#allocation9], 1
    %24 = vsyncpa %s23, 0
    %25 = vsyncpa [#allocation12], 0
    %26 = vsyncpa [#allocation15], 0
    %27 = vsyncpa [#allocation7], 0
    %s28 = scalar_lea.sflag [#allocation7], 1
    %29 = vsyncpa %s28, 0
    loop: start=0, step=1, limit=6
    $region2: #{tpu_custom_call.1} parent=1 // loop_pre_header
      _
    $region3: #{tpu_custom_call.1} parent=1 // loop_header
      %s31 = sphi 0, %s35
      %p32 = scmp.ge.s32.totalorder %s31, 6
      %s38 = sphi 0, %s50
      %s39 = sphi 0, %s46
      %s40 = sphi 0, %s38
      %s41 = sphi 0, %s39
      %s42 = sphi 0, %s40
      %s43 = sphi 0, %s41
      %s53 = sphi 0, %s55
      %s56 = sphi 0, %s53
      %s57 = sphi 0, %s56
      %s73 = sphi 0, %s57
      %s81 = sphi 0, %s83
      %s84 = sphi 0, %s81
      %s85 = sphi 0, %s84
      %s101 = sphi 0, %s85
      %s105 = sphi 0, %s105
      %s107 = sphi 0, %s105
      %s108 = sphi 0, %s107
      %s122 = sphi 0, %s108
      %s126 = sphi 0, %s126
      %s128 = sphi 0, %s126
      %s129 = sphi 0, %s128
      %s143 = sphi 0, %s129
      %s147 = sphi 0, %s147
      %s149 = sphi 0, %s147
      %s150 = sphi 0, %s149
      %s164 = sphi 0, %s150
      %s168 = sphi 0, %s168
      %s170 = sphi 0, %s168
      %s171 = sphi 0, %s170
      %s185 = sphi 0, %s171
      %s189 = sphi 0, %s189
      %s191 = sphi 0, %s189
      %s192 = sphi 0, %s191
      %s206 = sphi 0, %s192
      %s210 = sphi 0, %s210
      %s212 = sphi 0, %s210
      %s213 = sphi 0, %s212
      %s227 = sphi 0, %s213
      %s231 = sphi 0, %s231
      %s233 = sphi 0, %s231
      %s234 = sphi 0, %s233
      %s248 = sphi 0, %s234
      %s252 = sphi 0, %s252
      %s254 = sphi 0, %s252
      %s255 = sphi 0, %s254
      %s269 = sphi 0, %s255
      %s273 = sphi 0, %s273
      %s275 = sphi 0, %s273
      %s276 = sphi 0, %s275
      %s290 = sphi 0, %s276
      %s294 = sphi 0, %s294
      %s296 = sphi 0, %s294
      %s297 = sphi 0, %s296
      %s311 = sphi 0, %s297
      %s315 = sphi 0, %s315
      %s317 = sphi 0, %s315
      %s318 = sphi 0, %s317
      %s332 = sphi 0, %s318
      %s336 = sphi 0, %s336
      %s338 = sphi 0, %s336
      %s339 = sphi 0, %s338
      %s353 = sphi 0, %s339
      %s361 = sphi 0, %s363
      %s364 = sphi 0, %s361
      %s365 = sphi 0, %s364
      %s381 = sphi 0, %s365
    $region4: #{tpu_custom_call.1} parent=1 // loop_header_branch
      %34 = sbr.rel (%p32) target = $region8
    $region5: #{tpu_custom_call.1} parent=1 // loop_body
      %s36 = ssub.s32 %s31, 1
      %s37 = ssub.s32 %s31, 2
      %s44 = sadd.s32 1, %s39
      %p45 = scmp.ge.s32.totalorder %s44, 2
      %s46 = scalar_select %p45, 0, %s44
      %s47 = sadd.s32 1, %s38
      %s48 = scalar_select %p45, %s47, %s38
      %p49 = scmp.ge.s32.totalorder %s48, 2
      %s50 = scalar_select %p49, 0, %s48
      %s51 = ssub.s32 %s38, %s50
      %p52 = scmp.eq.s32.totalorder %s51, 0
      %s54 = sadd.s32 %s53, 1
      %s55 = scalar_select %p52, %s53, %s54
      %p58 = pneg %p52
      %p59 = scmp.eq.s32.totalorder %s31, 3
      %p60 = por %p58, %p59
      %p61 = scmp.ne.s32.totalorder %s53, %s56
      %p62 = scmp.eq.s32.totalorder %s31, 0
      %p63 = por %p61, %p62
      %p64 = scmp.ne.s32.totalorder %s53, %s56
      %p65 = scmp.eq.s32.totalorder %s36, 3
      %p66 = por %p64, %p65
      %p67 = scmp.ne.s32.totalorder %s56, %s57
      %p68 = scmp.eq.s32.totalorder %s36, 0
      %p69 = por %p67, %p68
      %p70 = scmp.ne.s32.totalorder %s56, %s57
      %p71 = scmp.eq.s32.totalorder %s37, 3
      %p72 = por %p70, %p71
      %p74 = scmp.ne.s32.totalorder %s57, %s73
      %p75 = scmp.eq.s32.totalorder %s37, 0
      %p76 = por %p74, %p75
      %s77 = ssub.s32 %s38, %s50
      %s78 = ssub.s32 %s39, %s46
      %s79 = sor.u32 %s77, %s78
      %p80 = scmp.eq.s32.totalorder %s79, 0
      %s82 = sadd.s32 %s81, 1
      %s83 = scalar_select %p80, %s81, %s82
      %p86 = pneg %p80
      %p87 = scmp.eq.s32.totalorder %s31, 3
      %p88 = por %p86, %p87
      %p89 = scmp.ne.s32.totalorder %s81, %s84
      %p90 = scmp.eq.s32.totalorder %s31, 0
      %p91 = por %p89, %p90
      %p92 = scmp.ne.s32.totalorder %s81, %s84
      %p93 = scmp.eq.s32.totalorder %s36, 3
      %p94 = por %p92, %p93
      %p95 = scmp.ne.s32.totalorder %s84, %s85
      %p96 = scmp.eq.s32.totalorder %s36, 0
      %p97 = por %p95, %p96
      %p98 = scmp.ne.s32.totalorder %s84, %s85
      %p99 = scmp.eq.s32.totalorder %s37, 3
      %p100 = por %p98, %p99
      %p102 = scmp.ne.s32.totalorder %s85, %s101
      %p103 = scmp.eq.s32.totalorder %s37, 0
      %p104 = por %p102, %p103
      %s106 = sadd.s32 %s105, 1
      %p109 = scmp.eq.s32.totalorder %s31, 3
      %p110 = scmp.ne.s32.totalorder %s105, %s107
      %p111 = scmp.eq.s32.totalorder %s31, 0
      %p112 = por %p110, %p111
      %p113 = scmp.ne.s32.totalorder %s105, %s107
      %p114 = scmp.eq.s32.totalorder %s36, 3
      %p115 = por %p113, %p114
      %p116 = scmp.ne.s32.totalorder %s107, %s108
      %p117 = scmp.eq.s32.totalorder %s36, 0
      %p118 = por %p116, %p117
      %p119 = scmp.ne.s32.totalorder %s107, %s108
      %p120 = scmp.eq.s32.totalorder %s37, 3
      %p121 = por %p119, %p120
      %p123 = scmp.ne.s32.totalorder %s108, %s122
      %p124 = scmp.eq.s32.totalorder %s37, 0
      %p125 = por %p123, %p124
      %s127 = sadd.s32 %s126, 1
      %p130 = scmp.eq.s32.totalorder %s31, 3
      %p131 = scmp.ne.s32.totalorder %s126, %s128
      %p132 = scmp.eq.s32.totalorder %s31, 0
      %p133 = por %p131, %p132
      %p134 = scmp.ne.s32.totalorder %s126, %s128
      %p135 = scmp.eq.s32.totalorder %s36, 3
      %p136 = por %p134, %p135
      %p137 = scmp.ne.s32.totalorder %s128, %s129
      %p138 = scmp.eq.s32.totalorder %s36, 0
      %p139 = por %p137, %p138
      %p140 = scmp.ne.s32.totalorder %s128, %s129
      %p141 = scmp.eq.s32.totalorder %s37, 3
      %p142 = por %p140, %p141
      %p144 = scmp.ne.s32.totalorder %s129, %s143
      %p145 = scmp.eq.s32.totalorder %s37, 0
      %p146 = por %p144, %p145
      %s148 = sadd.s32 %s147, 1
      %p151 = scmp.eq.s32.totalorder %s31, 3
      %p152 = scmp.ne.s32.totalorder %s147, %s149
      %p153 = scmp.eq.s32.totalorder %s31, 0
      %p154 = por %p152, %p153
      %p155 = scmp.ne.s32.totalorder %s147, %s149
      %p156 = scmp.eq.s32.totalorder %s36, 3
      %p157 = por %p155, %p156
      %p158 = scmp.ne.s32.totalorder %s149, %s150
      %p159 = scmp.eq.s32.totalorder %s36, 0
      %p160 = por %p158, %p159
      %p161 = scmp.ne.s32.totalorder %s149, %s150
      %p162 = scmp.eq.s32.totalorder %s37, 3
      %p163 = por %p161, %p162
      %p165 = scmp.ne.s32.totalorder %s150, %s164
      %p166 = scmp.eq.s32.totalorder %s37, 0
      %p167 = por %p165, %p166
      %s169 = sadd.s32 %s168, 1
      %p172 = scmp.eq.s32.totalorder %s31, 3
      %p173 = scmp.ne.s32.totalorder %s168, %s170
      %p174 = scmp.eq.s32.totalorder %s31, 0
      %p175 = por %p173, %p174
      %p176 = scmp.ne.s32.totalorder %s168, %s170
      %p177 = scmp.eq.s32.totalorder %s36, 3
      %p178 = por %p176, %p177
      %p179 = scmp.ne.s32.totalorder %s170, %s171
      %p180 = scmp.eq.s32.totalorder %s36, 0
      %p181 = por %p179, %p180
      %p182 = scmp.ne.s32.totalorder %s170, %s171
      %p183 = scmp.eq.s32.totalorder %s37, 3
      %p184 = por %p182, %p183
      %p186 = scmp.ne.s32.totalorder %s171, %s185
      %p187 = scmp.eq.s32.totalorder %s37, 0
      %p188 = por %p186, %p187
      %s190 = sadd.s32 %s189, 1
      %p193 = scmp.eq.s32.totalorder %s31, 3
      %p194 = scmp.ne.s32.totalorder %s189, %s191
      %p195 = scmp.eq.s32.totalorder %s31, 0
      %p196 = por %p194, %p195
      %p197 = scmp.ne.s32.totalorder %s189, %s191
      %p198 = scmp.eq.s32.totalorder %s36, 3
      %p199 = por %p197, %p198
      %p200 = scmp.ne.s32.totalorder %s191, %s192
      %p201 = scmp.eq.s32.totalorder %s36, 0
      %p202 = por %p200, %p201
      %p203 = scmp.ne.s32.totalorder %s191, %s192
      %p204 = scmp.eq.s32.totalorder %s37, 3
      %p205 = por %p203, %p204
      %p207 = scmp.ne.s32.totalorder %s192, %s206
      %p208 = scmp.eq.s32.totalorder %s37, 0
      %p209 = por %p207, %p208
      %s211 = sadd.s32 %s210, 1
      %p214 = scmp.eq.s32.totalorder %s31, 3
      %p215 = scmp.ne.s32.totalorder %s210, %s212
      %p216 = scmp.eq.s32.totalorder %s31, 0
      %p217 = por %p215, %p216
      %p218 = scmp.ne.s32.totalorder %s210, %s212
      %p219 = scmp.eq.s32.totalorder %s36, 3
      %p220 = por %p218, %p219
      %p221 = scmp.ne.s32.totalorder %s212, %s213
      %p222 = scmp.eq.s32.totalorder %s36, 0
      %p223 = por %p221, %p222
      %p224 = scmp.ne.s32.totalorder %s212, %s213
      %p225 = scmp.eq.s32.totalorder %s37, 3
      %p226 = por %p224, %p225
      %p228 = scmp.ne.s32.totalorder %s213, %s227
      %p229 = scmp.eq.s32.totalorder %s37, 0
      %p230 = por %p228, %p229
      %s232 = sadd.s32 %s231, 1
      %p235 = scmp.eq.s32.totalorder %s31, 3
      %p236 = scmp.ne.s32.totalorder %s231, %s233
      %p237 = scmp.eq.s32.totalorder %s31, 0
      %p238 = por %p236, %p237
      %p239 = scmp.ne.s32.totalorder %s231, %s233
      %p240 = scmp.eq.s32.totalorder %s36, 3
      %p241 = por %p239, %p240
      %p242 = scmp.ne.s32.totalorder %s233, %s234
      %p243 = scmp.eq.s32.totalorder %s36, 0
      %p244 = por %p242, %p243
      %p245 = scmp.ne.s32.totalorder %s233, %s234
      %p246 = scmp.eq.s32.totalorder %s37, 3
      %p247 = por %p245, %p246
      %p249 = scmp.ne.s32.totalorder %s234, %s248
      %p250 = scmp.eq.s32.totalorder %s37, 0
      %p251 = por %p249, %p250
      %s253 = sadd.s32 %s252, 1
      %p256 = scmp.eq.s32.totalorder %s31, 3
      %p257 = scmp.ne.s32.totalorder %s252, %s254
      %p258 = scmp.eq.s32.totalorder %s31, 0
      %p259 = por %p257, %p258
      %p260 = scmp.ne.s32.totalorder %s252, %s254
      %p261 = scmp.eq.s32.totalorder %s36, 3
      %p262 = por %p260, %p261
      %p263 = scmp.ne.s32.totalorder %s254, %s255
      %p264 = scmp.eq.s32.totalorder %s36, 0
      %p265 = por %p263, %p264
      %p266 = scmp.ne.s32.totalorder %s254, %s255
      %p267 = scmp.eq.s32.totalorder %s37, 3
      %p268 = por %p266, %p267
      %p270 = scmp.ne.s32.totalorder %s255, %s269
      %p271 = scmp.eq.s32.totalorder %s37, 0
      %p272 = por %p270, %p271
      %s274 = sadd.s32 %s273, 1
      %p277 = scmp.eq.s32.totalorder %s31, 3
      %p278 = scmp.ne.s32.totalorder %s273, %s275
      %p279 = scmp.eq.s32.totalorder %s31, 0
      %p280 = por %p278, %p279
      %p281 = scmp.ne.s32.totalorder %s273, %s275
      %p282 = scmp.eq.s32.totalorder %s36, 3
      %p283 = por %p281, %p282
      %p284 = scmp.ne.s32.totalorder %s275, %s276
      %p285 = scmp.eq.s32.totalorder %s36, 0
      %p286 = por %p284, %p285
      %p287 = scmp.ne.s32.totalorder %s275, %s276
      %p288 = scmp.eq.s32.totalorder %s37, 3
      %p289 = por %p287, %p288
      %p291 = scmp.ne.s32.totalorder %s276, %s290
      %p292 = scmp.eq.s32.totalorder %s37, 0
      %p293 = por %p291, %p292
      %s295 = sadd.s32 %s294, 1
      %p298 = scmp.eq.s32.totalorder %s31, 3
      %p299 = scmp.ne.s32.totalorder %s294, %s296
      %p300 = scmp.eq.s32.totalorder %s31, 0
      %p301 = por %p299, %p300
      %p302 = scmp.ne.s32.totalorder %s294, %s296
      %p303 = scmp.eq.s32.totalorder %s36, 3
      %p304 = por %p302, %p303
      %p305 = scmp.ne.s32.totalorder %s296, %s297
      %p306 = scmp.eq.s32.totalorder %s36, 0
      %p307 = por %p305, %p306
      %p308 = scmp.ne.s32.totalorder %s296, %s297
      %p309 = scmp.eq.s32.totalorder %s37, 3
      %p310 = por %p308, %p309
      %p312 = scmp.ne.s32.totalorder %s297, %s311
      %p313 = scmp.eq.s32.totalorder %s37, 0
      %p314 = por %p312, %p313
      %s316 = sadd.s32 %s315, 1
      %p319 = scmp.eq.s32.totalorder %s31, 3
      %p320 = scmp.ne.s32.totalorder %s315, %s317
      %p321 = scmp.eq.s32.totalorder %s31, 0
      %p322 = por %p320, %p321
      %p323 = scmp.ne.s32.totalorder %s315, %s317
      %p324 = scmp.eq.s32.totalorder %s36, 3
      %p325 = por %p323, %p324
      %p326 = scmp.ne.s32.totalorder %s317, %s318
      %p327 = scmp.eq.s32.totalorder %s36, 0
      %p328 = por %p326, %p327
      %p329 = scmp.ne.s32.totalorder %s317, %s318
      %p330 = scmp.eq.s32.totalorder %s37, 3
      %p331 = por %p329, %p330
      %p333 = scmp.ne.s32.totalorder %s318, %s332
      %p334 = scmp.eq.s32.totalorder %s37, 0
      %p335 = por %p333, %p334
      %s337 = sadd.s32 %s336, 1
      %p340 = scmp.eq.s32.totalorder %s31, 3
      %p341 = scmp.ne.s32.totalorder %s336, %s338
      %p342 = scmp.eq.s32.totalorder %s31, 0
      %p343 = por %p341, %p342
      %p344 = scmp.ne.s32.totalorder %s336, %s338
      %p345 = scmp.eq.s32.totalorder %s36, 3
      %p346 = por %p344, %p345
      %p347 = scmp.ne.s32.totalorder %s338, %s339
      %p348 = scmp.eq.s32.totalorder %s36, 0
      %p349 = por %p347, %p348
      %p350 = scmp.ne.s32.totalorder %s338, %s339
      %p351 = scmp.eq.s32.totalorder %s37, 3
      %p352 = por %p350, %p351
      %p354 = scmp.ne.s32.totalorder %s339, %s353
      %p355 = scmp.eq.s32.totalorder %s37, 0
      %p356 = por %p354, %p355
      %s357 = ssub.s32 %s38, %s50
      %s358 = ssub.s32 %s39, %s46
      %s359 = sor.u32 %s357, %s358
      %p360 = scmp.eq.s32.totalorder %s359, 0
      %s362 = sadd.s32 %s361, 1
      %s363 = scalar_select %p360, %s361, %s362
      %p366 = pneg %p360
      %p367 = scmp.eq.s32.totalorder %s31, 3
      %p368 = por %p366, %p367
      %p369 = scmp.ne.s32.totalorder %s361, %s364
      %p370 = scmp.eq.s32.totalorder %s31, 0
      %p371 = por %p369, %p370
      %p372 = scmp.ne.s32.totalorder %s361, %s364
      %p373 = scmp.eq.s32.totalorder %s36, 3
      %p374 = por %p372, %p373
      %p375 = scmp.ne.s32.totalorder %s364, %s365
      %p376 = scmp.eq.s32.totalorder %s36, 0
      %p377 = por %p375, %p376
      %p378 = scmp.ne.s32.totalorder %s364, %s365
      %p379 = scmp.eq.s32.totalorder %s37, 3
      %p380 = por %p378, %p379
      %p382 = scmp.ne.s32.totalorder %s365, %s381
      %p383 = scmp.eq.s32.totalorder %s37, 0
      %p384 = por %p382, %p383
      %p385 = scmp.le.s32.totalorder 1, %s31
      %p386 = scmp.lt.s32.totalorder %s31, 5
      %p387 = pnand %p385, %p386
      %p388 = pneg %p387
      // Predicated region
      $region9: #{tpu_custom_call.1} parent=5 // pred_check
        _
      $region10: #{tpu_custom_call.1} parent=5 // pred_check_branch
        %390 = sbr.rel (%p387) target = $region12
      $region11: #{tpu_custom_call.1} parent=5 // pred_region
        %s391 = ssub.s32 %s31, 1
        // Predicated region
        $region13: #{tpu_custom_call.1} parent=11 // pred_check
          %p392 = pneg %p118
        $region14: #{tpu_custom_call.1} parent=11 // pred_check_branch
          %394 = sbr.rel (%p392) target = $region16
        $region15: #{tpu_custom_call.1} parent=11 // pred_region
          _
        $region16: #{tpu_custom_call.1} parent=11 // pred_fallthru
          _
        // Predicated region
        $region17: #{tpu_custom_call.1} parent=11 // pred_check
          %p395 = pneg %p139
        $region18: #{tpu_custom_call.1} parent=11 // pred_check_branch
          %397 = sbr.rel (%p395) target = $region20
        $region19: #{tpu_custom_call.1} parent=11 // pred_region
          _
        $region20: #{tpu_custom_call.1} parent=11 // pred_fallthru
          _
        // Predicated region
        $region21: #{tpu_custom_call.1} parent=11 // pred_check
          %p398 = pneg %p160
        $region22: #{tpu_custom_call.1} parent=11 // pred_check_branch
          %400 = sbr.rel (%p398) target = $region24
        $region23: #{tpu_custom_call.1} parent=11 // pred_region
          %s402 = ssub.s32 4096, 4096
          %403 = vsyncadd [#allocation9], %s402
          %s404 = sshll.u32 [#allocation10], 4
          %s405 = int_to_ptr.vmem [resolvable:$true] %s404
          %410 = dma.hbm_to_vmem [thread:$0]  %s4, 4096, %s405, [#allocation9], 256, 256, 16
        $region24: #{tpu_custom_call.1} parent=11 // pred_fallthru
          _
        // Predicated region
        $region25: #{tpu_custom_call.1} parent=11 // pred_check
          %p411 = pneg %p181
        $region26: #{tpu_custom_call.1} parent=11 // pred_check_branch
          %413 = sbr.rel (%p411) target = $region28
        $region27: #{tpu_custom_call.1} parent=11 // pred_region
          %s415 = ssub.s32 8192, 8192
          %416 = vsyncadd [#allocation12], %s415
          %s417 = sshll.u32 [#allocation11], 4
          %s418 = int_to_ptr.vmem [resolvable:$true] %s417
          %423 = dma.hbm_to_vmem [thread:$0]  %s5, 8192, %s418, [#allocation12], 512, 512, 32
        $region28: #{tpu_custom_call.1} parent=11 // pred_fallthru
          _
        // Predicated region
        $region29: #{tpu_custom_call.1} parent=11 // pred_check
          %p424 = pneg %p202
        $region30: #{tpu_custom_call.1} parent=11 // pred_check_branch
          %426 = sbr.rel (%p424) target = $region32
        $region31: #{tpu_custom_call.1} parent=11 // pred_region
          %s428 = ssub.s32 4096, 4096
          %429 = vsyncadd [#allocation12], %s428
          %s430 = sshll.u32 [#allocation13], 4
          %s431 = int_to_ptr.vmem [resolvable:$true] %s430
          %436 = dma.hbm_to_vmem [thread:$0]  %s6, 4096, %s431, [#allocation12], 128, 128, 8
        $region32: #{tpu_custom_call.1} parent=11 // pred_fallthru
          _
        // Predicated region
        $region33: #{tpu_custom_call.1} parent=11 // pred_check
          %p437 = pneg %p223
        $region34: #{tpu_custom_call.1} parent=11 // pred_check_branch
          %439 = sbr.rel (%p437) target = $region36
        $region35: #{tpu_custom_call.1} parent=11 // pred_region
          _
        $region36: #{tpu_custom_call.1} parent=11 // pred_fallthru
          _
        // Predicated region
        $region37: #{tpu_custom_call.1} parent=11 // pred_check
          %p440 = pneg %p244
        $region38: #{tpu_custom_call.1} parent=11 // pred_check_branch
          %442 = sbr.rel (%p440) target = $region40
        $region39: #{tpu_custom_call.1} parent=11 // pred_region
          _
        $region40: #{tpu_custom_call.1} parent=11 // pred_fallthru
          _
        // Predicated region
        $region41: #{tpu_custom_call.1} parent=11 // pred_check
          %p443 = pneg %p265
        $region42: #{tpu_custom_call.1} parent=11 // pred_check_branch
          %445 = sbr.rel (%p443) target = $region44
        $region43: #{tpu_custom_call.1} parent=11 // pred_region
          _
        $region44: #{tpu_custom_call.1} parent=11 // pred_fallthru
          _
        // Predicated region
        $region45: #{tpu_custom_call.1} parent=11 // pred_check
          %p446 = pneg %p286
        $region46: #{tpu_custom_call.1} parent=11 // pred_check_branch
          %448 = sbr.rel (%p446) target = $region48
        $region47: #{tpu_custom_call.1} parent=11 // pred_region
          %s450 = ssub.s32 4096, 4096
          %451 = vsyncadd [#allocation15], %s450
          %s452 = sshll.u32 [#allocation14], 4
          %s453 = int_to_ptr.vmem [resolvable:$true] %s452
          %458 = dma.hbm_to_vmem [thread:$0]  %s10, 4096, %s453, [#allocation15], 256, 256, 16
        $region48: #{tpu_custom_call.1} parent=11 // pred_fallthru
          _
        // Predicated region
        $region49: #{tpu_custom_call.1} parent=11 // pred_check
          %p459 = pneg %p307
        $region50: #{tpu_custom_call.1} parent=11 // pred_check_branch
          %461 = sbr.rel (%p459) target = $region52
        $region51: #{tpu_custom_call.1} parent=11 // pred_region
          _
        $region52: #{tpu_custom_call.1} parent=11 // pred_fallthru
          _
        // Predicated region
        $region53: #{tpu_custom_call.1} parent=11 // pred_check
          %p462 = pneg %p328
        $region54: #{tpu_custom_call.1} parent=11 // pred_check_branch
          %464 = sbr.rel (%p462) target = $region56
        $region55: #{tpu_custom_call.1} parent=11 // pred_region
          %s466 = ssub.s32 4096, 4096
          %467 = vsyncadd [#allocation15], %s466
          %s468 = sshll.u32 [#allocation16], 4
          %s469 = int_to_ptr.vmem [resolvable:$true] %s468
          %474 = dma.hbm_to_vmem [thread:$0]  %s12, 4096, %s469, [#allocation15], 128, 128, 8
        $region56: #{tpu_custom_call.1} parent=11 // pred_fallthru
          _
        // Predicated region
        $region57: #{tpu_custom_call.1} parent=11 // pred_check
          %p475 = pneg %p349
        $region58: #{tpu_custom_call.1} parent=11 // pred_check_branch
          %477 = sbr.rel (%p475) target = $region60
        $region59: #{tpu_custom_call.1} parent=11 // pred_region
          _
        $region60: #{tpu_custom_call.1} parent=11 // pred_fallthru
          _
      $region12: #{tpu_custom_call.1} parent=5 // pred_fallthru
        _
      %p478 = scmp.lt.s32.totalorder %s31, 4
      // Predicated region
      $region61: #{tpu_custom_call.1} parent=5 // pred_check
        %p479 = pneg %p478
      $region62: #{tpu_custom_call.1} parent=5 // pred_check_branch
        %481 = sbr.rel (%p479) target = $region64
      $region63: #{tpu_custom_call.1} parent=5 // pred_region
        // Predicated region
        $region65: #{tpu_custom_call.1} parent=63 // pred_check
          %p482 = pneg %p63
        $region66: #{tpu_custom_call.1} parent=63 // pred_check_branch
          %484 = sbr.rel (%p482) target = $region68
        $region67: #{tpu_custom_call.1} parent=63 // pred_region
          %s485 = sand.u32 %s53, 1
          %s486 = scalar_lea.sflag [#allocation6], %s485
          %s487 = sand.u32 %s53, 1
          %s488 = smul.addr %s487, 16
          %s489 = scalar_lea.vmem [#allocation5], %s488
          %s491 = ssub.s32 256, 256
          %492 = vsyncadd %s486, %s491
          %s493 = smul.addr %s38, 2
          %s494 = smul.addr %s493, 128
          %s495 = scalar_lea.hbm %s0, %s494
          %s496 = sshll.u32 %s489, 4
          %s497 = int_to_ptr.vmem [resolvable:$true] %s496
          %502 = dma.hbm_to_vmem [thread:$0]  %s495, 256, %s497, %s486, 128, 128, 8
        $region68: #{tpu_custom_call.1} parent=63 // pred_fallthru
          _
        // Predicated region
        $region69: #{tpu_custom_call.1} parent=63 // pred_check
          %p503 = pneg %p91
        $region70: #{tpu_custom_call.1} parent=63 // pred_check_branch
          %505 = sbr.rel (%p503) target = $region72
        $region71: #{tpu_custom_call.1} parent=63 // pred_region
          %s506 = sand.u32 %s31, 1
          %s507 = scalar_lea.sflag [#allocation9], %s506
          %s508 = sand.u32 %s81, 1
          %s509 = smul.addr %s508, 8
          %s510 = scalar_lea.vmem [#allocation8], %s509
          %s512 = ssub.s32 128, 128
          %513 = vsyncadd %s507, %s512
          %s514 = smul.addr %s38, 2
          %s515 = sadd.s32 %s39, %s514
          %s516 = smul.addr %s515, 128
          %s517 = scalar_lea.hbm %s1, %s516
          %s519 = sshll.u32 %s510, 4
          %s520 = int_to_ptr.vmem [resolvable:$true] %s519
          %522 = dma.hbm_to_vmem [thread:$0]  %s517, 128, %s520, %s507
        $region72: #{tpu_custom_call.1} parent=63 // pred_fallthru
          _
      $region64: #{tpu_custom_call.1} parent=5 // pred_fallthru
        _
      %p523 = scmp.le.s32.totalorder 1, %s31
      %p524 = scmp.lt.s32.totalorder %s31, 5
      %p525 = pnand %p523, %p524
      %p526 = pneg %p525
      // Predicated region
      $region73: #{tpu_custom_call.1} parent=5 // pred_check
        _
      $region74: #{tpu_custom_call.1} parent=5 // pred_check_branch
        %528 = sbr.rel (%p525) target = $region76
      $region75: #{tpu_custom_call.1} parent=5 // pred_region
        %s529 = ssub.s32 %s31, 1
        %s530 = sand.u32 %s56, 1
        %s531 = scalar_lea.sflag [#allocation6], %s530
        %s532 = sand.u32 %s56, 1
        %s533 = smul.addr %s532, 16
        %s534 = scalar_lea.vmem [#allocation5], %s533
        // Predicated region
        $region77: #{tpu_custom_call.1} parent=75 // pred_check
          %p535 = pneg %p69
        $region78: #{tpu_custom_call.1} parent=75 // pred_check_branch
          %537 = sbr.rel (%p535) target = $region80
        $region79: #{tpu_custom_call.1} parent=75 // pred_region
          %538 = dma.done %s531, 256
        $region80: #{tpu_custom_call.1} parent=75 // pred_fallthru
          _
        %s539 = sand.u32 %s36, 1
        %s540 = scalar_lea.sflag [#allocation9], %s539
        %s541 = sand.u32 %s84, 1
        %s542 = smul.addr %s541, 8
        %s543 = scalar_lea.vmem [#allocation8], %s542
        // Predicated region
        $region81: #{tpu_custom_call.1} parent=75 // pred_check
          %p544 = pneg %p97
        $region82: #{tpu_custom_call.1} parent=75 // pred_check_branch
          %546 = sbr.rel (%p544) target = $region84
        $region83: #{tpu_custom_call.1} parent=75 // pred_region
          %547 = dma.done %s540, 128
        $region84: #{tpu_custom_call.1} parent=75 // pred_fallthru
          _
        // Predicated region
        $region85: #{tpu_custom_call.1} parent=75 // pred_check
          %p548 = pneg %p160
        $region86: #{tpu_custom_call.1} parent=75 // pred_check_branch
          %550 = sbr.rel (%p548) target = $region88
        $region87: #{tpu_custom_call.1} parent=75 // pred_region
          %551 = dma.done [#allocation9], 4096
        $region88: #{tpu_custom_call.1} parent=75 // pred_fallthru
          _
        // Predicated region
        $region89: #{tpu_custom_call.1} parent=75 // pred_check
          %p552 = pneg %p181
        $region90: #{tpu_custom_call.1} parent=75 // pred_check_branch
          %554 = sbr.rel (%p552) target = $region92
        $region91: #{tpu_custom_call.1} parent=75 // pred_region
          %555 = dma.done [#allocation12], 8192
        $region92: #{tpu_custom_call.1} parent=75 // pred_fallthru
          _
        // Predicated region
        $region93: #{tpu_custom_call.1} parent=75 // pred_check
          %p556 = pneg %p202
        $region94: #{tpu_custom_call.1} parent=75 // pred_check_branch
          %558 = sbr.rel (%p556) target = $region96
        $region95: #{tpu_custom_call.1} parent=75 // pred_region
          %559 = dma.done [#allocation12], 4096
        $region96: #{tpu_custom_call.1} parent=75 // pred_fallthru
          _
        // Predicated region
        $region97: #{tpu_custom_call.1} parent=75 // pred_check
          %p560 = pneg %p286
        $region98: #{tpu_custom_call.1} parent=75 // pred_check_branch
          %562 = sbr.rel (%p560) target = $region100
        $region99: #{tpu_custom_call.1} parent=75 // pred_region
          %563 = dma.done [#allocation15], 4096
        $region100: #{tpu_custom_call.1} parent=75 // pred_fallthru
          _
        // Predicated region
        $region101: #{tpu_custom_call.1} parent=75 // pred_check
          %p564 = pneg %p328
        $region102: #{tpu_custom_call.1} parent=75 // pred_check_branch
          %566 = sbr.rel (%p564) target = $region104
        $region103: #{tpu_custom_call.1} parent=75 // pred_region
          %567 = dma.done [#allocation15], 4096
        $region104: #{tpu_custom_call.1} parent=75 // pred_fallthru
          _
        %s568 = sand.u32 %s56, 1
        %s569 = scalar_lea.sflag [#allocation6], %s568
        %s570 = sand.u32 %s56, 1
        %s571 = smul.addr %s570, 16
        %s572 = scalar_lea.vmem [#allocation5], %s571
        %p573 = pneg %p69
        %p574 = pneg %p66
        %s575 = sand.u32 %s36, 1
        %s576 = scalar_lea.sflag [#allocation9], %s575
        %s577 = sand.u32 %s84, 1
        %s578 = smul.addr %s577, 8
        %s579 = scalar_lea.vmem [#allocation8], %s578
        %p580 = pneg %p97
        %p581 = pneg %p94
        %p582 = pneg %p118
        %p583 = pneg %p115
        %p584 = pneg %p139
        %p585 = pneg %p136
        %p586 = pneg %p160
        %p587 = pneg %p157
        %p588 = pneg %p181
        %p589 = pneg %p178
        %p590 = pneg %p202
        %p591 = pneg %p199
        %p592 = pneg %p223
        %p593 = pneg %p220
        %p594 = pneg %p244
        %p595 = pneg %p241
        %p596 = pneg %p265
        %p597 = pneg %p262
        %p598 = pneg %p286
        %p599 = pneg %p283
        %p600 = pneg %p307
        %p601 = pneg %p304
        %p602 = pneg %p328
        %p603 = pneg %p325
        %p604 = pneg %p349
        %p605 = pneg %p346
        %p606 = pneg %p377
        %p607 = pneg %p374
        %s608 = sand.u32 %s364, 1
        %s609 = scalar_lea.sflag [#allocation7], %s608
        %s610 = sand.u32 %s364, 1
        %s611 = smul.addr %s610, 8
        %s612 = scalar_lea.vmem [#allocation17], %s611
        %p613 = scmp.eq.s32.totalorder %s41, 0
        // Predicated region
        $region105: #{tpu_custom_call.1} parent=75 // pred_check
          %p614 = pneg %p613
        $region106: #{tpu_custom_call.1} parent=75 // pred_check_branch
          %616 = sbr.rel (%p614) target = $region108
        $region107: #{tpu_custom_call.1} parent=75 // pred_region
          %v617 = vld [vmem:[%s534] sm:$0xff]
          %v618 = vld [vmem:[%s534 + $0x8] sm:$0xff]
          %v619 = vld [vmem:[%s2] sm:$0x1]
          %v620 = vld [vmem:[%s3] sm:$0x1]
          %621 = vadd.xlane.f32.xlu0 %v617
          %v622 = vpop.xlane.xlu0 %621
          %623 = vadd.xlane.f32.xlu0 %v618
          %v624 = vpop.xlane.xlu0 %623
          %v625 = vrcp.pop 128.0
          %v626 = vmul.f32 %v622, %v625
          %v627 = vmul.f32 %v624, %v625
          %v628 = vsub.f32 %v617, %v626
          %v629 = vsub.f32 %v618, %v627
          %v630 = vmul.f32 %v628, %v628
          %v631 = vmul.f32 %v629, %v629
          %632 = vadd.xlane.f32.xlu0 %v630
          %v633 = vpop.xlane.xlu0 %632
          %634 = vadd.xlane.f32.xlu0 %v631
          %v635 = vpop.xlane.xlu0 %634
          %v636 = vmul.f32 %v633, %v625
          %v637 = vmul.f32 %v635, %v625
          %v638 = vadd.f32 %v636, 1e-05
          %v639 = vadd.f32 %v637, 1e-05
          %v640 = vrsqrt.pop %v638
          %v641 = vrsqrt.pop %v639
          %v642 = vmul.f32 %v628, %v640
          %v643 = vmul.f32 %v629, %v641
          %v645 = vlaneseq
          %v646 = vshrl.u32 %v645, 7
          %v647 = vsub.s32 0, %v646
          %v648 = vrot.slane %v619, %v647
          %v650 = vmul.f32 %v642, %v648
          %v651 = vmul.f32 %v643, %v648
          %v653 = vlaneseq
          %v654 = vshrl.u32 %v653, 7
          %v655 = vsub.s32 0, %v654
          %v656 = vrot.slane %v620, %v655
          %v658 = vadd.f32 %v650, %v656
          %v659 = vadd.f32 %v651, %v656
          %660 = vst [vmem:[#allocation2] sm:$0xff] %v658
          %661 = vst [vmem:[#allocation2 + $0x8] sm:$0xff] %v659
          %v662 = vld [vmem:[#allocation11] sm:$0xff]
          %v663 = vld [vmem:[#allocation11 + $0x8] sm:$0xff]
          %v664 = vld [vmem:[#allocation11 + $0x10] sm:$0xff]
          %v665 = vld [vmem:[#allocation11 + $0x18] sm:$0xff]
          %v666 = vld [vmem:[#allocation11 + $0x20] sm:$0xff]
          %v667 = vld [vmem:[#allocation11 + $0x28] sm:$0xff]
          %v668 = vld [vmem:[#allocation11 + $0x30] sm:$0xff]
          %v669 = vld [vmem:[#allocation11 + $0x38] sm:$0xff]
          %v670 = vld [vmem:[#allocation11 + $0x40] sm:$0xff]
          %v671 = vld [vmem:[#allocation11 + $0x48] sm:$0xff]
          %v672 = vld [vmem:[#allocation11 + $0x50] sm:$0xff]
          %v673 = vld [vmem:[#allocation11 + $0x58] sm:$0xff]
          %v674 = vld [vmem:[#allocation11 + $0x60] sm:$0xff]
          %v675 = vld [vmem:[#allocation11 + $0x68] sm:$0xff]
          %v676 = vld [vmem:[#allocation11 + $0x70] sm:$0xff]
          %v677 = vld [vmem:[#allocation11 + $0x78] sm:$0xff]
          %v678 = vld [vmem:[#allocation11 + $0x80] sm:$0xff]
          %v679 = vld [vmem:[#allocation11 + $0x88] sm:$0xff]
          %v680 = vld [vmem:[#allocation11 + $0x90] sm:$0xff]
          %v681 = vld [vmem:[#allocation11 + $0x98] sm:$0xff]
          %v682 = vld [vmem:[#allocation11 + $0xa0] sm:$0xff]
          %v683 = vld [vmem:[#allocation11 + $0xa8] sm:$0xff]
          %v684 = vld [vmem:[#allocation11 + $0xb0] sm:$0xff]
          %v685 = vld [vmem:[#allocation11 + $0xb8] sm:$0xff]
          %v686 = vld [vmem:[#allocation11 + $0xc0] sm:$0xff]
          %v687 = vld [vmem:[#allocation11 + $0xc8] sm:$0xff]
          %v688 = vld [vmem:[#allocation11 + $0xd0] sm:$0xff]
          %v689 = vld [vmem:[#allocation11 + $0xd8] sm:$0xff]
          %v690 = vld [vmem:[#allocation11 + $0xe0] sm:$0xff]
          %v691 = vld [vmem:[#allocation11 + $0xe8] sm:$0xff]
          %v692 = vld [vmem:[#allocation11 + $0xf0] sm:$0xff]
          %v693 = vld [vmem:[#allocation11 + $0xf8] sm:$0xff]
          %v694 = vld [vmem:[#allocation11 + $0x100] sm:$0xff]
          %v695 = vld [vmem:[#allocation11 + $0x108] sm:$0xff]
          %v696 = vld [vmem:[#allocation11 + $0x110] sm:$0xff]
          %v697 = vld [vmem:[#allocation11 + $0x118] sm:$0xff]
          %v698 = vld [vmem:[#allocation11 + $0x120] sm:$0xff]
          %v699 = vld [vmem:[#allocation11 + $0x128] sm:$0xff]
          %v700 = vld [vmem:[#allocation11 + $0x130] sm:$0xff]
          %v701 = vld [vmem:[#allocation11 + $0x138] sm:$0xff]
          %v702 = vld [vmem:[#allocation11 + $0x140] sm:$0xff]
          %v703 = vld [vmem:[#allocation11 + $0x148] sm:$0xff]
          %v704 = vld [vmem:[#allocation11 + $0x150] sm:$0xff]
          %v705 = vld [vmem:[#allocation11 + $0x158] sm:$0xff]
          %v706 = vld [vmem:[#allocation11 + $0x160] sm:$0xff]
          %v707 = vld [vmem:[#allocation11 + $0x168] sm:$0xff]
          %v708 = vld [vmem:[#allocation11 + $0x170] sm:$0xff]
          %v709 = vld [vmem:[#allocation11 + $0x178] sm:$0xff]
          %v710 = vld [vmem:[#allocation11 + $0x180] sm:$0xff]
          %v711 = vld [vmem:[#allocation11 + $0x188] sm:$0xff]
          %v712 = vld [vmem:[#allocation11 + $0x190] sm:$0xff]
          %v713 = vld [vmem:[#allocation11 + $0x198] sm:$0xff]
          %v714 = vld [vmem:[#allocation11 + $0x1a0] sm:$0xff]
          %v715 = vld [vmem:[#allocation11 + $0x1a8] sm:$0xff]
          %v716 = vld [vmem:[#allocation11 + $0x1b0] sm:$0xff]
          %v717 = vld [vmem:[#allocation11 + $0x1b8] sm:$0xff]
          %v718 = vld [vmem:[#allocation11 + $0x1c0] sm:$0xff]
          %v719 = vld [vmem:[#allocation11 + $0x1c8] sm:$0xff]
          %v720 = vld [vmem:[#allocation11 + $0x1d0] sm:$0xff]
          %v721 = vld [vmem:[#allocation11 + $0x1d8] sm:$0xff]
          %v722 = vld [vmem:[#allocation11 + $0x1e0] sm:$0xff]
          %v723 = vld [vmem:[#allocation11 + $0x1e8] sm:$0xff]
          %v724 = vld [vmem:[#allocation11 + $0x1f0] sm:$0xff]
          %v725 = vld [vmem:[#allocation11 + $0x1f8] sm:$0xff]
          %726 = vmatprep.subr.mxu0 %v723
          %727 = vmatpush1.msra.mxu0 %v722
          %728 = vmatprep.subr.mxu0 %v719
          %729 = vmatpush1.msra.mxu0 %v718
          %730 = vmatprep.subr.mxu0 %v715
          %731 = vmatpush1.msra.mxu0 %v714
          %732 = vmatprep.subr.mxu0 %v711
          %733 = vmatpush1.msra.mxu0 %v710
          %734 = vmatprep.subr.mxu0 %v707
          %735 = vmatpush1.msra.mxu0 %v706
          %736 = vmatprep.subr.mxu0 %v703
          %737 = vmatpush1.msra.mxu0 %v702
          %738 = vmatprep.subr.mxu0 %v699
          %739 = vmatpush1.msra.mxu0 %v698
          %740 = vmatprep.subr.mxu0 %v695
          %741 = vmatpush1.msra.mxu0 %v694
          %742 = vmatprep.subr.mxu0 %v691
          %743 = vmatpush1.msra.mxu0 %v690
          %744 = vmatprep.subr.mxu0 %v687
          %745 = vmatpush1.msra.mxu0 %v686
          %746 = vmatprep.subr.mxu0 %v683
          %747 = vmatpush1.msra.mxu0 %v682
          %748 = vmatprep.subr.mxu0 %v679
          %749 = vmatpush1.msra.mxu0 %v678
          %750 = vmatprep.subr.mxu0 %v675
          %751 = vmatpush1.msra.mxu0 %v674
          %752 = vmatprep.subr.mxu0 %v671
          %753 = vmatpush1.msra.mxu0 %v670
          %754 = vmatprep.subr.mxu0 %v667
          %755 = vmatpush1.msra.mxu0 %v666
          %756 = vmatprep.subr.mxu0 %v663
          %757 = vmatpush1.msra.mxu0 %v662
          %758 = vmatprep.subr.mxu0 0.0
          %759 = vmatpush2.msra.mxu0 0.0
          %760 = vmatprep.subr.mxu0 0.0
          %761 = vmatpush2.msra.mxu0 0.0
          %762 = vmatprep.subr.mxu0 0.0
          %763 = vmatpush2.msra.mxu0 0.0
          %764 = vmatprep.subr.mxu0 0.0
          %765 = vmatpush2.msra.mxu0 0.0
          %766 = vmatprep.subr.mxu0 0.0
          %767 = vmatpush2.msra.mxu0 0.0
          %768 = vmatprep.subr.mxu0 0.0
          %769 = vmatpush2.msra.mxu0 0.0
          %770 = vmatprep.subr.mxu0 0.0
          %771 = vmatpush2.msra.mxu0 0.0
          %772 = vmatprep.subr.mxu0 0.0
          %773 = vmatpush2.msra.mxu0 0.0
          %774 = vmatprep.subr.mxu0 0.0
          %775 = vmatpush2.msra.mxu0 0.0
          %776 = vmatprep.subr.mxu0 0.0
          %777 = vmatpush2.msra.mxu0 0.0
          %778 = vmatprep.subr.mxu0 0.0
          %779 = vmatpush2.msra.mxu0 0.0
          %780 = vmatprep.subr.mxu0 0.0
          %781 = vmatpush2.msra.mxu0 0.0
          %782 = vmatprep.subr.mxu0 0.0
          %783 = vmatpush2.msra.mxu0 0.0
          %784 = vmatprep.subr.mxu0 0.0
          %785 = vmatpush2.msra.mxu0 0.0
          %786 = vmatprep.subr.mxu0 0.0
          %787 = vmatpush2.msra.mxu0 0.0
          %788 = vmatprep.subr.mxu0 0.0
          %789 = vmatpush2.msra.mxu0 0.0
          %790 = vmatprep.mubr.f32.mxu0 0.0
          %791 = vmatmul.mubr.f32.gmra.mxu0 %v658
          %v792 = vpop.f32.mrf.mxu0
          %v793 = vadd.f32 0.0, %v792
          %v794 = vpop.f32.mrf.mxu0
          %v795 = vadd.f32 0.0, %v794
          %796 = vmatprep.mubr.f32.mxu0 0.0
          %797 = vmatmul.mubr.f32.gmra.mxu0 %v659
          %v798 = vpop.f32.mrf.mxu0
          %v799 = vadd.f32 0.0, %v798
          %v800 = vpop.f32.mrf.mxu0
          %v801 = vadd.f32 0.0, %v800
          %802 = vdwg.mxu0
          %803 = vmatprep.subr.mxu0 %v725
          %804 = vmatpush1.msra.mxu0 %v724
          %805 = vmatprep.subr.mxu0 %v721
          %806 = vmatpush1.msra.mxu0 %v720
          %807 = vmatprep.subr.mxu0 %v717
          %808 = vmatpush1.msra.mxu0 %v716
          %809 = vmatprep.subr.mxu0 %v713
          %810 = vmatpush1.msra.mxu0 %v712
          %811 = vmatprep.subr.mxu0 %v709
          %812 = vmatpush1.msra.mxu0 %v708
          %813 = vmatprep.subr.mxu0 %v705
          %814 = vmatpush1.msra.mxu0 %v704
          %815 = vmatprep.subr.mxu0 %v701
          %816 = vmatpush1.msra.mxu0 %v700
          %817 = vmatprep.subr.mxu0 %v697
          %818 = vmatpush1.msra.mxu0 %v696
          %819 = vmatprep.subr.mxu0 %v693
          %820 = vmatpush1.msra.mxu0 %v692
          %821 = vmatprep.subr.mxu0 %v689
          %822 = vmatpush1.msra.mxu0 %v688
          %823 = vmatprep.subr.mxu0 %v685
          %824 = vmatpush1.msra.mxu0 %v684
          %825 = vmatprep.subr.mxu0 %v681
          %826 = vmatpush1.msra.mxu0 %v680
          %827 = vmatprep.subr.mxu0 %v677
          %828 = vmatpush1.msra.mxu0 %v676
          %829 = vmatprep.subr.mxu0 %v673
          %830 = vmatpush1.msra.mxu0 %v672
          %831 = vmatprep.subr.mxu0 %v669
          %832 = vmatpush1.msra.mxu0 %v668
          %833 = vmatprep.subr.mxu0 %v665
          %834 = vmatpush1.msra.mxu0 %v664
          %835 = vmatprep.subr.mxu0 0.0
          %836 = vmatpush2.msra.mxu0 0.0
          %837 = vmatprep.subr.mxu0 0.0
          %838 = vmatpush2.msra.mxu0 0.0
          %839 = vmatprep.subr.mxu0 0.0
          %840 = vmatpush2.msra.mxu0 0.0
          %841 = vmatprep.subr.mxu0 0.0
          %842 = vmatpush2.msra.mxu0 0.0
          %843 = vmatprep.subr.mxu0 0.0
          %844 = vmatpush2.msra.mxu0 0.0
          %845 = vmatprep.subr.mxu0 0.0
          %846 = vmatpush2.msra.mxu0 0.0
          %847 = vmatprep.subr.mxu0 0.0
          %848 = vmatpush2.msra.mxu0 0.0
          %849 = vmatprep.subr.mxu0 0.0
          %850 = vmatpush2.msra.mxu0 0.0
          %851 = vmatprep.subr.mxu0 0.0
          %852 = vmatpush2.msra.mxu0 0.0
          %853 = vmatprep.subr.mxu0 0.0
          %854 = vmatpush2.msra.mxu0 0.0
          %855 = vmatprep.subr.mxu0 0.0
          %856 = vmatpush2.msra.mxu0 0.0
          %857 = vmatprep.subr.mxu0 0.0
          %858 = vmatpush2.msra.mxu0 0.0
          %859 = vmatprep.subr.mxu0 0.0
          %860 = vmatpush2.msra.mxu0 0.0
          %861 = vmatprep.subr.mxu0 0.0
          %862 = vmatpush2.msra.mxu0 0.0
          %863 = vmatprep.subr.mxu0 0.0
          %864 = vmatpush2.msra.mxu0 0.0
          %865 = vmatprep.subr.mxu0 0.0
          %866 = vmatpush2.msra.mxu0 0.0
          %867 = vmatprep.mubr.f32.mxu0 0.0
          %868 = vmatmul.mubr.f32.gmra.mxu0 %v658
          %v869 = vpop.f32.mrf.mxu0
          %v870 = vadd.f32 0.0, %v869
          %v871 = vpop.f32.mrf.mxu0
          %v872 = vadd.f32 0.0, %v871
          %873 = vmatprep.mubr.f32.mxu0 0.0
          %874 = vmatmul.mubr.f32.gmra.mxu0 %v659
          %v875 = vpop.f32.mrf.mxu0
          %v876 = vadd.f32 0.0, %v875
          %v877 = vpop.f32.mrf.mxu0
          %v878 = vadd.f32 0.0, %v877
          %879 = vdwg.mxu0
          %880 = vst [vmem:[#allocation3] sm:$0xff] %v793
          %881 = vst [vmem:[#allocation3 + $0x8] sm:$0xff] %v795
          %882 = vst [vmem:[#allocation3 + $0x10] sm:$0xff] %v799
          %883 = vst [vmem:[#allocation3 + $0x18] sm:$0xff] %v801
          %884 = vst [vmem:[#allocation4] sm:$0xff] %v870
          %885 = vst [vmem:[#allocation4 + $0x8] sm:$0xff] %v872
          %886 = vst [vmem:[#allocation4 + $0x10] sm:$0xff] %v876
          %887 = vst [vmem:[#allocation4 + $0x18] sm:$0xff] %v878
        $region108: #{tpu_custom_call.1} parent=75 // pred_fallthru
          _
        %v888 = vld [vmem:[%s543] sm:$0xff]
        %s889 = smul.u32 %s41, 8
        %s890 = scalar_lea.vmem [#allocation2], %s889
        %v891 = vld [vmem:[%s890] sm:$0xff]
        %v892 = vld [vmem:[#allocation10] sm:$0xff]
        %v893 = vld [vmem:[#allocation10 + $0x8] sm:$0xff]
        %v894 = vld [vmem:[#allocation10 + $0x10] sm:$0xff]
        %v895 = vld [vmem:[#allocation10 + $0x18] sm:$0xff]
        %v896 = vld [vmem:[#allocation10 + $0x20] sm:$0xff]
        %v897 = vld [vmem:[#allocation10 + $0x28] sm:$0xff]
        %v898 = vld [vmem:[#allocation10 + $0x30] sm:$0xff]
        %v899 = vld [vmem:[#allocation10 + $0x38] sm:$0xff]
        %v900 = vld [vmem:[#allocation10 + $0x40] sm:$0xff]
        %v901 = vld [vmem:[#allocation10 + $0x48] sm:$0xff]
        %v902 = vld [vmem:[#allocation10 + $0x50] sm:$0xff]
        %v903 = vld [vmem:[#allocation10 + $0x58] sm:$0xff]
        %v904 = vld [vmem:[#allocation10 + $0x60] sm:$0xff]
        %v905 = vld [vmem:[#allocation10 + $0x68] sm:$0xff]
        %v906 = vld [vmem:[#allocation10 + $0x70] sm:$0xff]
        %v907 = vld [vmem:[#allocation10 + $0x78] sm:$0xff]
        %v908 = vld [vmem:[#allocation10 + $0x80] sm:$0xff]
        %v909 = vld [vmem:[#allocation10 + $0x88] sm:$0xff]
        %v910 = vld [vmem:[#allocation10 + $0x90] sm:$0xff]
        %v911 = vld [vmem:[#allocation10 + $0x98] sm:$0xff]
        %v912 = vld [vmem:[#allocation10 + $0xa0] sm:$0xff]
        %v913 = vld [vmem:[#allocation10 + $0xa8] sm:$0xff]
        %v914 = vld [vmem:[#allocation10 + $0xb0] sm:$0xff]
        %v915 = vld [vmem:[#allocation10 + $0xb8] sm:$0xff]
        %v916 = vld [vmem:[#allocation10 + $0xc0] sm:$0xff]
        %v917 = vld [vmem:[#allocation10 + $0xc8] sm:$0xff]
        %v918 = vld [vmem:[#allocation10 + $0xd0] sm:$0xff]
        %v919 = vld [vmem:[#allocation10 + $0xd8] sm:$0xff]
        %v920 = vld [vmem:[#allocation10 + $0xe0] sm:$0xff]
        %v921 = vld [vmem:[#allocation10 + $0xe8] sm:$0xff]
        %v922 = vld [vmem:[#allocation10 + $0xf0] sm:$0xff]
        %v923 = vld [vmem:[#allocation10 + $0xf8] sm:$0xff]
        %924 = vmatprep.subr.mxu0 %v923
        %925 = vmatpush1.msra.mxu0 %v922
        %926 = vmatprep.subr.mxu0 %v921
        %927 = vmatpush1.msra.mxu0 %v920
        %928 = vmatprep.subr.mxu0 %v919
        %929 = vmatpush1.msra.mxu0 %v918
        %930 = vmatprep.subr.mxu0 %v917
        %931 = vmatpush1.msra.mxu0 %v916
        %932 = vmatprep.subr.mxu0 %v915
        %933 = vmatpush1.msra.mxu0 %v914
        %934 = vmatprep.subr.mxu0 %v913
        %935 = vmatpush1.msra.mxu0 %v912
        %936 = vmatprep.subr.mxu0 %v911
        %937 = vmatpush1.msra.mxu0 %v910
        %938 = vmatprep.subr.mxu0 %v909
        %939 = vmatpush1.msra.mxu0 %v908
        %940 = vmatprep.subr.mxu0 %v907
        %941 = vmatpush1.msra.mxu0 %v906
        %942 = vmatprep.subr.mxu0 %v905
        %943 = vmatpush1.msra.mxu0 %v904
        %944 = vmatprep.subr.mxu0 %v903
        %945 = vmatpush1.msra.mxu0 %v902
        %946 = vmatprep.subr.mxu0 %v901
        %947 = vmatpush1.msra.mxu0 %v900
        %948 = vmatprep.subr.mxu0 %v899
        %949 = vmatpush1.msra.mxu0 %v898
        %950 = vmatprep.subr.mxu0 %v897
        %951 = vmatpush1.msra.mxu0 %v896
        %952 = vmatprep.subr.mxu0 %v895
        %953 = vmatpush1.msra.mxu0 %v894
        %954 = vmatprep.subr.mxu0 %v893
        %955 = vmatpush1.msra.mxu0 %v892
        %956 = vmatprep.subr.mxu0 0.0
        %957 = vmatpush2.msra.mxu0 0.0
        %958 = vmatprep.subr.mxu0 0.0
        %959 = vmatpush2.msra.mxu0 0.0
        %960 = vmatprep.subr.mxu0 0.0
        %961 = vmatpush2.msra.mxu0 0.0
        %962 = vmatprep.subr.mxu0 0.0
        %963 = vmatpush2.msra.mxu0 0.0
        %964 = vmatprep.subr.mxu0 0.0
        %965 = vmatpush2.msra.mxu0 0.0
        %966 = vmatprep.subr.mxu0 0.0
        %967 = vmatpush2.msra.mxu0 0.0
        %968 = vmatprep.subr.mxu0 0.0
        %969 = vmatpush2.msra.mxu0 0.0
        %970 = vmatprep.subr.mxu0 0.0
        %971 = vmatpush2.msra.mxu0 0.0
        %972 = vmatprep.subr.mxu0 0.0
        %973 = vmatpush2.msra.mxu0 0.0
        %974 = vmatprep.subr.mxu0 0.0
        %975 = vmatpush2.msra.mxu0 0.0
        %976 = vmatprep.subr.mxu0 0.0
        %977 = vmatpush2.msra.mxu0 0.0
        %978 = vmatprep.subr.mxu0 0.0
        %979 = vmatpush2.msra.mxu0 0.0
        %980 = vmatprep.subr.mxu0 0.0
        %981 = vmatpush2.msra.mxu0 0.0
        %982 = vmatprep.subr.mxu0 0.0
        %983 = vmatpush2.msra.mxu0 0.0
        %984 = vmatprep.subr.mxu0 0.0
        %985 = vmatpush2.msra.mxu0 0.0
        %986 = vmatprep.subr.mxu0 0.0
        %987 = vmatpush2.msra.mxu0 0.0
        %988 = vmatprep.mubr.f32.mxu0 0.0
        %989 = vmatmul.mubr.f32.gmra.mxu0 %v891
        %v990 = vpop.f32.mrf.mxu0
        %v991 = vadd.f32 0.0, %v990
        %v992 = vpop.f32.mrf.mxu0
        %v993 = vadd.f32 0.0, %v992
        %994 = vdwg.mxu0
        %v995 = vmul.f32 %v991, 0.088388346
        %v996 = vmul.f32 %v993, 0.088388346
        %v997 = vld [vmem:[#allocation3] sm:$0xff]
        %v998 = vld [vmem:[#allocation3 + $0x10] sm:$0xff]
        %v999 = vld [vmem:[#allocation4] sm:$0xff]
        %v1000 = vld [vmem:[#allocation4 + $0x10] sm:$0xff]
        %1001 = vmatprep.subr.mxu0 0.0
        %1002 = vmatpush1.xpose.msra.mxu0 0.0
        %1003 = vmatprep.subr.mxu0 0.0
        %1004 = vmatpush1.xpose.msra.mxu0 0.0
        %1005 = vmatprep.subr.mxu0 0.0
        %1006 = vmatpush1.xpose.msra.mxu0 0.0
        %1007 = vmatprep.subr.mxu0 0.0
        %1008 = vmatpush1.xpose.msra.mxu0 0.0
        %1009 = vmatprep.subr.mxu0 0.0
        %1010 = vmatpush1.xpose.msra.mxu0 0.0
        %1011 = vmatprep.subr.mxu0 0.0
        %1012 = vmatpush1.xpose.msra.mxu0 0.0
        %1013 = vmatprep.subr.mxu0 0.0
        %1014 = vmatpush1.xpose.msra.mxu0 0.0
        %1015 = vmatprep.subr.mxu0 0.0
        %1016 = vmatpush1.xpose.msra.mxu0 0.0
        %1017 = vmatprep.subr.mxu0 0.0
        %1018 = vmatpush1.xpose.msra.mxu0 0.0
        %1019 = vmatprep.subr.mxu0 0.0
        %1020 = vmatpush1.xpose.msra.mxu0 0.0
        %1021 = vmatprep.subr.mxu0 0.0
        %1022 = vmatpush1.xpose.msra.mxu0 0.0
        %1023 = vmatprep.subr.mxu0 0.0
        %1024 = vmatpush1.xpose.msra.mxu0 0.0
        %1025 = vmatprep.subr.mxu0 0.0
        %1026 = vmatpush1.xpose.msra.mxu0 0.0
        %1027 = vmatprep.subr.mxu0 0.0
        %1028 = vmatpush1.xpose.msra.mxu0 0.0
        %1029 = vmatprep.subr.mxu0 0.0
        %1030 = vmatpush1.xpose.msra.mxu0 %v998
        %1031 = vmatprep.subr.mxu0 0.0
        %1032 = vmatpush1.xpose.msra.mxu0 %v997
        %1033 = vmatprep.subr.mxu0 0.0
        %1034 = vmatpush2.xpose.msra.mxu0 0.0
        %1035 = vmatprep.subr.mxu0 0.0
        %1036 = vmatpush2.xpose.msra.mxu0 0.0
        %1037 = vmatprep.subr.mxu0 0.0
        %1038 = vmatpush2.xpose.msra.mxu0 0.0
        %1039 = vmatprep.subr.mxu0 0.0
        %1040 = vmatpush2.xpose.msra.mxu0 0.0
        %1041 = vmatprep.subr.mxu0 0.0
        %1042 = vmatpush2.xpose.msra.mxu0 0.0
        %1043 = vmatprep.subr.mxu0 0.0
        %1044 = vmatpush2.xpose.msra.mxu0 0.0
        %1045 = vmatprep.subr.mxu0 0.0
        %1046 = vmatpush2.xpose.msra.mxu0 0.0
        %1047 = vmatprep.subr.mxu0 0.0
        %1048 = vmatpush2.xpose.msra.mxu0 0.0
        %1049 = vmatprep.subr.mxu0 0.0
        %1050 = vmatpush2.xpose.msra.mxu0 0.0
        %1051 = vmatprep.subr.mxu0 0.0
        %1052 = vmatpush2.xpose.msra.mxu0 0.0
        %1053 = vmatprep.subr.mxu0 0.0
        %1054 = vmatpush2.xpose.msra.mxu0 0.0
        %1055 = vmatprep.subr.mxu0 0.0
        %1056 = vmatpush2.xpose.msra.mxu0 0.0
        %1057 = vmatprep.subr.mxu0 0.0
        %1058 = vmatpush2.xpose.msra.mxu0 0.0
        %1059 = vmatprep.subr.mxu0 0.0
        %1060 = vmatpush2.xpose.msra.mxu0 0.0
        %1061 = vmatprep.subr.mxu0 0.0
        %1062 = vmatpush2.xpose.msra.mxu0 0.0
        %1063 = vmatprep.subr.mxu0 0.0
        %1064 = vmatpush2.xpose.msra.mxu0 0.0
        %1065 = vmatprep.mubr.f32.mxu0 0.0
        %1066 = vmatmul.mubr.f32.gmra.mxu0 %v995
        %v1067 = vpop.f32.mrf.mxu0
        %v1068 = vadd.f32 0.0, %v1067
        %v1069 = vpop.f32.mrf.mxu0
        %1070 = vdwg.mxu0
        %vm1071 = vcmask 130048
        %v1072 = vsel %vm1071, %v1068, -inf
        %1073 = vmax.xlane.f32.xlu0 %v1072
        %v1074 = vpop.xlane.xlu0 %1073
        %v1075 = vsub.f32 %v1068, %v1074
        %v1076 = vmul.f32 %v1075, 1.442695
        %v1077 = vpow.pop %v1076
        %v1078 = vsel %vm1071, %v1077, 0.0
        %1079 = vadd.xlane.f32.xlu0 %v1078
        %v1080 = vpop.xlane.xlu0 %1079
        %v1081 = vrcp.pop %v1080
        %v1082 = vmul.f32 %v1077, %v1081
        %v1084 = vsel %vm1071, %v1082, 0
        %1086 = vmatprep.subr.mxu0 0.0
        %1087 = vmatpush1.msra.mxu0 0.0
        %1088 = vmatprep.subr.mxu0 0.0
        %1089 = vmatpush1.msra.mxu0 0.0
        %1090 = vmatprep.subr.mxu0 0.0
        %1091 = vmatpush1.msra.mxu0 0.0
        %1092 = vmatprep.subr.mxu0 0.0
        %1093 = vmatpush1.msra.mxu0 0.0
        %1094 = vmatprep.subr.mxu0 0.0
        %1095 = vmatpush1.msra.mxu0 0.0
        %1096 = vmatprep.subr.mxu0 0.0
        %1097 = vmatpush1.msra.mxu0 0.0
        %1098 = vmatprep.subr.mxu0 0.0
        %1099 = vmatpush1.msra.mxu0 0.0
        %1100 = vmatprep.subr.mxu0 0.0
        %1101 = vmatpush1.msra.mxu0 0.0
        %1102 = vmatprep.subr.mxu0 0.0
        %1103 = vmatpush1.msra.mxu0 0.0
        %1104 = vmatprep.subr.mxu0 0.0
        %1105 = vmatpush1.msra.mxu0 0.0
        %1106 = vmatprep.subr.mxu0 0.0
        %1107 = vmatpush1.msra.mxu0 0.0
        %1108 = vmatprep.subr.mxu0 0.0
        %1109 = vmatpush1.msra.mxu0 0.0
        %1110 = vmatprep.subr.mxu0 0.0
        %1111 = vmatpush1.msra.mxu0 0.0
        %1112 = vmatprep.subr.mxu0 0.0
        %1113 = vmatpush1.msra.mxu0 0.0
        %1114 = vmatprep.subr.mxu0 0.0
        %1115 = vmatpush1.msra.mxu0 %v1000
        %1116 = vmatprep.subr.mxu0 0.0
        %1117 = vmatpush1.msra.mxu0 %v999
        %1118 = vmatprep.subr.mxu0 0.0
        %1119 = vmatpush2.msra.mxu0 0.0
        %1120 = vmatprep.subr.mxu0 0.0
        %1121 = vmatpush2.msra.mxu0 0.0
        %1122 = vmatprep.subr.mxu0 0.0
        %1123 = vmatpush2.msra.mxu0 0.0
        %1124 = vmatprep.subr.mxu0 0.0
        %1125 = vmatpush2.msra.mxu0 0.0
        %1126 = vmatprep.subr.mxu0 0.0
        %1127 = vmatpush2.msra.mxu0 0.0
        %1128 = vmatprep.subr.mxu0 0.0
        %1129 = vmatpush2.msra.mxu0 0.0
        %1130 = vmatprep.subr.mxu0 0.0
        %1131 = vmatpush2.msra.mxu0 0.0
        %1132 = vmatprep.subr.mxu0 0.0
        %1133 = vmatpush2.msra.mxu0 0.0
        %1134 = vmatprep.subr.mxu0 0.0
        %1135 = vmatpush2.msra.mxu0 0.0
        %1136 = vmatprep.subr.mxu0 0.0
        %1137 = vmatpush2.msra.mxu0 0.0
        %1138 = vmatprep.subr.mxu0 0.0
        %1139 = vmatpush2.msra.mxu0 0.0
        %1140 = vmatprep.subr.mxu0 0.0
        %1141 = vmatpush2.msra.mxu0 0.0
        %1142 = vmatprep.subr.mxu0 0.0
        %1143 = vmatpush2.msra.mxu0 0.0
        %1144 = vmatprep.subr.mxu0 0.0
        %1145 = vmatpush2.msra.mxu0 0.0
        %1146 = vmatprep.subr.mxu0 0.0
        %1147 = vmatpush2.msra.mxu0 0.0
        %1148 = vmatprep.subr.mxu0 0.0
        %1149 = vmatpush2.msra.mxu0 0.0
        %1150 = vmatprep.mubr.f32.mxu0 0.0
        %1151 = vmatmul.mubr.f32.gmra.mxu0 %v1084
        %v1152 = vpop.f32.mrf.mxu0
        %v1153 = vadd.f32 0.0, %v1152
        %v1154 = vpop.f32.mrf.mxu0
        %1155 = vdwg.mxu0
        %v1156 = vld [vmem:[#allocation3 + $0x8] sm:$0xff]
        %v1157 = vld [vmem:[#allocation3 + $0x18] sm:$0xff]
        %v1158 = vld [vmem:[#allocation4 + $0x8] sm:$0xff]
        %v1159 = vld [vmem:[#allocation4 + $0x18] sm:$0xff]
        %1160 = vmatprep.subr.mxu0 0.0
        %1161 = vmatpush1.xpose.msra.mxu0 0.0
        %1162 = vmatprep.subr.mxu0 0.0
        %1163 = vmatpush1.xpose.msra.mxu0 0.0
        %1164 = vmatprep.subr.mxu0 0.0
        %1165 = vmatpush1.xpose.msra.mxu0 0.0
        %1166 = vmatprep.subr.mxu0 0.0
        %1167 = vmatpush1.xpose.msra.mxu0 0.0
        %1168 = vmatprep.subr.mxu0 0.0
        %1169 = vmatpush1.xpose.msra.mxu0 0.0
        %1170 = vmatprep.subr.mxu0 0.0
        %1171 = vmatpush1.xpose.msra.mxu0 0.0
        %1172 = vmatprep.subr.mxu0 0.0
        %1173 = vmatpush1.xpose.msra.mxu0 0.0
        %1174 = vmatprep.subr.mxu0 0.0
        %1175 = vmatpush1.xpose.msra.mxu0 0.0
        %1176 = vmatprep.subr.mxu0 0.0
        %1177 = vmatpush1.xpose.msra.mxu0 0.0
        %1178 = vmatprep.subr.mxu0 0.0
        %1179 = vmatpush1.xpose.msra.mxu0 0.0
        %1180 = vmatprep.subr.mxu0 0.0
        %1181 = vmatpush1.xpose.msra.mxu0 0.0
        %1182 = vmatprep.subr.mxu0 0.0
        %1183 = vmatpush1.xpose.msra.mxu0 0.0
        %1184 = vmatprep.subr.mxu0 0.0
        %1185 = vmatpush1.xpose.msra.mxu0 0.0
        %1186 = vmatprep.subr.mxu0 0.0
        %1187 = vmatpush1.xpose.msra.mxu0 0.0
        %1188 = vmatprep.subr.mxu0 0.0
        %1189 = vmatpush1.xpose.msra.mxu0 %v1157
        %1190 = vmatprep.subr.mxu0 0.0
        %1191 = vmatpush1.xpose.msra.mxu0 %v1156
        %1192 = vmatprep.subr.mxu0 0.0
        %1193 = vmatpush2.xpose.msra.mxu0 0.0
        %1194 = vmatprep.subr.mxu0 0.0
        %1195 = vmatpush2.xpose.msra.mxu0 0.0
        %1196 = vmatprep.subr.mxu0 0.0
        %1197 = vmatpush2.xpose.msra.mxu0 0.0
        %1198 = vmatprep.subr.mxu0 0.0
        %1199 = vmatpush2.xpose.msra.mxu0 0.0
        %1200 = vmatprep.subr.mxu0 0.0
        %1201 = vmatpush2.xpose.msra.mxu0 0.0
        %1202 = vmatprep.subr.mxu0 0.0
        %1203 = vmatpush2.xpose.msra.mxu0 0.0
        %1204 = vmatprep.subr.mxu0 0.0
        %1205 = vmatpush2.xpose.msra.mxu0 0.0
        %1206 = vmatprep.subr.mxu0 0.0
        %1207 = vmatpush2.xpose.msra.mxu0 0.0
        %1208 = vmatprep.subr.mxu0 0.0
        %1209 = vmatpush2.xpose.msra.mxu0 0.0
        %1210 = vmatprep.subr.mxu0 0.0
        %1211 = vmatpush2.xpose.msra.mxu0 0.0
        %1212 = vmatprep.subr.mxu0 0.0
        %1213 = vmatpush2.xpose.msra.mxu0 0.0
        %1214 = vmatprep.subr.mxu0 0.0
        %1215 = vmatpush2.xpose.msra.mxu0 0.0
        %1216 = vmatprep.subr.mxu0 0.0
        %1217 = vmatpush2.xpose.msra.mxu0 0.0
        %1218 = vmatprep.subr.mxu0 0.0
        %1219 = vmatpush2.xpose.msra.mxu0 0.0
        %1220 = vmatprep.subr.mxu0 0.0
        %1221 = vmatpush2.xpose.msra.mxu0 0.0
        %1222 = vmatprep.subr.mxu0 0.0
        %1223 = vmatpush2.xpose.msra.mxu0 0.0
        %1224 = vmatprep.mubr.f32.mxu0 0.0
        %1225 = vmatmul.mubr.f32.gmra.mxu0 %v996
        %v1226 = vpop.f32.mrf.mxu0
        %v1227 = vadd.f32 0.0, %v1226
        %v1228 = vpop.f32.mrf.mxu0
        %1229 = vdwg.mxu0
        %v1230 = vsel %vm1071, %v1227, -inf
        %1231 = vmax.xlane.f32.xlu0 %v1230
        %v1232 = vpop.xlane.xlu0 %1231
        %v1233 = vsub.f32 %v1227, %v1232
        %v1234 = vmul.f32 %v1233, 1.442695
        %v1235 = vpow.pop %v1234
        %v1236 = vsel %vm1071, %v1235, 0.0
        %1237 = vadd.xlane.f32.xlu0 %v1236
        %v1238 = vpop.xlane.xlu0 %1237
        %v1239 = vrcp.pop %v1238
        %v1240 = vmul.f32 %v1235, %v1239
        %v1242 = vsel %vm1071, %v1240, 0
        %1244 = vmatprep.subr.mxu0 0.0
        %1245 = vmatpush1.msra.mxu0 0.0
        %1246 = vmatprep.subr.mxu0 0.0
        %1247 = vmatpush1.msra.mxu0 0.0
        %1248 = vmatprep.subr.mxu0 0.0
        %1249 = vmatpush1.msra.mxu0 0.0
        %1250 = vmatprep.subr.mxu0 0.0
        %1251 = vmatpush1.msra.mxu0 0.0
        %1252 = vmatprep.subr.mxu0 0.0
        %1253 = vmatpush1.msra.mxu0 0.0
        %1254 = vmatprep.subr.mxu0 0.0
        %1255 = vmatpush1.msra.mxu0 0.0
        %1256 = vmatprep.subr.mxu0 0.0
        %1257 = vmatpush1.msra.mxu0 0.0
        %1258 = vmatprep.subr.mxu0 0.0
        %1259 = vmatpush1.msra.mxu0 0.0
        %1260 = vmatprep.subr.mxu0 0.0
        %1261 = vmatpush1.msra.mxu0 0.0
        %1262 = vmatprep.subr.mxu0 0.0
        %1263 = vmatpush1.msra.mxu0 0.0
        %1264 = vmatprep.subr.mxu0 0.0
        %1265 = vmatpush1.msra.mxu0 0.0
        %1266 = vmatprep.subr.mxu0 0.0
        %1267 = vmatpush1.msra.mxu0 0.0
        %1268 = vmatprep.subr.mxu0 0.0
        %1269 = vmatpush1.msra.mxu0 0.0
        %1270 = vmatprep.subr.mxu0 0.0
        %1271 = vmatpush1.msra.mxu0 0.0
        %1272 = vmatprep.subr.mxu0 0.0
        %1273 = vmatpush1.msra.mxu0 %v1159
        %1274 = vmatprep.subr.mxu0 0.0
        %1275 = vmatpush1.msra.mxu0 %v1158
        %1276 = vmatprep.subr.mxu0 0.0
        %1277 = vmatpush2.msra.mxu0 0.0
        %1278 = vmatprep.subr.mxu0 0.0
        %1279 = vmatpush2.msra.mxu0 0.0
        %1280 = vmatprep.subr.mxu0 0.0
        %1281 = vmatpush2.msra.mxu0 0.0
        %1282 = vmatprep.subr.mxu0 0.0
        %1283 = vmatpush2.msra.mxu0 0.0
        %1284 = vmatprep.subr.mxu0 0.0
        %1285 = vmatpush2.msra.mxu0 0.0
        %1286 = vmatprep.subr.mxu0 0.0
        %1287 = vmatpush2.msra.mxu0 0.0
        %1288 = vmatprep.subr.mxu0 0.0
        %1289 = vmatpush2.msra.mxu0 0.0
        %1290 = vmatprep.subr.mxu0 0.0
        %1291 = vmatpush2.msra.mxu0 0.0
        %1292 = vmatprep.subr.mxu0 0.0
        %1293 = vmatpush2.msra.mxu0 0.0
        %1294 = vmatprep.subr.mxu0 0.0
        %1295 = vmatpush2.msra.mxu0 0.0
        %1296 = vmatprep.subr.mxu0 0.0
        %1297 = vmatpush2.msra.mxu0 0.0
        %1298 = vmatprep.subr.mxu0 0.0
        %1299 = vmatpush2.msra.mxu0 0.0
        %1300 = vmatprep.subr.mxu0 0.0
        %1301 = vmatpush2.msra.mxu0 0.0
        %1302 = vmatprep.subr.mxu0 0.0
        %1303 = vmatpush2.msra.mxu0 0.0
        %1304 = vmatprep.subr.mxu0 0.0
        %1305 = vmatpush2.msra.mxu0 0.0
        %1306 = vmatprep.subr.mxu0 0.0
        %1307 = vmatpush2.msra.mxu0 0.0
        %1308 = vmatprep.mubr.f32.mxu0 0.0
        %1309 = vmatmul.mubr.f32.gmra.mxu0 %v1242
        %v1310 = vpop.f32.mrf.mxu0
        %v1311 = vadd.f32 0.0, %v1310
        %v1312 = vpop.f32.mrf.mxu0
        %1313 = vdwg.mxu0
        %v1314 = vld [vmem:[#allocation13] sm:$0xff]
        %v1315 = vld [vmem:[#allocation13 + $0x8] sm:$0xff]
        %v1316 = vld [vmem:[#allocation13 + $0x10] sm:$0xff]
        %v1317 = vld [vmem:[#allocation13 + $0x18] sm:$0xff]
        %v1318 = vld [vmem:[#allocation13 + $0x20] sm:$0xff]
        %v1319 = vld [vmem:[#allocation13 + $0x28] sm:$0xff]
        %v1320 = vld [vmem:[#allocation13 + $0x30] sm:$0xff]
        %v1321 = vld [vmem:[#allocation13 + $0x38] sm:$0xff]
        %v1322 = vld [vmem:[#allocation13 + $0x40] sm:$0xff]
        %v1323 = vld [vmem:[#allocation13 + $0x48] sm:$0xff]
        %v1324 = vld [vmem:[#allocation13 + $0x50] sm:$0xff]
        %v1325 = vld [vmem:[#allocation13 + $0x58] sm:$0xff]
        %v1326 = vld [vmem:[#allocation13 + $0x60] sm:$0xff]
        %v1327 = vld [vmem:[#allocation13 + $0x68] sm:$0xff]
        %v1328 = vld [vmem:[#allocation13 + $0x70] sm:$0xff]
        %v1329 = vld [vmem:[#allocation13 + $0x78] sm:$0xff]
        %v1330 = vld [vmem:[#allocation13 + $0x80] sm:$0xff]
        %v1331 = vld [vmem:[#allocation13 + $0x88] sm:$0xff]
        %v1332 = vld [vmem:[#allocation13 + $0x90] sm:$0xff]
        %v1333 = vld [vmem:[#allocation13 + $0x98] sm:$0xff]
        %v1334 = vld [vmem:[#allocation13 + $0xa0] sm:$0xff]
        %v1335 = vld [vmem:[#allocation13 + $0xa8] sm:$0xff]
        %v1336 = vld [vmem:[#allocation13 + $0xb0] sm:$0xff]
        %v1337 = vld [vmem:[#allocation13 + $0xb8] sm:$0xff]
        %v1338 = vld [vmem:[#allocation13 + $0xc0] sm:$0xff]
        %v1339 = vld [vmem:[#allocation13 + $0xc8] sm:$0xff]
        %v1340 = vld [vmem:[#allocation13 + $0xd0] sm:$0xff]
        %v1341 = vld [vmem:[#allocation13 + $0xd8] sm:$0xff]
        %v1342 = vld [vmem:[#allocation13 + $0xe0] sm:$0xff]
        %v1343 = vld [vmem:[#allocation13 + $0xe8] sm:$0xff]
        %v1344 = vld [vmem:[#allocation13 + $0xf0] sm:$0xff]
        %v1345 = vld [vmem:[#allocation13 + $0xf8] sm:$0xff]
        %v1346 = vld [vmem:[%s7] sm:$0x1]
        %v1348 = vlaneseq
        %v1349 = vshrl.u32 %v1348, 7
        %v1350 = vsub.s32 0, %v1349
        %v1351 = vrot.slane %v1346, %v1350
        %1353 = vmatprep.subr.mxu0 0.0
        %1354 = vmatpush1.msra.mxu0 %v1329
        %1355 = vmatprep.subr.mxu0 0.0
        %1356 = vmatpush1.msra.mxu0 %v1328
        %1357 = vmatprep.subr.mxu0 0.0
        %1358 = vmatpush1.msra.mxu0 %v1327
        %1359 = vmatprep.subr.mxu0 0.0
        %1360 = vmatpush1.msra.mxu0 %v1326
        %1361 = vmatprep.subr.mxu0 0.0
        %1362 = vmatpush1.msra.mxu0 %v1325
        %1363 = vmatprep.subr.mxu0 0.0
        %1364 = vmatpush1.msra.mxu0 %v1324
        %1365 = vmatprep.subr.mxu0 0.0
        %1366 = vmatpush1.msra.mxu0 %v1323
        %1367 = vmatprep.subr.mxu0 0.0
        %1368 = vmatpush1.msra.mxu0 %v1322
        %1369 = vmatprep.subr.mxu0 0.0
        %1370 = vmatpush1.msra.mxu0 %v1321
        %1371 = vmatprep.subr.mxu0 0.0
        %1372 = vmatpush1.msra.mxu0 %v1320
        %1373 = vmatprep.subr.mxu0 0.0
        %1374 = vmatpush1.msra.mxu0 %v1319
        %1375 = vmatprep.subr.mxu0 0.0
        %1376 = vmatpush1.msra.mxu0 %v1318
        %1377 = vmatprep.subr.mxu0 0.0
        %1378 = vmatpush1.msra.mxu0 %v1317
        %1379 = vmatprep.subr.mxu0 0.0
        %1380 = vmatpush1.msra.mxu0 %v1316
        %1381 = vmatprep.subr.mxu0 0.0
        %1382 = vmatpush1.msra.mxu0 %v1315
        %1383 = vmatprep.subr.mxu0 0.0
        %1384 = vmatpush1.msra.mxu0 %v1314
        %1385 = vmatprep.subr.mxu0 0.0
        %1386 = vmatpush2.msra.mxu0 %v1345
        %1387 = vmatprep.subr.mxu0 0.0
        %1388 = vmatpush2.msra.mxu0 %v1344
        %1389 = vmatprep.subr.mxu0 0.0
        %1390 = vmatpush2.msra.mxu0 %v1343
        %1391 = vmatprep.subr.mxu0 0.0
        %1392 = vmatpush2.msra.mxu0 %v1342
        %1393 = vmatprep.subr.mxu0 0.0
        %1394 = vmatpush2.msra.mxu0 %v1341
        %1395 = vmatprep.subr.mxu0 0.0
        %1396 = vmatpush2.msra.mxu0 %v1340
        %1397 = vmatprep.subr.mxu0 0.0
        %1398 = vmatpush2.msra.mxu0 %v1339
        %1399 = vmatprep.subr.mxu0 0.0
        %1400 = vmatpush2.msra.mxu0 %v1338
        %1401 = vmatprep.subr.mxu0 0.0
        %1402 = vmatpush2.msra.mxu0 %v1337
        %1403 = vmatprep.subr.mxu0 0.0
        %1404 = vmatpush2.msra.mxu0 %v1336
        %1405 = vmatprep.subr.mxu0 0.0
        %1406 = vmatpush2.msra.mxu0 %v1335
        %1407 = vmatprep.subr.mxu0 0.0
        %1408 = vmatpush2.msra.mxu0 %v1334
        %1409 = vmatprep.subr.mxu0 0.0
        %1410 = vmatpush2.msra.mxu0 %v1333
        %1411 = vmatprep.subr.mxu0 0.0
        %1412 = vmatpush2.msra.mxu0 %v1332
        %1413 = vmatprep.subr.mxu0 0.0
        %1414 = vmatpush2.msra.mxu0 %v1331
        %1415 = vmatprep.subr.mxu0 0.0
        %1416 = vmatpush2.msra.mxu0 %v1330
        %1417 = vmatprep.mubr.f32.mxu0 %v1311
        %1418 = vmatmul.mubr.f32.gmra.mxu0 %v1153
        %v1419 = vpop.f32.mrf.mxu0
        %v1420 = vadd.f32 %v1351, %v1419
        %v1421 = vpop.f32.mrf.mxu0
        %1422 = vdwg.mxu0
        %v1423 = vadd.f32 %v888, %v1420
        %v1424 = vld [vmem:[%s8] sm:$0x1]
        %v1425 = vld [vmem:[%s9] sm:$0x1]
        %1426 = vadd.xlane.f32.xlu0 %v1423
        %v1427 = vpop.xlane.xlu0 %1426
        %v1428 = vrcp.pop 128.0
        %v1429 = vmul.f32 %v1427, %v1428
        %v1430 = vsub.f32 %v1423, %v1429
        %v1431 = vmul.f32 %v1430, %v1430
        %1432 = vadd.xlane.f32.xlu0 %v1431
        %v1433 = vpop.xlane.xlu0 %1432
        %v1434 = vmul.f32 %v1433, %v1428
        %v1435 = vadd.f32 %v1434, 1e-05
        %v1436 = vrsqrt.pop %v1435
        %v1437 = vmul.f32 %v1430, %v1436
        %v1439 = vlaneseq
        %v1440 = vshrl.u32 %v1439, 7
        %v1441 = vsub.s32 0, %v1440
        %v1442 = vrot.slane %v1424, %v1441
        %v1444 = vmul.f32 %v1437, %v1442
        %v1446 = vlaneseq
        %v1447 = vshrl.u32 %v1446, 7
        %v1448 = vsub.s32 0, %v1447
        %v1449 = vrot.slane %v1425, %v1448
        %v1451 = vadd.f32 %v1444, %v1449
        %v1452 = vld [vmem:[#allocation14] sm:$0xff]
        %v1453 = vld [vmem:[#allocation14 + $0x8] sm:$0xff]
        %v1454 = vld [vmem:[#allocation14 + $0x10] sm:$0xff]
        %v1455 = vld [vmem:[#allocation14 + $0x18] sm:$0xff]
        %v1456 = vld [vmem:[#allocation14 + $0x20] sm:$0xff]
        %v1457 = vld [vmem:[#allocation14 + $0x28] sm:$0xff]
        %v1458 = vld [vmem:[#allocation14 + $0x30] sm:$0xff]
        %v1459 = vld [vmem:[#allocation14 + $0x38] sm:$0xff]
        %v1460 = vld [vmem:[#allocation14 + $0x40] sm:$0xff]
        %v1461 = vld [vmem:[#allocation14 + $0x48] sm:$0xff]
        %v1462 = vld [vmem:[#allocation14 + $0x50] sm:$0xff]
        %v1463 = vld [vmem:[#allocation14 + $0x58] sm:$0xff]
        %v1464 = vld [vmem:[#allocation14 + $0x60] sm:$0xff]
        %v1465 = vld [vmem:[#allocation14 + $0x68] sm:$0xff]
        %v1466 = vld [vmem:[#allocation14 + $0x70] sm:$0xff]
        %v1467 = vld [vmem:[#allocation14 + $0x78] sm:$0xff]
        %v1468 = vld [vmem:[#allocation14 + $0x80] sm:$0xff]
        %v1469 = vld [vmem:[#allocation14 + $0x88] sm:$0xff]
        %v1470 = vld [vmem:[#allocation14 + $0x90] sm:$0xff]
        %v1471 = vld [vmem:[#allocation14 + $0x98] sm:$0xff]
        %v1472 = vld [vmem:[#allocation14 + $0xa0] sm:$0xff]
        %v1473 = vld [vmem:[#allocation14 + $0xa8] sm:$0xff]
        %v1474 = vld [vmem:[#allocation14 + $0xb0] sm:$0xff]
        %v1475 = vld [vmem:[#allocation14 + $0xb8] sm:$0xff]
        %v1476 = vld [vmem:[#allocation14 + $0xc0] sm:$0xff]
        %v1477 = vld [vmem:[#allocation14 + $0xc8] sm:$0xff]
        %v1478 = vld [vmem:[#allocation14 + $0xd0] sm:$0xff]
        %v1479 = vld [vmem:[#allocation14 + $0xd8] sm:$0xff]
        %v1480 = vld [vmem:[#allocation14 + $0xe0] sm:$0xff]
        %v1481 = vld [vmem:[#allocation14 + $0xe8] sm:$0xff]
        %v1482 = vld [vmem:[#allocation14 + $0xf0] sm:$0xff]
        %v1483 = vld [vmem:[#allocation14 + $0xf8] sm:$0xff]
        %v1484 = vld [vmem:[%s11] sm:$0x3]
        %v1486 = vlaneseq
        %v1487 = vshrl.u32 %v1486, 7
        %v1488 = vsub.s32 0, %v1487
        %v1489 = vrot.slane %v1484, %v1488
        %v1490 = vlaneseq
        %v1491 = vshrl.u32 %v1490, 7
        %v1492 = vsub.s32 1, %v1491
        %v1493 = vrot.slane %v1484, %v1492
        %1496 = vmatprep.subr.mxu0 %v1483
        %1497 = vmatpush1.msra.mxu0 %v1482
        %1498 = vmatprep.subr.mxu0 %v1481
        %1499 = vmatpush1.msra.mxu0 %v1480
        %1500 = vmatprep.subr.mxu0 %v1479
        %1501 = vmatpush1.msra.mxu0 %v1478
        %1502 = vmatprep.subr.mxu0 %v1477
        %1503 = vmatpush1.msra.mxu0 %v1476
        %1504 = vmatprep.subr.mxu0 %v1475
        %1505 = vmatpush1.msra.mxu0 %v1474
        %1506 = vmatprep.subr.mxu0 %v1473
        %1507 = vmatpush1.msra.mxu0 %v1472
        %1508 = vmatprep.subr.mxu0 %v1471
        %1509 = vmatpush1.msra.mxu0 %v1470
        %1510 = vmatprep.subr.mxu0 %v1469
        %1511 = vmatpush1.msra.mxu0 %v1468
        %1512 = vmatprep.subr.mxu0 %v1467
        %1513 = vmatpush1.msra.mxu0 %v1466
        %1514 = vmatprep.subr.mxu0 %v1465
        %1515 = vmatpush1.msra.mxu0 %v1464
        %1516 = vmatprep.subr.mxu0 %v1463
        %1517 = vmatpush1.msra.mxu0 %v1462
        %1518 = vmatprep.subr.mxu0 %v1461
        %1519 = vmatpush1.msra.mxu0 %v1460
        %1520 = vmatprep.subr.mxu0 %v1459
        %1521 = vmatpush1.msra.mxu0 %v1458
        %1522 = vmatprep.subr.mxu0 %v1457
        %1523 = vmatpush1.msra.mxu0 %v1456
        %1524 = vmatprep.subr.mxu0 %v1455
        %1525 = vmatpush1.msra.mxu0 %v1454
        %1526 = vmatprep.subr.mxu0 %v1453
        %1527 = vmatpush1.msra.mxu0 %v1452
        %1528 = vmatprep.subr.mxu0 0.0
        %1529 = vmatpush2.msra.mxu0 0.0
        %1530 = vmatprep.subr.mxu0 0.0
        %1531 = vmatpush2.msra.mxu0 0.0
        %1532 = vmatprep.subr.mxu0 0.0
        %1533 = vmatpush2.msra.mxu0 0.0
        %1534 = vmatprep.subr.mxu0 0.0
        %1535 = vmatpush2.msra.mxu0 0.0
        %1536 = vmatprep.subr.mxu0 0.0
        %1537 = vmatpush2.msra.mxu0 0.0
        %1538 = vmatprep.subr.mxu0 0.0
        %1539 = vmatpush2.msra.mxu0 0.0
        %1540 = vmatprep.subr.mxu0 0.0
        %1541 = vmatpush2.msra.mxu0 0.0
        %1542 = vmatprep.subr.mxu0 0.0
        %1543 = vmatpush2.msra.mxu0 0.0
        %1544 = vmatprep.subr.mxu0 0.0
        %1545 = vmatpush2.msra.mxu0 0.0
        %1546 = vmatprep.subr.mxu0 0.0
        %1547 = vmatpush2.msra.mxu0 0.0
        %1548 = vmatprep.subr.mxu0 0.0
        %1549 = vmatpush2.msra.mxu0 0.0
        %1550 = vmatprep.subr.mxu0 0.0
        %1551 = vmatpush2.msra.mxu0 0.0
        %1552 = vmatprep.subr.mxu0 0.0
        %1553 = vmatpush2.msra.mxu0 0.0
        %1554 = vmatprep.subr.mxu0 0.0
        %1555 = vmatpush2.msra.mxu0 0.0
        %1556 = vmatprep.subr.mxu0 0.0
        %1557 = vmatpush2.msra.mxu0 0.0
        %1558 = vmatprep.subr.mxu0 0.0
        %1559 = vmatpush2.msra.mxu0 0.0
        %1560 = vmatprep.mubr.f32.mxu0 0.0
        %1561 = vmatmul.mubr.f32.gmra.mxu0 %v1451
        %v1562 = vpop.f32.mrf.mxu0
        %v1563 = vadd.f32 %v1489, %v1562
        %v1564 = vpop.f32.mrf.mxu0
        %v1565 = vadd.f32 %v1493, %v1564
        %1566 = vdwg.mxu0
        %v1567 = vmul.f32 %v1563, 0.5
        %v1568 = vmul.f32 %v1565, 0.5
        %v1569 = vmul.f32 %v1563, 0.70710677
        %v1570 = vmul.f32 %v1565, 0.70710677
        %v1571 = verf.f32.pop %v1569
        %v1572 = verf.f32.pop %v1570
        %v1573 = vadd.f32 %v1571, 1.0
        %v1574 = vadd.f32 %v1572, 1.0
        %v1575 = vmul.f32 %v1567, %v1573
        %v1576 = vmul.f32 %v1568, %v1574
        %v1577 = vld [vmem:[#allocation16] sm:$0xff]
        %v1578 = vld [vmem:[#allocation16 + $0x8] sm:$0xff]
        %v1579 = vld [vmem:[#allocation16 + $0x10] sm:$0xff]
        %v1580 = vld [vmem:[#allocation16 + $0x18] sm:$0xff]
        %v1581 = vld [vmem:[#allocation16 + $0x20] sm:$0xff]
        %v1582 = vld [vmem:[#allocation16 + $0x28] sm:$0xff]
        %v1583 = vld [vmem:[#allocation16 + $0x30] sm:$0xff]
        %v1584 = vld [vmem:[#allocation16 + $0x38] sm:$0xff]
        %v1585 = vld [vmem:[#allocation16 + $0x40] sm:$0xff]
        %v1586 = vld [vmem:[#allocation16 + $0x48] sm:$0xff]
        %v1587 = vld [vmem:[#allocation16 + $0x50] sm:$0xff]
        %v1588 = vld [vmem:[#allocation16 + $0x58] sm:$0xff]
        %v1589 = vld [vmem:[#allocation16 + $0x60] sm:$0xff]
        %v1590 = vld [vmem:[#allocation16 + $0x68] sm:$0xff]
        %v1591 = vld [vmem:[#allocation16 + $0x70] sm:$0xff]
        %v1592 = vld [vmem:[#allocation16 + $0x78] sm:$0xff]
        %v1593 = vld [vmem:[#allocation16 + $0x80] sm:$0xff]
        %v1594 = vld [vmem:[#allocation16 + $0x88] sm:$0xff]
        %v1595 = vld [vmem:[#allocation16 + $0x90] sm:$0xff]
        %v1596 = vld [vmem:[#allocation16 + $0x98] sm:$0xff]
        %v1597 = vld [vmem:[#allocation16 + $0xa0] sm:$0xff]
        %v1598 = vld [vmem:[#allocation16 + $0xa8] sm:$0xff]
        %v1599 = vld [vmem:[#allocation16 + $0xb0] sm:$0xff]
        %v1600 = vld [vmem:[#allocation16 + $0xb8] sm:$0xff]
        %v1601 = vld [vmem:[#allocation16 + $0xc0] sm:$0xff]
        %v1602 = vld [vmem:[#allocation16 + $0xc8] sm:$0xff]
        %v1603 = vld [vmem:[#allocation16 + $0xd0] sm:$0xff]
        %v1604 = vld [vmem:[#allocation16 + $0xd8] sm:$0xff]
        %v1605 = vld [vmem:[#allocation16 + $0xe0] sm:$0xff]
        %v1606 = vld [vmem:[#allocation16 + $0xe8] sm:$0xff]
        %v1607 = vld [vmem:[#allocation16 + $0xf0] sm:$0xff]
        %v1608 = vld [vmem:[#allocation16 + $0xf8] sm:$0xff]
        %v1609 = vld [vmem:[%s13] sm:$0x1]
        %v1611 = vlaneseq
        %v1612 = vshrl.u32 %v1611, 7
        %v1613 = vsub.s32 0, %v1612
        %v1614 = vrot.slane %v1609, %v1613
        %1616 = vmatprep.subr.mxu0 0.0
        %1617 = vmatpush1.msra.mxu0 %v1592
        %1618 = vmatprep.subr.mxu0 0.0
        %1619 = vmatpush1.msra.mxu0 %v1591
        %1620 = vmatprep.subr.mxu0 0.0
        %1621 = vmatpush1.msra.mxu0 %v1590
        %1622 = vmatprep.subr.mxu0 0.0
        %1623 = vmatpush1.msra.mxu0 %v1589
        %1624 = vmatprep.subr.mxu0 0.0
        %1625 = vmatpush1.msra.mxu0 %v1588
        %1626 = vmatprep.subr.mxu0 0.0
        %1627 = vmatpush1.msra.mxu0 %v1587
        %1628 = vmatprep.subr.mxu0 0.0
        %1629 = vmatpush1.msra.mxu0 %v1586
        %1630 = vmatprep.subr.mxu0 0.0
        %1631 = vmatpush1.msra.mxu0 %v1585
        %1632 = vmatprep.subr.mxu0 0.0
        %1633 = vmatpush1.msra.mxu0 %v1584
        %1634 = vmatprep.subr.mxu0 0.0
        %1635 = vmatpush1.msra.mxu0 %v1583
        %1636 = vmatprep.subr.mxu0 0.0
        %1637 = vmatpush1.msra.mxu0 %v1582
        %1638 = vmatprep.subr.mxu0 0.0
        %1639 = vmatpush1.msra.mxu0 %v1581
        %1640 = vmatprep.subr.mxu0 0.0
        %1641 = vmatpush1.msra.mxu0 %v1580
        %1642 = vmatprep.subr.mxu0 0.0
        %1643 = vmatpush1.msra.mxu0 %v1579
        %1644 = vmatprep.subr.mxu0 0.0
        %1645 = vmatpush1.msra.mxu0 %v1578
        %1646 = vmatprep.subr.mxu0 0.0
        %1647 = vmatpush1.msra.mxu0 %v1577
        %1648 = vmatprep.subr.mxu0 0.0
        %1649 = vmatpush2.msra.mxu0 %v1608
        %1650 = vmatprep.subr.mxu0 0.0
        %1651 = vmatpush2.msra.mxu0 %v1607
        %1652 = vmatprep.subr.mxu0 0.0
        %1653 = vmatpush2.msra.mxu0 %v1606
        %1654 = vmatprep.subr.mxu0 0.0
        %1655 = vmatpush2.msra.mxu0 %v1605
        %1656 = vmatprep.subr.mxu0 0.0
        %1657 = vmatpush2.msra.mxu0 %v1604
        %1658 = vmatprep.subr.mxu0 0.0
        %1659 = vmatpush2.msra.mxu0 %v1603
        %1660 = vmatprep.subr.mxu0 0.0
        %1661 = vmatpush2.msra.mxu0 %v1602
        %1662 = vmatprep.subr.mxu0 0.0
        %1663 = vmatpush2.msra.mxu0 %v1601
        %1664 = vmatprep.subr.mxu0 0.0
        %1665 = vmatpush2.msra.mxu0 %v1600
        %1666 = vmatprep.subr.mxu0 0.0
        %1667 = vmatpush2.msra.mxu0 %v1599
        %1668 = vmatprep.subr.mxu0 0.0
        %1669 = vmatpush2.msra.mxu0 %v1598
        %1670 = vmatprep.subr.mxu0 0.0
        %1671 = vmatpush2.msra.mxu0 %v1597
        %1672 = vmatprep.subr.mxu0 0.0
        %1673 = vmatpush2.msra.mxu0 %v1596
        %1674 = vmatprep.subr.mxu0 0.0
        %1675 = vmatpush2.msra.mxu0 %v1595
        %1676 = vmatprep.subr.mxu0 0.0
        %1677 = vmatpush2.msra.mxu0 %v1594
        %1678 = vmatprep.subr.mxu0 0.0
        %1679 = vmatpush2.msra.mxu0 %v1593
        %1680 = vmatprep.mubr.f32.mxu0 %v1576
        %1681 = vmatmul.mubr.f32.gmra.mxu0 %v1575
        %v1682 = vpop.f32.mrf.mxu0
        %v1683 = vadd.f32 %v1614, %v1682
        %v1684 = vpop.f32.mrf.mxu0
        %1685 = vdwg.mxu0
        %v1686 = vadd.f32 %v1423, %v1683
        %1687 = vst [vmem:[%s612] sm:$0xff] %v1686
        %s1688 = sand.u32 %s364, 1
        %s1689 = scalar_lea.sflag [#allocation7], %s1688
        %s1690 = sand.u32 %s364, 1
        %s1691 = smul.addr %s1690, 8
        %s1692 = scalar_lea.vmem [#allocation17], %s1691
        // Predicated region
        $region109: #{tpu_custom_call.1} parent=75 // pred_check
          %p1693 = pneg %p374
        $region110: #{tpu_custom_call.1} parent=75 // pred_check_branch
          %1695 = sbr.rel (%p1693) target = $region112
        $region111: #{tpu_custom_call.1} parent=75 // pred_region
          %s1697 = ssub.s32 128, 128
          %1698 = vsyncadd %s1689, %s1697
          %s1699 = smul.addr %s40, 2
          %s1700 = sadd.s32 %s41, %s1699
          %s1701 = smul.addr %s1700, 128
          %s1702 = scalar_lea.hbm %s14, %s1701
          %s1704 = sshll.u32 %s1692, 4
          %s1705 = int_to_ptr.vmem [resolvable:$true] %s1704
          %1707 = dma.vmem_to_hbm [thread:$0]  %s1705, 128, %s1702, %s1689
        $region112: #{tpu_custom_call.1} parent=75 // pred_fallthru
          _
      $region76: #{tpu_custom_call.1} parent=5 // pred_fallthru
        _
      %p1708 = scmp.le.s32.totalorder 2, %s31
      // Predicated region
      $region113: #{tpu_custom_call.1} parent=5 // pred_check
        %p1709 = pneg %p1708
      $region114: #{tpu_custom_call.1} parent=5 // pred_check_branch
        %1711 = sbr.rel (%p1709) target = $region116
      $region115: #{tpu_custom_call.1} parent=5 // pred_region
        %s1712 = ssub.s32 %s31, 2
        // Predicated region
        $region117: #{tpu_custom_call.1} parent=115 // pred_check
          %p1713 = pneg %p380
        $region118: #{tpu_custom_call.1} parent=115 // pred_check_branch
          %1715 = sbr.rel (%p1713) target = $region120
        $region119: #{tpu_custom_call.1} parent=115 // pred_region
          %s1716 = sand.u32 %s365, 1
          %s1717 = scalar_lea.sflag [#allocation7], %s1716
          %s1718 = sand.u32 %s365, 1
          %s1719 = smul.addr %s1718, 8
          %s1720 = scalar_lea.vmem [#allocation17], %s1719
          %1721 = dma.done %s1717, 128
        $region120: #{tpu_custom_call.1} parent=115 // pred_fallthru
          _
      $region116: #{tpu_custom_call.1} parent=5 // pred_fallthru
        _
    $region6: #{tpu_custom_call.1} parent=1 // loop_footer
      %s35 = sadd.s32 1, %s31
    $region7: #{tpu_custom_call.1} parent=1 // loop_footer_branch
      %30 = sbr.rel target = $region3
    $region8: #{tpu_custom_call.1} parent=1 // loop_exit
      _
    %1722 = vsyncpa [#allocation6], 1
    %s1723 = scalar_lea.sflag [#allocation6], 1
    %1724 = vsyncpa %s1723, 1
    %1725 = vsyncpa [#allocation9], 1
    %s1726 = scalar_lea.sflag [#allocation9], 1
    %1727 = vsyncpa %s1726, 1
    %1728 = vsyncpa [#allocation12], 1
    %1729 = vsyncpa [#allocation15], 1
    %1730 = vsyncpa [#allocation7], 1
    %s1731 = scalar_lea.sflag [#allocation7], 1
    %1732 = vsyncpa %s1731, 1

// kernel: tpu_custom_call.1
$region0: #{tpu_custom_call.1}
  #allocation0 [shape = 'u32[]', space=smem, size = 0x4, offset = 0x4, fixed_abs, tag = 'smem constant byte address 0x4 - core index']
  #allocation1 [shape = 'u32[144,128]{1,0:T(1,128)}', space=vmem, size = 0x12000, scoped, tag = 'internal scratch']
  #allocation2 [shape = 'f32[16,128]{1,0:T(8,128)}', space=vmem, size = 0x2000, scoped, tag = 'scratch operand']
  #allocation3 [shape = 'f32[16,256]{1,0:T(8,128)}', space=vmem, size = 0x4000, scoped, tag = 'scratch operand']
  #allocation4 [shape = 'f32[16,256]{1,0:T(8,128)}', space=vmem, size = 0x4000, scoped, tag = 'scratch operand']
  %s0 = inlined_call_operand.hbm [shape: f32[2,16,128], index: 0, kind: input, shape index: {}]
  %s1 = inlined_call_operand.hbm [shape: f32[2,16,128], index: 1, kind: input, shape index: {}]
  %s2 = inlined_call_operand.vmem [shape: f32[1,128], index: 2, kind: input, shape index: {}]
  %s3 = inlined_call_operand.vmem [shape: f32[1,128], index: 3, kind: input, shape index: {}]
  %s4 = inlined_call_operand.hbm [shape: f32[128,256], index: 4, kind: input, shape index: {}]
  %s5 = inlined_call_operand.hbm [shape: f32[128,512], index: 5, kind: input, shape index: {}]
  %s6 = inlined_call_operand.hbm [shape: f32[256,128], index: 6, kind: input, shape index: {}]
  %s7 = inlined_call_operand.vmem [shape: f32[1,128], index: 7, kind: input, shape index: {}]
  %s8 = inlined_call_operand.vmem [shape: f32[1,128], index: 8, kind: input, shape index: {}]
  %s9 = inlined_call_operand.vmem [shape: f32[1,128], index: 9, kind: input, shape index: {}]
  %s10 = inlined_call_operand.hbm [shape: f32[128,256], index: 10, kind: input, shape index: {}]
  %s11 = inlined_call_operand.vmem [shape: f32[1,256], index: 11, kind: input, shape index: {}]
  %s12 = inlined_call_operand.hbm [shape: f32[256,128], index: 12, kind: input, shape index: {}]
  %s13 = inlined_call_operand.vmem [shape: f32[1,128], index: 13, kind: input, shape index: {}]
  %s14 = inlined_call_operand.hbm [shape: f32[2,16,128], index: 14, kind: output, shape index: {}]
  %s15 = sld [smem:[#allocation0]]
  $region121: #{tpu_custom_call.1} parent=0
    _
  %s17 = ssub.s32 1, %s15
  %s18 = scalar_select 0, %s17, %s15
  $region1: #{tpu_custom_call.1} parent=0
    #allocation5 [shape = 'u8[16384]{0}', space=vmem, size = 0x4000, scoped, tag = 'input window, operand 0']
    #allocation6 [shape = 's32[2]{0}', space=sflag, size = 0x8, scoped, tag = 'scoped memory for tpu_custom_call.1']
    #allocation7 [shape = 's32[2]{0}', space=sflag, size = 0x8, scoped, tag = 'scoped memory for tpu_custom_call.1']
    #allocation8 [shape = 'u8[8192]{0}', space=vmem, size = 0x2000, scoped, tag = 'input window, operand 1']
    #allocation9 [shape = 's32[2]{0}', space=sflag, size = 0x8, scoped, tag = 'scoped memory for tpu_custom_call.1']
    #allocation10 [shape = 'u8[131072]{0}', space=vmem, size = 0x20000, scoped, tag = 'input window, operand 4, single buffered']
    #allocation11 [shape = 'u8[262144]{0}', space=vmem, size = 0x40000, scoped, tag = 'input window, operand 5, single buffered']
    #allocation12 [shape = 's32[1]{0}', space=sflag, size = 0x4, scoped, tag = 'scoped memory for tpu_custom_call.1']
    #allocation13 [shape = 'u8[131072]{0}', space=vmem, size = 0x20000, scoped, tag = 'input window, operand 6, single buffered']
    #allocation14 [shape = 'u8[131072]{0}', space=vmem, size = 0x20000, scoped, tag = 'input window, operand 10, single buffered']
    #allocation15 [shape = 's32[1]{0}', space=sflag, size = 0x4, scoped, tag = 'scoped memory for tpu_custom_call.1']
    #allocation16 [shape = 'u8[131072]{0}', space=vmem, size = 0x20000, scoped, tag = 'input window, operand 12, single buffered']
    #allocation17 [shape = 'u8[8192]{0}', space=vmem, size = 0x2000, scoped, tag = 'output window, operand 0']
    %19 = vsyncpa [#allocation6], 0
    %s20 = scalar_lea.sflag [#allocation6], 1
    %21 = vsyncpa %s20, 0
    %22 = vsyncpa [#allocation9], 0
    %s23 = scalar_lea.sflag [#allocation9], 1
    %24 = vsyncpa %s23, 0
    %25 = vsyncpa [#allocation12], 0
    %26 = vsyncpa [#allocation15], 0
    %27 = vsyncpa [#allocation7], 0
    %s28 = scalar_lea.sflag [#allocation7], 1
    %29 = vsyncpa %s28, 0
    loop: start=0, step=1, limit=6
    $region2: #{tpu_custom_call.1} parent=1 // loop_pre_header
      _
    $region3: #{tpu_custom_call.1} parent=1 // loop_header
      %s31 = sphi 0, %s35
      %p32 = scmp.ge.s32.totalorder %s31, 6
      %s38 = sphi 0, %s50
      %s39 = sphi 0, %s46
      %s40 = sphi 0, %s38
      %s41 = sphi 0, %s39
      %s42 = sphi 0, %s40
      %s43 = sphi 0, %s41
      %s53 = sphi 0, %s55
      %s56 = sphi 0, %s53
      %s57 = sphi 0, %s56
      %s73 = sphi 0, %s57
      %s81 = sphi 0, %s83
      %s84 = sphi 0, %s81
      %s85 = sphi 0, %s84
      %s101 = sphi 0, %s85
      %s105 = sphi 0, %s105
      %s107 = sphi 0, %s105
      %s108 = sphi 0, %s107
      %s122 = sphi 0, %s108
      %s126 = sphi 0, %s126
      %s128 = sphi 0, %s126
      %s129 = sphi 0, %s128
      %s143 = sphi 0, %s129
      %s147 = sphi 0, %s147
      %s149 = sphi 0, %s147
      %s150 = sphi 0, %s149
      %s164 = sphi 0, %s150
      %s168 = sphi 0, %s168
      %s170 = sphi 0, %s168
      %s171 = sphi 0, %s170
      %s185 = sphi 0, %s171
      %s189 = sphi 0, %s189
      %s191 = sphi 0, %s189
      %s192 = sphi 0, %s191
      %s206 = sphi 0, %s192
      %s210 = sphi 0, %s210
      %s212 = sphi 0, %s210
      %s213 = sphi 0, %s212
      %s227 = sphi 0, %s213
      %s231 = sphi 0, %s231
      %s233 = sphi 0, %s231
      %s234 = sphi 0, %s233
      %s248 = sphi 0, %s234
      %s252 = sphi 0, %s252
      %s254 = sphi 0, %s252
      %s255 = sphi 0, %s254
      %s269 = sphi 0, %s255
      %s273 = sphi 0, %s273
      %s275 = sphi 0, %s273
      %s276 = sphi 0, %s275
      %s290 = sphi 0, %s276
      %s294 = sphi 0, %s294
      %s296 = sphi 0, %s294
      %s297 = sphi 0, %s296
      %s311 = sphi 0, %s297
      %s315 = sphi 0, %s315
      %s317 = sphi 0, %s315
      %s318 = sphi 0, %s317
      %s332 = sphi 0, %s318
      %s336 = sphi 0, %s336
      %s338 = sphi 0, %s336
      %s339 = sphi 0, %s338
      %s353 = sphi 0, %s339
      %s361 = sphi 0, %s363
      %s364 = sphi 0, %s361
      %s365 = sphi 0, %s364
      %s381 = sphi 0, %s365
    $region4: #{tpu_custom_call.1} parent=1 // loop_header_branch
      %34 = sbr.rel (%p32) target = $region8
    $region5: #{tpu_custom_call.1} parent=1 // loop_body
      %s36 = ssub.s32 %s31, 1
      %s37 = ssub.s32 %s31, 2
      %s44 = sadd.s32 1, %s39
      %p45 = scmp.ge.s32.totalorder %s44, 2
      %s46 = scalar_select %p45, 0, %s44
      %s47 = sadd.s32 1, %s38
      %s48 = scalar_select %p45, %s47, %s38
      %p49 = scmp.ge.s32.totalorder %s48, 2
      %s50 = scalar_select %p49, 0, %s48
      %s51 = ssub.s32 %s38, %s50
      %p52 = scmp.eq.s32.totalorder %s51, 0
      %s54 = sadd.s32 %s53, 1
      %s55 = scalar_select %p52, %s53, %s54
      %p58 = pneg %p52
      %p59 = scmp.eq.s32.totalorder %s31, 3
      %p60 = por %p58, %p59
      %p61 = scmp.ne.s32.totalorder %s53, %s56
      %p62 = scmp.eq.s32.totalorder %s31, 0
      %p63 = por %p61, %p62
      %p64 = scmp.ne.s32.totalorder %s53, %s56
      %p65 = scmp.eq.s32.totalorder %s36, 3
      %p66 = por %p64, %p65
      %p67 = scmp.ne.s32.totalorder %s56, %s57
      %p68 = scmp.eq.s32.totalorder %s36, 0
      %p69 = por %p67, %p68
      %p70 = scmp.ne.s32.totalorder %s56, %s57
      %p71 = scmp.eq.s32.totalorder %s37, 3
      %p72 = por %p70, %p71
      %p74 = scmp.ne.s32.totalorder %s57, %s73
      %p75 = scmp.eq.s32.totalorder %s37, 0
      %p76 = por %p74, %p75
      %s77 = ssub.s32 %s38, %s50
      %s78 = ssub.s32 %s39, %s46
      %s79 = sor.u32 %s77, %s78
      %p80 = scmp.eq.s32.totalorder %s79, 0
      %s82 = sadd.s32 %s81, 1
      %s83 = scalar_select %p80, %s81, %s82
      %p86 = pneg %p80
      %p87 = scmp.eq.s32.totalorder %s31, 3
      %p88 = por %p86, %p87
      %p89 = scmp.ne.s32.totalorder %s81, %s84
      %p90 = scmp.eq.s32.totalorder %s31, 0
      %p91 = por %p89, %p90
      %p92 = scmp.ne.s32.totalorder %s81, %s84
      %p93 = scmp.eq.s32.totalorder %s36, 3
      %p94 = por %p92, %p93
      %p95 = scmp.ne.s32.totalorder %s84, %s85
      %p96 = scmp.eq.s32.totalorder %s36, 0
      %p97 = por %p95, %p96
      %p98 = scmp.ne.s32.totalorder %s84, %s85
      %p99 = scmp.eq.s32.totalorder %s37, 3
      %p100 = por %p98, %p99
      %p102 = scmp.ne.s32.totalorder %s85, %s101
      %p103 = scmp.eq.s32.totalorder %s37, 0
      %p104 = por %p102, %p103
      %s106 = sadd.s32 %s105, 1
      %p109 = scmp.eq.s32.totalorder %s31, 3
      %p110 = scmp.ne.s32.totalorder %s105, %s107
      %p111 = scmp.eq.s32.totalorder %s31, 0
      %p112 = por %p110, %p111
      %p113 = scmp.ne.s32.totalorder %s105, %s107
      %p114 = scmp.eq.s32.totalorder %s36, 3
      %p115 = por %p113, %p114
      %p116 = scmp.ne.s32.totalorder %s107, %s108
      %p117 = scmp.eq.s32.totalorder %s36, 0
      %p118 = por %p116, %p117
      %p119 = scmp.ne.s32.totalorder %s107, %s108
      %p120 = scmp.eq.s32.totalorder %s37, 3
      %p121 = por %p119, %p120
      %p123 = scmp.ne.s32.totalorder %s108, %s122
      %p124 = scmp.eq.s32.totalorder %s37, 0
      %p125 = por %p123, %p124
      %s127 = sadd.s32 %s126, 1
      %p130 = scmp.eq.s32.totalorder %s31, 3
      %p131 = scmp.ne.s32.totalorder %s126, %s128
      %p132 = scmp.eq.s32.totalorder %s31, 0
      %p133 = por %p131, %p132
      %p134 = scmp.ne.s32.totalorder %s126, %s128
      %p135 = scmp.eq.s32.totalorder %s36, 3
      %p136 = por %p134, %p135
      %p137 = scmp.ne.s32.totalorder %s128, %s129
      %p138 = scmp.eq.s32.totalorder %s36, 0
      %p139 = por %p137, %p138
      %p140 = scmp.ne.s32.totalorder %s128, %s129
      %p141 = scmp.eq.s32.totalorder %s37, 3
      %p142 = por %p140, %p141
      %p144 = scmp.ne.s32.totalorder %s129, %s143
      %p145 = scmp.eq.s32.totalorder %s37, 0
      %p146 = por %p144, %p145
      %s148 = sadd.s32 %s147, 1
      %p151 = scmp.eq.s32.totalorder %s31, 3
      %p152 = scmp.ne.s32.totalorder %s147, %s149
      %p153 = scmp.eq.s32.totalorder %s31, 0
      %p154 = por %p152, %p153
      %p155 = scmp.ne.s32.totalorder %s147, %s149
      %p156 = scmp.eq.s32.totalorder %s36, 3
      %p157 = por %p155, %p156
      %p158 = scmp.ne.s32.totalorder %s149, %s150
      %p159 = scmp.eq.s32.totalorder %s36, 0
      %p160 = por %p158, %p159
      %p161 = scmp.ne.s32.totalorder %s149, %s150
      %p162 = scmp.eq.s32.totalorder %s37, 3
      %p163 = por %p161, %p162
      %p165 = scmp.ne.s32.totalorder %s150, %s164
      %p166 = scmp.eq.s32.totalorder %s37, 0
      %p167 = por %p165, %p166
      %s169 = sadd.s32 %s168, 1
      %p172 = scmp.eq.s32.totalorder %s31, 3
      %p173 = scmp.ne.s32.totalorder %s168, %s170
      %p174 = scmp.eq.s32.totalorder %s31, 0
      %p175 = por %p173, %p174
      %p176 = scmp.ne.s32.totalorder %s168, %s170
      %p177 = scmp.eq.s32.totalorder %s36, 3
      %p178 = por %p176, %p177
      %p179 = scmp.ne.s32.totalorder %s170, %s171
      %p180 = scmp.eq.s32.totalorder %s36, 0
      %p181 = por %p179, %p180
      %p182 = scmp.ne.s32.totalorder %s170, %s171
      %p183 = scmp.eq.s32.totalorder %s37, 3
      %p184 = por %p182, %p183
      %p186 = scmp.ne.s32.totalorder %s171, %s185
      %p187 = scmp.eq.s32.totalorder %s37, 0
      %p188 = por %p186, %p187
      %s190 = sadd.s32 %s189, 1
      %p193 = scmp.eq.s32.totalorder %s31, 3
      %p194 = scmp.ne.s32.totalorder %s189, %s191
      %p195 = scmp.eq.s32.totalorder %s31, 0
      %p196 = por %p194, %p195
      %p197 = scmp.ne.s32.totalorder %s189, %s191
      %p198 = scmp.eq.s32.totalorder %s36, 3
      %p199 = por %p197, %p198
      %p200 = scmp.ne.s32.totalorder %s191, %s192
      %p201 = scmp.eq.s32.totalorder %s36, 0
      %p202 = por %p200, %p201
      %p203 = scmp.ne.s32.totalorder %s191, %s192
      %p204 = scmp.eq.s32.totalorder %s37, 3
      %p205 = por %p203, %p204
      %p207 = scmp.ne.s32.totalorder %s192, %s206
      %p208 = scmp.eq.s32.totalorder %s37, 0
      %p209 = por %p207, %p208
      %s211 = sadd.s32 %s210, 1
      %p214 = scmp.eq.s32.totalorder %s31, 3
      %p215 = scmp.ne.s32.totalorder %s210, %s212
      %p216 = scmp.eq.s32.totalorder %s31, 0
      %p217 = por %p215, %p216
      %p218 = scmp.ne.s32.totalorder %s210, %s212
      %p219 = scmp.eq.s32.totalorder %s36, 3
      %p220 = por %p218, %p219
      %p221 = scmp.ne.s32.totalorder %s212, %s213
      %p222 = scmp.eq.s32.totalorder %s36, 0
      %p223 = por %p221, %p222
      %p224 = scmp.ne.s32.totalorder %s212, %s213
      %p225 = scmp.eq.s32.totalorder %s37, 3
      %p226 = por %p224, %p225
      %p228 = scmp.ne.s32.totalorder %s213, %s227
      %p229 = scmp.eq.s32.totalorder %s37, 0
      %p230 = por %p228, %p229
      %s232 = sadd.s32 %s231, 1
      %p235 = scmp.eq.s32.totalorder %s31, 3
      %p236 = scmp.ne.s32.totalorder %s231, %s233
      %p237 = scmp.eq.s32.totalorder %s31, 0
      %p238 = por %p236, %p237
      %p239 = scmp.ne.s32.totalorder %s231, %s233
      %p240 = scmp.eq.s32.totalorder %s36, 3
      %p241 = por %p239, %p240
      %p242 = scmp.ne.s32.totalorder %s233, %s234
      %p243 = scmp.eq.s32.totalorder %s36, 0
      %p244 = por %p242, %p243
      %p245 = scmp.ne.s32.totalorder %s233, %s234
      %p246 = scmp.eq.s32.totalorder %s37, 3
      %p247 = por %p245, %p246
      %p249 = scmp.ne.s32.totalorder %s234, %s248
      %p250 = scmp.eq.s32.totalorder %s37, 0
      %p251 = por %p249, %p250
      %s253 = sadd.s32 %s252, 1
      %p256 = scmp.eq.s32.totalorder %s31, 3
      %p257 = scmp.ne.s32.totalorder %s252, %s254
      %p258 = scmp.eq.s32.totalorder %s31, 0
      %p259 = por %p257, %p258
      %p260 = scmp.ne.s32.totalorder %s252, %s254
      %p261 = scmp.eq.s32.totalorder %s36, 3
      %p262 = por %p260, %p261
      %p263 = scmp.ne.s32.totalorder %s254, %s255
      %p264 = scmp.eq.s32.totalorder %s36, 0
      %p265 = por %p263, %p264
      %p266 = scmp.ne.s32.totalorder %s254, %s255
      %p267 = scmp.eq.s32.totalorder %s37, 3
      %p268 = por %p266, %p267
      %p270 = scmp.ne.s32.totalorder %s255, %s269
      %p271 = scmp.eq.s32.totalorder %s37, 0
      %p272 = por %p270, %p271
      %s274 = sadd.s32 %s273, 1
      %p277 = scmp.eq.s32.totalorder %s31, 3
      %p278 = scmp.ne.s32.totalorder %s273, %s275
      %p279 = scmp.eq.s32.totalorder %s31, 0
      %p280 = por %p278, %p279
      %p281 = scmp.ne.s32.totalorder %s273, %s275
      %p282 = scmp.eq.s32.totalorder %s36, 3
      %p283 = por %p281, %p282
      %p284 = scmp.ne.s32.totalorder %s275, %s276
      %p285 = scmp.eq.s32.totalorder %s36, 0
      %p286 = por %p284, %p285
      %p287 = scmp.ne.s32.totalorder %s275, %s276
      %p288 = scmp.eq.s32.totalorder %s37, 3
      %p289 = por %p287, %p288
      %p291 = scmp.ne.s32.totalorder %s276, %s290
      %p292 = scmp.eq.s32.totalorder %s37, 0
      %p293 = por %p291, %p292
      %s295 = sadd.s32 %s294, 1
      %p298 = scmp.eq.s32.totalorder %s31, 3
      %p299 = scmp.ne.s32.totalorder %s294, %s296
      %p300 = scmp.eq.s32.totalorder %s31, 0
      %p301 = por %p299, %p300
      %p302 = scmp.ne.s32.totalorder %s294, %s296
      %p303 = scmp.eq.s32.totalorder %s36, 3
      %p304 = por %p302, %p303
      %p305 = scmp.ne.s32.totalorder %s296, %s297
      %p306 = scmp.eq.s32.totalorder %s36, 0
      %p307 = por %p305, %p306
      %p308 = scmp.ne.s32.totalorder %s296, %s297
      %p309 = scmp.eq.s32.totalorder %s37, 3
      %p310 = por %p308, %p309
      %p312 = scmp.ne.s32.totalorder %s297, %s311
      %p313 = scmp.eq.s32.totalorder %s37, 0
      %p314 = por %p312, %p313
      %s316 = sadd.s32 %s315, 1
      %p319 = scmp.eq.s32.totalorder %s31, 3
      %p320 = scmp.ne.s32.totalorder %s315, %s317
      %p321 = scmp.eq.s32.totalorder %s31, 0
      %p322 = por %p320, %p321
      %p323 = scmp.ne.s32.totalorder %s315, %s317
      %p324 = scmp.eq.s32.totalorder %s36, 3
      %p325 = por %p323, %p324
      %p326 = scmp.ne.s32.totalorder %s317, %s318
      %p327 = scmp.eq.s32.totalorder %s36, 0
      %p328 = por %p326, %p327
      %p329 = scmp.ne.s32.totalorder %s317, %s318
      %p330 = scmp.eq.s32.totalorder %s37, 3
      %p331 = por %p329, %p330
      %p333 = scmp.ne.s32.totalorder %s318, %s332
      %p334 = scmp.eq.s32.totalorder %s37, 0
      %p335 = por %p333, %p334
      %s337 = sadd.s32 %s336, 1
      %p340 = scmp.eq.s32.totalorder %s31, 3
      %p341 = scmp.ne.s32.totalorder %s336, %s338
      %p342 = scmp.eq.s32.totalorder %s31, 0
      %p343 = por %p341, %p342
      %p344 = scmp.ne.s32.totalorder %s336, %s338
      %p345 = scmp.eq.s32.totalorder %s36, 3
      %p346 = por %p344, %p345
      %p347 = scmp.ne.s32.totalorder %s338, %s339
      %p348 = scmp.eq.s32.totalorder %s36, 0
      %p349 = por %p347, %p348
      %p350 = scmp.ne.s32.totalorder %s338, %s339
      %p351 = scmp.eq.s32.totalorder %s37, 3
      %p352 = por %p350, %p351
      %p354 = scmp.ne.s32.totalorder %s339, %s353
      %p355 = scmp.eq.s32.totalorder %s37, 0
      %p356 = por %p354, %p355
      %s357 = ssub.s32 %s38, %s50
      %s358 = ssub.s32 %s39, %s46
      %s359 = sor.u32 %s357, %s358
      %p360 = scmp.eq.s32.totalorder %s359, 0
      %s362 = sadd.s32 %s361, 1
      %s363 = scalar_select %p360, %s361, %s362
      %p366 = pneg %p360
      %p367 = scmp.eq.s32.totalorder %s31, 3
      %p368 = por %p366, %p367
      %p369 = scmp.ne.s32.totalorder %s361, %s364
      %p370 = scmp.eq.s32.totalorder %s31, 0
      %p371 = por %p369, %p370
      %p372 = scmp.ne.s32.totalorder %s361, %s364
      %p373 = scmp.eq.s32.totalorder %s36, 3
      %p374 = por %p372, %p373
      %p375 = scmp.ne.s32.totalorder %s364, %s365
      %p376 = scmp.eq.s32.totalorder %s36, 0
      %p377 = por %p375, %p376
      %p378 = scmp.ne.s32.totalorder %s364, %s365
      %p379 = scmp.eq.s32.totalorder %s37, 3
      %p380 = por %p378, %p379
      %p382 = scmp.ne.s32.totalorder %s365, %s381
      %p383 = scmp.eq.s32.totalorder %s37, 0
      %p384 = por %p382, %p383
      %p385 = scmp.le.s32.totalorder 1, %s31
      %p386 = scmp.lt.s32.totalorder %s31, 5
      %p387 = pnand %p385, %p386
      %p388 = pneg %p387
      // Predicated region
      $region9: #{tpu_custom_call.1} parent=5 // pred_check
        _
      $region10: #{tpu_custom_call.1} parent=5 // pred_check_branch
        %390 = sbr.rel (%p387) target = $region12
      $region11: #{tpu_custom_call.1} parent=5 // pred_region
        %s391 = ssub.s32 %s31, 1
        // Predicated region
        $region13: #{tpu_custom_call.1} parent=11 // pred_check
          %p392 = pneg %p118
        $region14: #{tpu_custom_call.1} parent=11 // pred_check_branch
          %394 = sbr.rel (%p392) target = $region16
        $region15: #{tpu_custom_call.1} parent=11 // pred_region
          _
        $region16: #{tpu_custom_call.1} parent=11 // pred_fallthru
          _
        // Predicated region
        $region17: #{tpu_custom_call.1} parent=11 // pred_check
          %p395 = pneg %p139
        $region18: #{tpu_custom_call.1} parent=11 // pred_check_branch
          %397 = sbr.rel (%p395) target = $region20
        $region19: #{tpu_custom_call.1} parent=11 // pred_region
          _
        $region20: #{tpu_custom_call.1} parent=11 // pred_fallthru
          _
        // Predicated region
        $region21: #{tpu_custom_call.1} parent=11 // pred_check
          %p398 = pneg %p160
        $region22: #{tpu_custom_call.1} parent=11 // pred_check_branch
          %400 = sbr.rel (%p398) target = $region24
        $region23: #{tpu_custom_call.1} parent=11 // pred_region
          %s402 = ssub.s32 4096, 4096
          %403 = vsyncadd [#allocation9], %s402
          %s404 = sshll.u32 [#allocation10], 4
          %s405 = int_to_ptr.vmem [resolvable:$true] %s404
          %410 = dma.hbm_to_vmem [thread:$0]  %s4, 4096, %s405, [#allocation9], 256, 256, 16
        $region24: #{tpu_custom_call.1} parent=11 // pred_fallthru
          _
        // Predicated region
        $region25: #{tpu_custom_call.1} parent=11 // pred_check
          %p411 = pneg %p181
        $region26: #{tpu_custom_call.1} parent=11 // pred_check_branch
          %413 = sbr.rel (%p411) target = $region28
        $region27: #{tpu_custom_call.1} parent=11 // pred_region
          %s415 = ssub.s32 8192, 8192
          %416 = vsyncadd [#allocation12], %s415
          %s417 = sshll.u32 [#allocation11], 4
          %s418 = int_to_ptr.vmem [resolvable:$true] %s417
          %423 = dma.hbm_to_vmem [thread:$0]  %s5, 8192, %s418, [#allocation12], 512, 512, 32
        $region28: #{tpu_custom_call.1} parent=11 // pred_fallthru
          _
        // Predicated region
        $region29: #{tpu_custom_call.1} parent=11 // pred_check
          %p424 = pneg %p202
        $region30: #{tpu_custom_call.1} parent=11 // pred_check_branch
          %426 = sbr.rel (%p424) target = $region32
        $region31: #{tpu_custom_call.1} parent=11 // pred_region
          %s428 = ssub.s32 4096, 4096
          %429 = vsyncadd [#allocation12], %s428
          %s430 = sshll.u32 [#allocation13], 4
          %s431 = int_to_ptr.vmem [resolvable:$true] %s430
          %436 = dma.hbm_to_vmem [thread:$0]  %s6, 4096, %s431, [#allocation12], 128, 128, 8
        $region32: #{tpu_custom_call.1} parent=11 // pred_fallthru
          _
        // Predicated region
        $region33: #{tpu_custom_call.1} parent=11 // pred_check
          %p437 = pneg %p223
        $region34: #{tpu_custom_call.1} parent=11 // pred_check_branch
          %439 = sbr.rel (%p437) target = $region36
        $region35: #{tpu_custom_call.1} parent=11 // pred_region
          _
        $region36: #{tpu_custom_call.1} parent=11 // pred_fallthru
          _
        // Predicated region
        $region37: #{tpu_custom_call.1} parent=11 // pred_check
          %p440 = pneg %p244
        $region38: #{tpu_custom_call.1} parent=11 // pred_check_branch
          %442 = sbr.rel (%p440) target = $region40
        $region39: #{tpu_custom_call.1} parent=11 // pred_region
          _
        $region40: #{tpu_custom_call.1} parent=11 // pred_fallthru
          _
        // Predicated region
        $region41: #{tpu_custom_call.1} parent=11 // pred_check
          %p443 = pneg %p265
        $region42: #{tpu_custom_call.1} parent=11 // pred_check_branch
          %445 = sbr.rel (%p443) target = $region44
        $region43: #{tpu_custom_call.1} parent=11 // pred_region
          _
        $region44: #{tpu_custom_call.1} parent=11 // pred_fallthru
          _
        // Predicated region
        $region45: #{tpu_custom_call.1} parent=11 // pred_check
          %p446 = pneg %p286
        $region46: #{tpu_custom_call.1} parent=11 // pred_check_branch
          %448 = sbr.rel (%p446) target = $region48
        $region47: #{tpu_custom_call.1} parent=11 // pred_region
          %s450 = ssub.s32 4096, 4096
          %451 = vsyncadd [#allocation15], %s450
          %s452 = sshll.u32 [#allocation14], 4
          %s453 = int_to_ptr.vmem [resolvable:$true] %s452
          %458 = dma.hbm_to_vmem [thread:$0]  %s10, 4096, %s453, [#allocation15], 256, 256, 16
        $region48: #{tpu_custom_call.1} parent=11 // pred_fallthru
          _
        // Predicated region
        $region49: #{tpu_custom_call.1} parent=11 // pred_check
          %p459 = pneg %p307
        $region50: #{tpu_custom_call.1} parent=11 // pred_check_branch
          %461 = sbr.rel (%p459) target = $region52
        $region51: #{tpu_custom_call.1} parent=11 // pred_region
          _
        $region52: #{tpu_custom_call.1} parent=11 // pred_fallthru
          _
        // Predicated region
        $region53: #{tpu_custom_call.1} parent=11 // pred_check
          %p462 = pneg %p328
        $region54: #{tpu_custom_call.1} parent=11 // pred_check_branch
          %464 = sbr.rel (%p462) target = $region56
        $region55: #{tpu_custom_call.1} parent=11 // pred_region
          %s466 = ssub.s32 4096, 4096
          %467 = vsyncadd [#allocation15], %s466
          %s468 = sshll.u32 [#allocation16], 4
          %s469 = int_to_ptr.vmem [resolvable:$true] %s468
          %474 = dma.hbm_to_vmem [thread:$0]  %s12, 4096, %s469, [#allocation15], 128, 128, 8
        $region56: #{tpu_custom_call.1} parent=11 // pred_fallthru
          _
        // Predicated region
        $region57: #{tpu_custom_call.1} parent=11 // pred_check
          %p475 = pneg %p349
        $region58: #{tpu_custom_call.1} parent=11 // pred_check_branch
          %477 = sbr.rel (%p475) target = $region60
        $region59: #{tpu_custom_call.1} parent=11 // pred_region
          _
        $region60: #{tpu_custom_call.1} parent=11 // pred_fallthru
          _
      $region12: #{tpu_custom_call.1} parent=5 // pred_fallthru
        _
      %p478 = scmp.lt.s32.totalorder %s31, 4
      // Predicated region
      $region61: #{tpu_custom_call.1} parent=5 // pred_check
        %p479 = pneg %p478
      $region62: #{tpu_custom_call.1} parent=5 // pred_check_branch
        %481 = sbr.rel (%p479) target = $region64
      $region63: #{tpu_custom_call.1} parent=5 // pred_region
        // Predicated region
        $region65: #{tpu_custom_call.1} parent=63 // pred_check
          %p482 = pneg %p63
        $region66: #{tpu_custom_call.1} parent=63 // pred_check_branch
          %484 = sbr.rel (%p482) target = $region68
        $region67: #{tpu_custom_call.1} parent=63 // pred_region
          %s485 = sand.u32 %s53, 1
          %s486 = scalar_lea.sflag [#allocation6], %s485
          %s487 = sand.u32 %s53, 1
          %s488 = smul.addr %s487, 16
          %s489 = scalar_lea.vmem [#allocation5], %s488
          %s491 = ssub.s32 256, 256
          %492 = vsyncadd %s486, %s491
          %s493 = smul.addr %s38, 2
          %s494 = smul.addr %s493, 128
          %s495 = scalar_lea.hbm %s0, %s494
          %s496 = sshll.u32 %s489, 4
          %s497 = int_to_ptr.vmem [resolvable:$true] %s496
          %502 = dma.hbm_to_vmem [thread:$0]  %s495, 256, %s497, %s486, 128, 128, 8
        $region68: #{tpu_custom_call.1} parent=63 // pred_fallthru
          _
        // Predicated region
        $region69: #{tpu_custom_call.1} parent=63 // pred_check
          %p503 = pneg %p91
        $region70: #{tpu_custom_call.1} parent=63 // pred_check_branch
          %505 = sbr.rel (%p503) target = $region72
        $region71: #{tpu_custom_call.1} parent=63 // pred_region
          %s506 = sand.u32 %s31, 1
          %s507 = scalar_lea.sflag [#allocation9], %s506
          %s508 = sand.u32 %s81, 1
          %s509 = smul.addr %s508, 8
          %s510 = scalar_lea.vmem [#allocation8], %s509
          %s512 = ssub.s32 128, 128
          %513 = vsyncadd %s507, %s512
          %s514 = smul.addr %s38, 2
          %s515 = sadd.s32 %s39, %s514
          %s516 = smul.addr %s515, 128
          %s517 = scalar_lea.hbm %s1, %s516
          %s519 = sshll.u32 %s510, 4
          %s520 = int_to_ptr.vmem [resolvable:$true] %s519
          %522 = dma.hbm_to_vmem [thread:$0]  %s517, 128, %s520, %s507
        $region72: #{tpu_custom_call.1} parent=63 // pred_fallthru
          _
      $region64: #{tpu_custom_call.1} parent=5 // pred_fallthru
        _
      %p523 = scmp.le.s32.totalorder 1, %s31
      %p524 = scmp.lt.s32.totalorder %s31, 5
      %p525 = pnand %p523, %p524
      %p526 = pneg %p525
      // Predicated region
      $region73: #{tpu_custom_call.1} parent=5 // pred_check
        _
      $region74: #{tpu_custom_call.1} parent=5 // pred_check_branch
        %528 = sbr.rel (%p525) target = $region76
      $region75: #{tpu_custom_call.1} parent=5 // pred_region
        %s529 = ssub.s32 %s31, 1
        %s530 = sand.u32 %s56, 1
        %s531 = scalar_lea.sflag [#allocation6], %s530
        %s532 = sand.u32 %s56, 1
        %s533 = smul.addr %s532, 16
        %s534 = scalar_lea.vmem [#allocation5], %s533
        // Predicated region
        $region77: #{tpu_custom_call.1} parent=75 // pred_check
          %p535 = pneg %p69
        $region78: #{tpu_custom_call.1} parent=75 // pred_check_branch
          %537 = sbr.rel (%p535) target = $region80
        $region79: #{tpu_custom_call.1} parent=75 // pred_region
          %538 = dma.done %s531, 256
        $region80: #{tpu_custom_call.1} parent=75 // pred_fallthru
          _
        %s539 = sand.u32 %s36, 1
        %s540 = scalar_lea.sflag [#allocation9], %s539
        %s541 = sand.u32 %s84, 1
        %s542 = smul.addr %s541, 8
        %s543 = scalar_lea.vmem [#allocation8], %s542
        // Predicated region
        $region81: #{tpu_custom_call.1} parent=75 // pred_check
          %p544 = pneg %p97
        $region82: #{tpu_custom_call.1} parent=75 // pred_check_branch
          %546 = sbr.rel (%p544) target = $region84
        $region83: #{tpu_custom_call.1} parent=75 // pred_region
          %547 = dma.done %s540, 128
        $region84: #{tpu_custom_call.1} parent=75 // pred_fallthru
          _
        // Predicated region
        $region85: #{tpu_custom_call.1} parent=75 // pred_check
          %p548 = pneg %p160
        $region86: #{tpu_custom_call.1} parent=75 // pred_check_branch
          %550 = sbr.rel (%p548) target = $region88
        $region87: #{tpu_custom_call.1} parent=75 // pred_region
          %551 = dma.done [#allocation9], 4096
        $region88: #{tpu_custom_call.1} parent=75 // pred_fallthru
          _
        // Predicated region
        $region89: #{tpu_custom_call.1} parent=75 // pred_check
          %p552 = pneg %p181
        $region90: #{tpu_custom_call.1} parent=75 // pred_check_branch
          %554 = sbr.rel (%p552) target = $region92
        $region91: #{tpu_custom_call.1} parent=75 // pred_region
          %555 = dma.done [#allocation12], 8192
        $region92: #{tpu_custom_call.1} parent=75 // pred_fallthru
          _
        // Predicated region
        $region93: #{tpu_custom_call.1} parent=75 // pred_check
          %p556 = pneg %p202
        $region94: #{tpu_custom_call.1} parent=75 // pred_check_branch
          %558 = sbr.rel (%p556) target = $region96
        $region95: #{tpu_custom_call.1} parent=75 // pred_region
          %559 = dma.done [#allocation12], 4096
        $region96: #{tpu_custom_call.1} parent=75 // pred_fallthru
          _
        // Predicated region
        $region97: #{tpu_custom_call.1} parent=75 // pred_check
          %p560 = pneg %p286
        $region98: #{tpu_custom_call.1} parent=75 // pred_check_branch
          %562 = sbr.rel (%p560) target = $region100
        $region99: #{tpu_custom_call.1} parent=75 // pred_region
          %563 = dma.done [#allocation15], 4096
        $region100: #{tpu_custom_call.1} parent=75 // pred_fallthru
          _
        // Predicated region
        $region101: #{tpu_custom_call.1} parent=75 // pred_check
          %p564 = pneg %p328
        $region102: #{tpu_custom_call.1} parent=75 // pred_check_branch
          %566 = sbr.rel (%p564) target = $region104
        $region103: #{tpu_custom_call.1} parent=75 // pred_region
          %567 = dma.done [#allocation15], 4096
        $region104: #{tpu_custom_call.1} parent=75 // pred_fallthru
          _
        %s568 = sand.u32 %s56, 1
        %s569 = scalar_lea.sflag [#allocation6], %s568
        %s570 = sand.u32 %s56, 1
        %s571 = smul.addr %s570, 16
        %s572 = scalar_lea.vmem [#allocation5], %s571
        %p573 = pneg %p69
        %p574 = pneg %p66
        %s575 = sand.u32 %s36, 1
        %s576 = scalar_lea.sflag [#allocation9], %s575
        %s577 = sand.u32 %s84, 1
        %s578 = smul.addr %s577, 8
        %s579 = scalar_lea.vmem [#allocation8], %s578
        %p580 = pneg %p97
        %p581 = pneg %p94
        %p582 = pneg %p118
        %p583 = pneg %p115
        %p584 = pneg %p139
        %p585 = pneg %p136
        %p586 = pneg %p160
        %p587 = pneg %p157
        %p588 = pneg %p181
        %p589 = pneg %p178
        %p590 = pneg %p202
        %p591 = pneg %p199
        %p592 = pneg %p223
        %p593 = pneg %p220
        %p594 = pneg %p244
        %p595 = pneg %p241
        %p596 = pneg %p265
        %p597 = pneg %p262
        %p598 = pneg %p286
        %p599 = pneg %p283
        %p600 = pneg %p307
        %p601 = pneg %p304
        %p602 = pneg %p328
        %p603 = pneg %p325
        %p604 = pneg %p349
        %p605 = pneg %p346
        %p606 = pneg %p377
        %p607 = pneg %p374
        %s608 = sand.u32 %s364, 1
        %s609 = scalar_lea.sflag [#allocation7], %s608
        %s610 = sand.u32 %s364, 1
        %s611 = smul.addr %s610, 8
        %s612 = scalar_lea.vmem [#allocation17], %s611
        %p613 = scmp.eq.s32.totalorder %s41, 0
        // Predicated region
        $region105: #{tpu_custom_call.1} parent=75 // pred_check
          %p614 = pneg %p613
        $region106: #{tpu_custom_call.1} parent=75 // pred_check_branch
          %616 = sbr.rel (%p614) target = $region108
        $region107: #{tpu_custom_call.1} parent=75 // pred_region
          %v617 = vld [vmem:[%s534] sm:$0xff]
          %v618 = vld [vmem:[%s534 + $0x8] sm:$0xff]
          %v619 = vld [vmem:[%s2] sm:$0x1]
          %v620 = vld [vmem:[%s3] sm:$0x1]
          %621 = vadd.xlane.f32.xlu0 %v617
          %v622 = vpop.xlane.xlu0 %621
          %623 = vadd.xlane.f32.xlu0 %v618
          %v624 = vpop.xlane.xlu0 %623
          %v625 = vrcp.pop 128.0
          %v626 = vmul.f32 %v622, %v625
          %v627 = vmul.f32 %v624, %v625
          %v628 = vsub.f32 %v617, %v626
          %v629 = vsub.f32 %v618, %v627
          %v630 = vmul.f32 %v628, %v628
          %v631 = vmul.f32 %v629, %v629
          %632 = vadd.xlane.f32.xlu0 %v630
          %v633 = vpop.xlane.xlu0 %632
          %634 = vadd.xlane.f32.xlu0 %v631
          %v635 = vpop.xlane.xlu0 %634
          %v636 = vmul.f32 %v633, %v625
          %v637 = vmul.f32 %v635, %v625
          %v638 = vadd.f32 %v636, 1e-05
          %v639 = vadd.f32 %v637, 1e-05
          %v640 = vrsqrt.pop %v638
          %v641 = vrsqrt.pop %v639
          %v642 = vmul.f32 %v628, %v640
          %v643 = vmul.f32 %v629, %v641
          %v645 = vlaneseq
          %v646 = vshrl.u32 %v645, 7
          %v647 = vsub.s32 0, %v646
          %v648 = vrot.slane %v619, %v647
          %v650 = vmul.f32 %v642, %v648
          %v651 = vmul.f32 %v643, %v648
          %v653 = vlaneseq
          %v654 = vshrl.u32 %v653, 7
          %v655 = vsub.s32 0, %v654
          %v656 = vrot.slane %v620, %v655
          %v658 = vadd.f32 %v650, %v656
          %v659 = vadd.f32 %v651, %v656
          %660 = vst [vmem:[#allocation2] sm:$0xff] %v658
          %661 = vst [vmem:[#allocation2 + $0x8] sm:$0xff] %v659
          %v662 = vld [vmem:[#allocation11] sm:$0xff]
          %v663 = vld [vmem:[#allocation11 + $0x8] sm:$0xff]
          %v664 = vld [vmem:[#allocation11 + $0x10] sm:$0xff]
          %v665 = vld [vmem:[#allocation11 + $0x18] sm:$0xff]
          %v666 = vld [vmem:[#allocation11 + $0x20] sm:$0xff]
          %v667 = vld [vmem:[#allocation11 + $0x28] sm:$0xff]
          %v668 = vld [vmem:[#allocation11 + $0x30] sm:$0xff]
          %v669 = vld [vmem:[#allocation11 + $0x38] sm:$0xff]
          %v670 = vld [vmem:[#allocation11 + $0x40] sm:$0xff]
          %v671 = vld [vmem:[#allocation11 + $0x48] sm:$0xff]
          %v672 = vld [vmem:[#allocation11 + $0x50] sm:$0xff]
          %v673 = vld [vmem:[#allocation11 + $0x58] sm:$0xff]
          %v674 = vld [vmem:[#allocation11 + $0x60] sm:$0xff]
          %v675 = vld [vmem:[#allocation11 + $0x68] sm:$0xff]
          %v676 = vld [vmem:[#allocation11 + $0x70] sm:$0xff]
          %v677 = vld [vmem:[#allocation11 + $0x78] sm:$0xff]
          %v678 = vld [vmem:[#allocation11 + $0x80] sm:$0xff]
          %v679 = vld [vmem:[#allocation11 + $0x88] sm:$0xff]
          %v680 = vld [vmem:[#allocation11 + $0x90] sm:$0xff]
          %v681 = vld [vmem:[#allocation11 + $0x98] sm:$0xff]
          %v682 = vld [vmem:[#allocation11 + $0xa0] sm:$0xff]
          %v683 = vld [vmem:[#allocation11 + $0xa8] sm:$0xff]
          %v684 = vld [vmem:[#allocation11 + $0xb0] sm:$0xff]
          %v685 = vld [vmem:[#allocation11 + $0xb8] sm:$0xff]
          %v686 = vld [vmem:[#allocation11 + $0xc0] sm:$0xff]
          %v687 = vld [vmem:[#allocation11 + $0xc8] sm:$0xff]
          %v688 = vld [vmem:[#allocation11 + $0xd0] sm:$0xff]
          %v689 = vld [vmem:[#allocation11 + $0xd8] sm:$0xff]
          %v690 = vld [vmem:[#allocation11 + $0xe0] sm:$0xff]
          %v691 = vld [vmem:[#allocation11 + $0xe8] sm:$0xff]
          %v692 = vld [vmem:[#allocation11 + $0xf0] sm:$0xff]
          %v693 = vld [vmem:[#allocation11 + $0xf8] sm:$0xff]
          %v694 = vld [vmem:[#allocation11 + $0x100] sm:$0xff]
          %v695 = vld [vmem:[#allocation11 + $0x108] sm:$0xff]
          %v696 = vld [vmem:[#allocation11 + $0x110] sm:$0xff]
          %v697 = vld [vmem:[#allocation11 + $0x118] sm:$0xff]
          %v698 = vld [vmem:[#allocation11 + $0x120] sm:$0xff]
          %v699 = vld [vmem:[#allocation11 + $0x128] sm:$0xff]
          %v700 = vld [vmem:[#allocation11 + $0x130] sm:$0xff]
          %v701 = vld [vmem:[#allocation11 + $0x138] sm:$0xff]
          %v702 = vld [vmem:[#allocation11 + $0x140] sm:$0xff]
          %v703 = vld [vmem:[#allocation11 + $0x148] sm:$0xff]
          %v704 = vld [vmem:[#allocation11 + $0x150] sm:$0xff]
          %v705 = vld [vmem:[#allocation11 + $0x158] sm:$0xff]
          %v706 = vld [vmem:[#allocation11 + $0x160] sm:$0xff]
          %v707 = vld [vmem:[#allocation11 + $0x168] sm:$0xff]
          %v708 = vld [vmem:[#allocation11 + $0x170] sm:$0xff]
          %v709 = vld [vmem:[#allocation11 + $0x178] sm:$0xff]
          %v710 = vld [vmem:[#allocation11 + $0x180] sm:$0xff]
          %v711 = vld [vmem:[#allocation11 + $0x188] sm:$0xff]
          %v712 = vld [vmem:[#allocation11 + $0x190] sm:$0xff]
          %v713 = vld [vmem:[#allocation11 + $0x198] sm:$0xff]
          %v714 = vld [vmem:[#allocation11 + $0x1a0] sm:$0xff]
          %v715 = vld [vmem:[#allocation11 + $0x1a8] sm:$0xff]
          %v716 = vld [vmem:[#allocation11 + $0x1b0] sm:$0xff]
          %v717 = vld [vmem:[#allocation11 + $0x1b8] sm:$0xff]
          %v718 = vld [vmem:[#allocation11 + $0x1c0] sm:$0xff]
          %v719 = vld [vmem:[#allocation11 + $0x1c8] sm:$0xff]
          %v720 = vld [vmem:[#allocation11 + $0x1d0] sm:$0xff]
          %v721 = vld [vmem:[#allocation11 + $0x1d8] sm:$0xff]
          %v722 = vld [vmem:[#allocation11 + $0x1e0] sm:$0xff]
          %v723 = vld [vmem:[#allocation11 + $0x1e8] sm:$0xff]
          %v724 = vld [vmem:[#allocation11 + $0x1f0] sm:$0xff]
          %v725 = vld [vmem:[#allocation11 + $0x1f8] sm:$0xff]
          %726 = vmatprep.subr.mxu0 %v723
          %727 = vmatpush1.msra.mxu0 %v722
          %728 = vmatprep.subr.mxu0 %v719
          %729 = vmatpush1.msra.mxu0 %v718
          %730 = vmatprep.subr.mxu0 %v715
          %731 = vmatpush1.msra.mxu0 %v714
          %732 = vmatprep.subr.mxu0 %v711
          %733 = vmatpush1.msra.mxu0 %v710
          %734 = vmatprep.subr.mxu0 %v707
          %735 = vmatpush1.msra.mxu0 %v706
          %736 = vmatprep.subr.mxu0 %v703
          %737 = vmatpush1.msra.mxu0 %v702
          %738 = vmatprep.subr.mxu0 %v699
          %739 = vmatpush1.msra.mxu0 %v698
          %740 = vmatprep.subr.mxu0 %v695
          %741 = vmatpush1.msra.mxu0 %v694
          %742 = vmatprep.subr.mxu0 %v691
          %743 = vmatpush1.msra.mxu0 %v690
          %744 = vmatprep.subr.mxu0 %v687
          %745 = vmatpush1.msra.mxu0 %v686
          %746 = vmatprep.subr.mxu0 %v683
          %747 = vmatpush1.msra.mxu0 %v682
          %748 = vmatprep.subr.mxu0 %v679
          %749 = vmatpush1.msra.mxu0 %v678
          %750 = vmatprep.subr.mxu0 %v675
          %751 = vmatpush1.msra.mxu0 %v674
          %752 = vmatprep.subr.mxu0 %v671
          %753 = vmatpush1.msra.mxu0 %v670
          %754 = vmatprep.subr.mxu0 %v667
          %755 = vmatpush1.msra.mxu0 %v666
          %756 = vmatprep.subr.mxu0 %v663
          %757 = vmatpush1.msra.mxu0 %v662
          %758 = vmatprep.subr.mxu0 0.0
          %759 = vmatpush2.msra.mxu0 0.0
          %760 = vmatprep.subr.mxu0 0.0
          %761 = vmatpush2.msra.mxu0 0.0
          %762 = vmatprep.subr.mxu0 0.0
          %763 = vmatpush2.msra.mxu0 0.0
          %764 = vmatprep.subr.mxu0 0.0
          %765 = vmatpush2.msra.mxu0 0.0
          %766 = vmatprep.subr.mxu0 0.0
          %767 = vmatpush2.msra.mxu0 0.0
          %768 = vmatprep.subr.mxu0 0.0
          %769 = vmatpush2.msra.mxu0 0.0
          %770 = vmatprep.subr.mxu0 0.0
          %771 = vmatpush2.msra.mxu0 0.0
          %772 = vmatprep.subr.mxu0 0.0
          %773 = vmatpush2.msra.mxu0 0.0
          %774 = vmatprep.subr.mxu0 0.0
          %775 = vmatpush2.msra.mxu0 0.0
          %776 = vmatprep.subr.mxu0 0.0
          %777 = vmatpush2.msra.mxu0 0.0
          %778 = vmatprep.subr.mxu0 0.0
          %779 = vmatpush2.msra.mxu0 0.0
          %780 = vmatprep.subr.mxu0 0.0
          %781 = vmatpush2.msra.mxu0 0.0
          %782 = vmatprep.subr.mxu0 0.0
          %783 = vmatpush2.msra.mxu0 0.0
          %784 = vmatprep.subr.mxu0 0.0
          %785 = vmatpush2.msra.mxu0 0.0
          %786 = vmatprep.subr.mxu0 0.0
          %787 = vmatpush2.msra.mxu0 0.0
          %788 = vmatprep.subr.mxu0 0.0
          %789 = vmatpush2.msra.mxu0 0.0
          %790 = vmatprep.mubr.f32.mxu0 0.0
          %791 = vmatmul.mubr.f32.gmra.mxu0 %v658
          %v792 = vpop.f32.mrf.mxu0
          %v793 = vadd.f32 0.0, %v792
          %v794 = vpop.f32.mrf.mxu0
          %v795 = vadd.f32 0.0, %v794
          %796 = vmatprep.mubr.f32.mxu0 0.0
          %797 = vmatmul.mubr.f32.gmra.mxu0 %v659
          %v798 = vpop.f32.mrf.mxu0
          %v799 = vadd.f32 0.0, %v798
          %v800 = vpop.f32.mrf.mxu0
          %v801 = vadd.f32 0.0, %v800
          %802 = vdwg.mxu0
          %803 = vmatprep.subr.mxu0 %v725
          %804 = vmatpush1.msra.mxu0 %v724
          %805 = vmatprep.subr.mxu0 %v721
          %806 = vmatpush1.msra.mxu0 %v720
          %807 = vmatprep.subr.mxu0 %v717
          %808 = vmatpush1.msra.mxu0 %v716
          %809 = vmatprep.subr.mxu0 %v713
          %810 = vmatpush1.msra.mxu0 %v712
          %811 = vmatprep.subr.mxu0 %v709
          %812 = vmatpush1.msra.mxu0 %v708
          %813 = vmatprep.subr.mxu0 %v705
          %814 = vmatpush1.msra.mxu0 %v704
          %815 = vmatprep.subr.mxu0 %v701
          %816 = vmatpush1.msra.mxu0 %v700
          %817 = vmatprep.subr.mxu0 %v697
          %818 = vmatpush1.msra.mxu0 %v696
          %819 = vmatprep.subr.mxu0 %v693
          %820 = vmatpush1.msra.mxu0 %v692
          %821 = vmatprep.subr.mxu0 %v689
          %822 = vmatpush1.msra.mxu0 %v688
          %823 = vmatprep.subr.mxu0 %v685
          %824 = vmatpush1.msra.mxu0 %v684
          %825 = vmatprep.subr.mxu0 %v681
          %826 = vmatpush1.msra.mxu0 %v680
          %827 = vmatprep.subr.mxu0 %v677
          %828 = vmatpush1.msra.mxu0 %v676
          %829 = vmatprep.subr.mxu0 %v673
          %830 = vmatpush1.msra.mxu0 %v672
          %831 = vmatprep.subr.mxu0 %v669
          %832 = vmatpush1.msra.mxu0 %v668
          %833 = vmatprep.subr.mxu0 %v665
          %834 = vmatpush1.msra.mxu0 %v664
          %835 = vmatprep.subr.mxu0 0.0
          %836 = vmatpush2.msra.mxu0 0.0
          %837 = vmatprep.subr.mxu0 0.0
          %838 = vmatpush2.msra.mxu0 0.0
          %839 = vmatprep.subr.mxu0 0.0
          %840 = vmatpush2.msra.mxu0 0.0
          %841 = vmatprep.subr.mxu0 0.0
          %842 = vmatpush2.msra.mxu0 0.0
          %843 = vmatprep.subr.mxu0 0.0
          %844 = vmatpush2.msra.mxu0 0.0
          %845 = vmatprep.subr.mxu0 0.0
          %846 = vmatpush2.msra.mxu0 0.0
          %847 = vmatprep.subr.mxu0 0.0
          %848 = vmatpush2.msra.mxu0 0.0
          %849 = vmatprep.subr.mxu0 0.0
          %850 = vmatpush2.msra.mxu0 0.0
          %851 = vmatprep.subr.mxu0 0.0
          %852 = vmatpush2.msra.mxu0 0.0
          %853 = vmatprep.subr.mxu0 0.0
          %854 = vmatpush2.msra.mxu0 0.0
          %855 = vmatprep.subr.mxu0 0.0
          %856 = vmatpush2.msra.mxu0 0.0
          %857 = vmatprep.subr.mxu0 0.0
          %858 = vmatpush2.msra.mxu0 0.0
          %859 = vmatprep.subr.mxu0 0.0
          %860 = vmatpush2.msra.mxu0 0.0
          %861 = vmatprep.subr.mxu0 0.0
          %862 = vmatpush2.msra.mxu0 0.0
          %863 = vmatprep.subr.mxu0 0.0
          %864 = vmatpush2.msra.mxu0 0.0
          %865 = vmatprep.subr.mxu0 0.0
          %866 = vmatpush2.msra.mxu0 0.0
          %867 = vmatprep.mubr.f32.mxu0 0.0
          %868 = vmatmul.mubr.f32.gmra.mxu0 %v658
          %v869 = vpop.f32.mrf.mxu0
          %v870 = vadd.f32 0.0, %v869
          %v871 = vpop.f32.mrf.mxu0
          %v872 = vadd.f32 0.0, %v871
          %873 = vmatprep.mubr.f32.mxu0 0.0
          %874 = vmatmul.mubr.f32.gmra.mxu0 %v659
          %v875 = vpop.f32.mrf.mxu0
          %v876 = vadd.f32 0.0, %v875
          %v877 = vpop.f32.mrf.mxu0
          %v878 = vadd.f32 0.0, %v877
          %879 = vdwg.mxu0
          %880 = vst [vmem:[#allocation3] sm:$0xff] %v793
          %881 = vst [vmem:[#allocation3 + $0x8] sm:$0xff] %v795
          %882 = vst [vmem:[#allocation3 + $0x10] sm:$0xff] %v799
          %883 = vst [vmem:[#allocation3 + $0x18] sm:$0xff] %v801
          %884 = vst [vmem:[#allocation4] sm:$0xff] %v870
          %885 = vst [vmem:[#allocation4 + $0x8] sm:$0xff] %v872
          %886 = vst [vmem:[#allocation4 + $0x10] sm:$0xff] %v876
          %887 = vst [vmem:[#allocation4 + $0x18] sm:$0xff] %v878
        $region108: #{tpu_custom_call.1} parent=75 // pred_fallthru
          _
        %v888 = vld [vmem:[%s543] sm:$0xff]
        %s889 = smul.u32 %s41, 8
        %s890 = scalar_lea.vmem [#allocation2], %s889
        %v891 = vld [vmem:[%s890] sm:$0xff]
        %v892 = vld [vmem:[#allocation10] sm:$0xff]
        %v893 = vld [vmem:[#allocation10 + $0x8] sm:$0xff]
        %v894 = vld [vmem:[#allocation10 + $0x10] sm:$0xff]
        %v895 = vld [vmem:[#allocation10 + $0x18] sm:$0xff]
        %v896 = vld [vmem:[#allocation10 + $0x20] sm:$0xff]
        %v897 = vld [vmem:[#allocation10 + $0x28] sm:$0xff]
        %v898 = vld [vmem:[#allocation10 + $0x30] sm:$0xff]
        %v899 = vld [vmem:[#allocation10 + $0x38] sm:$0xff]
        %v900 = vld [vmem:[#allocation10 + $0x40] sm:$0xff]
        %v901 = vld [vmem:[#allocation10 + $0x48] sm:$0xff]
        %v902 = vld [vmem:[#allocation10 + $0x50] sm:$0xff]
        %v903 = vld [vmem:[#allocation10 + $0x58] sm:$0xff]
        %v904 = vld [vmem:[#allocation10 + $0x60] sm:$0xff]
        %v905 = vld [vmem:[#allocation10 + $0x68] sm:$0xff]
        %v906 = vld [vmem:[#allocation10 + $0x70] sm:$0xff]
        %v907 = vld [vmem:[#allocation10 + $0x78] sm:$0xff]
        %v908 = vld [vmem:[#allocation10 + $0x80] sm:$0xff]
        %v909 = vld [vmem:[#allocation10 + $0x88] sm:$0xff]
        %v910 = vld [vmem:[#allocation10 + $0x90] sm:$0xff]
        %v911 = vld [vmem:[#allocation10 + $0x98] sm:$0xff]
        %v912 = vld [vmem:[#allocation10 + $0xa0] sm:$0xff]
        %v913 = vld [vmem:[#allocation10 + $0xa8] sm:$0xff]
        %v914 = vld [vmem:[#allocation10 + $0xb0] sm:$0xff]
        %v915 = vld [vmem:[#allocation10 + $0xb8] sm:$0xff]
        %v916 = vld [vmem:[#allocation10 + $0xc0] sm:$0xff]
        %v917 = vld [vmem:[#allocation10 + $0xc8] sm:$0xff]
        %v918 = vld [vmem:[#allocation10 + $0xd0] sm:$0xff]
        %v919 = vld [vmem:[#allocation10 + $0xd8] sm:$0xff]
        %v920 = vld [vmem:[#allocation10 + $0xe0] sm:$0xff]
        %v921 = vld [vmem:[#allocation10 + $0xe8] sm:$0xff]
        %v922 = vld [vmem:[#allocation10 + $0xf0] sm:$0xff]
        %v923 = vld [vmem:[#allocation10 + $0xf8] sm:$0xff]
        %924 = vmatprep.subr.mxu0 %v923
        %925 = vmatpush1.msra.mxu0 %v922
        %926 = vmatprep.subr.mxu0 %v921
        %927 = vmatpush1.msra.mxu0 %v920
        %928 = vmatprep.subr.mxu0 %v919
        %929 = vmatpush1.msra.mxu0 %v918
        %930 = vmatprep.subr.mxu0 %v917
        %931 = vmatpush1.msra.mxu0 %v916
        %932 = vmatprep.subr.mxu0 %v915
        %933 = vmatpush1.msra.mxu0 %v914
        %934 = vmatprep.subr.mxu0 %v913
        %935 = vmatpush1.msra.mxu0 %v912
        %936 = vmatprep.subr.mxu0 %v911
        %937 = vmatpush1.msra.mxu0 %v910
        %938 = vmatprep.subr.mxu0 %v909
        %939 = vmatpush1.msra.mxu0 %v908
        %940 = vmatprep.subr.mxu0 %v907
        %941 = vmatpush1.msra.mxu0 %v906
        %942 = vmatprep.subr.mxu0 %v905
        %943 = vmatpush1.msra.mxu0 %v904
        %944 = vmatprep.subr.mxu0 %v903
        %945 = vmatpush1.msra.mxu0 %v902
        %946 = vmatprep.subr.mxu0 %v901
        %947 = vmatpush1.msra.mxu0 %v900
        %948 = vmatprep.subr.mxu0 %v899
        %949 = vmatpush1.msra.mxu0 %v898
        %950 = vmatprep.subr.mxu0 %v897
        %951 = vmatpush1.msra.mxu0 %v896
        %952 = vmatprep.subr.mxu0 %v895
        %953 = vmatpush1.msra.mxu0 %v894
        %954 = vmatprep.subr.mxu0 %v893
        %955 = vmatpush1.msra.mxu0 %v892
        %956 = vmatprep.subr.mxu0 0.0
        %957 = vmatpush2.msra.mxu0 0.0
        %958 = vmatprep.subr.mxu0 0.0
        %959 = vmatpush2.msra.mxu0 0.0
        %960 = vmatprep.subr.mxu0 0.0
        %961 = vmatpush2.msra.mxu0 0.0
        %962 = vmatprep.subr.mxu0 0.0
        %963 = vmatpush2.msra.mxu0 0.0
        %964 = vmatprep.subr.mxu0 0.0
        %965 = vmatpush2.msra.mxu0 0.0
        %966 = vmatprep.subr.mxu0 0.0
        %967 = vmatpush2.msra.mxu0 0.0
        %968 = vmatprep.subr.mxu0 0.0
        %969 = vmatpush2.msra.mxu0 0.0
        %970 = vmatprep.subr.mxu0 0.0
        %971 = vmatpush2.msra.mxu0 0.0
        %972 = vmatprep.subr.mxu0 0.0
        %973 = vmatpush2.msra.mxu0 0.0
        %974 = vmatprep.subr.mxu0 0.0
        %975 = vmatpush2.msra.mxu0 0.0
        %976 = vmatprep.subr.mxu0 0.0
        %977 = vmatpush2.msra.mxu0 0.0
        %978 = vmatprep.subr.mxu0 0.0
        %979 = vmatpush2.msra.mxu0 0.0
        %980 = vmatprep.subr.mxu0 0.0
        %981 = vmatpush2.msra.mxu0 0.0
        %982 = vmatprep.subr.mxu0 0.0
        %983 = vmatpush2.msra.mxu0 0.0
        %984 = vmatprep.subr.mxu0 0.0
        %985 = vmatpush2.msra.mxu0 0.0
        %986 = vmatprep.subr.mxu0 0.0
        %987 = vmatpush2.msra.mxu0 0.0
        %988 = vmatprep.mubr.f32.mxu0 0.0
        %989 = vmatmul.mubr.f32.gmra.mxu0 %v891
        %v990 = vpop.f32.mrf.mxu0
        %v991 = vadd.f32 0.0, %v990
        %v992 = vpop.f32.mrf.mxu0
        %v993 = vadd.f32 0.0, %v992
        %994 = vdwg.mxu0
        %v995 = vmul.f32 %v991, 0.088388346
        %v996 = vmul.f32 %v993, 0.088388346
        %v997 = vld [vmem:[#allocation3] sm:$0xff]
        %v998 = vld [vmem:[#allocation3 + $0x10] sm:$0xff]
        %v999 = vld [vmem:[#allocation4] sm:$0xff]
        %v1000 = vld [vmem:[#allocation4 + $0x10] sm:$0xff]
        %1001 = vmatprep.subr.mxu0 0.0
        %1002 = vmatpush1.xpose.msra.mxu0 0.0
        %1003 = vmatprep.subr.mxu0 0.0
        %1004 = vmatpush1.xpose.msra.mxu0 0.0
        %1005 = vmatprep.subr.mxu0 0.0
        %1006 = vmatpush1.xpose.msra.mxu0 0.0
        %1007 = vmatprep.subr.mxu0 0.0
        %1008 = vmatpush1.xpose.msra.mxu0 0.0
        %1009 = vmatprep.subr.mxu0 0.0
        %1010 = vmatpush1.xpose.msra.mxu0 0.0
        %1011 = vmatprep.subr.mxu0 0.0
        %1012 = vmatpush1.xpose.msra.mxu0 0.0
        %1013 = vmatprep.subr.mxu0 0.0
        %1014 = vmatpush1.xpose.msra.mxu0 0.0
        %1015 = vmatprep.subr.mxu0 0.0
        %1016 = vmatpush1.xpose.msra.mxu0 0.0
        %1017 = vmatprep.subr.mxu0 0.0
        %1018 = vmatpush1.xpose.msra.mxu0 0.0
        %1019 = vmatprep.subr.mxu0 0.0
        %1020 = vmatpush1.xpose.msra.mxu0 0.0
        %1021 = vmatprep.subr.mxu0 0.0
        %1022 = vmatpush1.xpose.msra.mxu0 0.0
        %1023 = vmatprep.subr.mxu0 0.0
        %1024 = vmatpush1.xpose.msra.mxu0 0.0
        %1025 = vmatprep.subr.mxu0 0.0
        %1026 = vmatpush1.xpose.msra.mxu0 0.0
        %1027 = vmatprep.subr.mxu0 0.0
        %1028 = vmatpush1.xpose.msra.mxu0 0.0
        %1029 = vmatprep.subr.mxu0 0.0
        %1030 = vmatpush1.xpose.msra.mxu0 %v998
        %1031 = vmatprep.subr.mxu0 0.0
        %1032 = vmatpush1.xpose.msra.mxu0 %v997
        %1033 = vmatprep.subr.mxu0 0.0
        %1034 = vmatpush2.xpose.msra.mxu0 0.0
        %1035 = vmatprep.subr.mxu0 0.0
        %1036 = vmatpush2.xpose.msra.mxu0 0.0
        %1037 = vmatprep.subr.mxu0 0.0
        %1038 = vmatpush2.xpose.msra.mxu0 0.0
        %1039 = vmatprep.subr.mxu0 0.0
        %1040 = vmatpush2.xpose.msra.mxu0 0.0
        %1041 = vmatprep.subr.mxu0 0.0
        %1042 = vmatpush2.xpose.msra.mxu0 0.0
        %1043 = vmatprep.subr.mxu0 0.0
        %1044 = vmatpush2.xpose.msra.mxu0 0.0
        %1045 = vmatprep.subr.mxu0 0.0
        %1046 = vmatpush2.xpose.msra.mxu0 0.0
        %1047 = vmatprep.subr.mxu0 0.0
        %1048 = vmatpush2.xpose.msra.mxu0 0.0
        %1049 = vmatprep.subr.mxu0 0.0
        %1050 = vmatpush2.xpose.msra.mxu0 0.0
        %1051 = vmatprep.subr.mxu0 0.0
        %1052 = vmatpush2.xpose.msra.mxu0 0.0
        %1053 = vmatprep.subr.mxu0 0.0
        %1054 = vmatpush2.xpose.msra.mxu0 0.0
        %1055 = vmatprep.subr.mxu0 0.0
        %1056 = vmatpush2.xpose.msra.mxu0 0.0
        %1057 = vmatprep.subr.mxu0 0.0
        %1058 = vmatpush2.xpose.msra.mxu0 0.0
        %1059 = vmatprep.subr.mxu0 0.0
        %1060 = vmatpush2.xpose.msra.mxu0 0.0
        %1061 = vmatprep.subr.mxu0 0.0
        %1062 = vmatpush2.xpose.msra.mxu0 0.0
        %1063 = vmatprep.subr.mxu0 0.0
        %1064 = vmatpush2.xpose.msra.mxu0 0.0
        %1065 = vmatprep.mubr.f32.mxu0 0.0
        %1066 = vmatmul.mubr.f32.gmra.mxu0 %v995
        %v1067 = vpop.f32.mrf.mxu0
        %v1068 = vadd.f32 0.0, %v1067
        %v1069 = vpop.f32.mrf.mxu0
        %1070 = vdwg.mxu0
        %vm1071 = vcmask 130048
        %v1072 = vsel %vm1071, %v1068, -inf
        %1073 = vmax.xlane.f32.xlu0 %v1072
        %v1074 = vpop.xlane.xlu0 %1073
        %v1075 = vsub.f32 %v1068, %v1074
        %v1076 = vmul.f32 %v1075, 1.442695
        %v1077 = vpow.pop %v1076
        %v1078 = vsel %vm1071, %v1077, 0.0
        %1079 = vadd.xlane.f32.xlu0 %v1078
        %v1080 = vpop.xlane.xlu0 %1079
        %v1081 = vrcp.pop %v1080
        %v1082 = vmul.f32 %v1077, %v1081
        %v1084 = vsel %vm1071, %v1082, 0
        %1086 = vmatprep.subr.mxu0 0.0
        %1087 = vmatpush1.msra.mxu0 0.0
        %1088 = vmatprep.subr.mxu0 0.0
        %1089 = vmatpush1.msra.mxu0 0.0
        %1090 = vmatprep.subr.mxu0 0.0
        %1091 = vmatpush1.msra.mxu0 0.0
        %1092 = vmatprep.subr.mxu0 0.0
        %1093 = vmatpush1.msra.mxu0 0.0
        %1094 = vmatprep.subr.mxu0 0.0
        %1095 = vmatpush1.msra.mxu0 0.0
        %1096 = vmatprep.subr.mxu0 0.0
        %1097 = vmatpush1.msra.mxu0 0.0
        %1098 = vmatprep.subr.mxu0 0.0
        %1099 = vmatpush1.msra.mxu0 0.0
        %1100 = vmatprep.subr.mxu0 0.0
        %1101 = vmatpush1.msra.mxu0 0.0
        %1102 = vmatprep.subr.mxu0 0.0
        %1103 = vmatpush1.msra.mxu0 0.0
        %1104 = vmatprep.subr.mxu0 0.0
        %1105 = vmatpush1.msra.mxu0 0.0
        %1106 = vmatprep.subr.mxu0 0.0
        %1107 = vmatpush1.msra.mxu0 0.0
        %1108 = vmatprep.subr.mxu0 0.0
        %1109 = vmatpush1.msra.mxu0 0.0
        %1110 = vmatprep.subr.mxu0 0.0
        %1111 = vmatpush1.msra.mxu0 0.0
        %1112 = vmatprep.subr.mxu0 0.0
        %1113 = vmatpush1.msra.mxu0 0.0
        %1114 = vmatprep.subr.mxu0 0.0
        %1115 = vmatpush1.msra.mxu0 %v1000
        %1116 = vmatprep.subr.mxu0 0.0
        %1117 = vmatpush1.msra.mxu0 %v999
        %1118 = vmatprep.subr.mxu0 0.0
        %1119 = vmatpush2.msra.mxu0 0.0
        %1120 = vmatprep.subr.mxu0 0.0
        %1121 = vmatpush2.msra.mxu0 0.0
        %1122 = vmatprep.subr.mxu0 0.0
        %1123 = vmatpush2.msra.mxu0 0.0
        %1124 = vmatprep.subr.mxu0 0.0
        %1125 = vmatpush2.msra.mxu0 0.0
        %1126 = vmatprep.subr.mxu0 0.0
        %1127 = vmatpush2.msra.mxu0 0.0
        %1128 = vmatprep.subr.mxu0 0.0
        %1129 = vmatpush2.msra.mxu0 0.0
        %1130 = vmatprep.subr.mxu0 0.0
        %1131 = vmatpush2.msra.mxu0 0.0
        %1132 = vmatprep.subr.mxu0 0.0
        %1133 = vmatpush2.msra.mxu0 0.0
        %1134 = vmatprep.subr.mxu0 0.0
        %1135 = vmatpush2.msra.mxu0 0.0
        %1136 = vmatprep.subr.mxu0 0.0
        %1137 = vmatpush2.msra.mxu0 0.0
        %1138 = vmatprep.subr.mxu0 0.0
        %1139 = vmatpush2.msra.mxu0 0.0
        %1140 = vmatprep.subr.mxu0 0.0
        %1141 = vmatpush2.msra.mxu0 0.0
        %1142 = vmatprep.subr.mxu0 0.0
        %1143 = vmatpush2.msra.mxu0 0.0
        %1144 = vmatprep.subr.mxu0 0.0
        %1145 = vmatpush2.msra.mxu0 0.0
        %1146 = vmatprep.subr.mxu0 0.0
        %1147 = vmatpush2.msra.mxu0 0.0
        %1148 = vmatprep.subr.mxu0 0.0
        %1149 = vmatpush2.msra.mxu0 0.0
        %1150 = vmatprep.mubr.f32.mxu0 0.0
        %1151 = vmatmul.mubr.f32.gmra.mxu0 %v1084
        %v1152 = vpop.f32.mrf.mxu0
        %v1153 = vadd.f32 0.0, %v1152
        %v1154 = vpop.f32.mrf.mxu0
        %1155 = vdwg.mxu0
        %v1156 = vld [vmem:[#allocation3 + $0x8] sm:$0xff]
        %v1157 = vld [vmem:[#allocation3 + $0x18] sm:$0xff]
        %v1158 = vld [vmem:[#allocation4 + $0x8] sm:$0xff]
        %v1159 = vld [vmem:[#allocation4 + $0x18] sm:$0xff]
        %1160 = vmatprep.subr.mxu0 0.0
        %1161 = vmatpush1.xpose.msra.mxu0 0.0
        %1162 = vmatprep.subr.mxu0 0.0
        %1163 = vmatpush1.xpose.msra.mxu0 0.0
        %1164 = vmatprep.subr.mxu0 0.0
        %1165 = vmatpush1.xpose.msra.mxu0 0.0
        %1166 = vmatprep.subr.mxu0 0.0
        %1167 = vmatpush1.xpose.msra.mxu0 0.0
        %1168 = vmatprep.subr.mxu0 0.0
        %1169 = vmatpush1.xpose.msra.mxu0 0.0
        %1170 = vmatprep.subr.mxu0 0.0
        %1171 = vmatpush1.xpose.msra.mxu0 0.0
        %1172 = vmatprep.subr.mxu0 0.0
        %1173 = vmatpush1.xpose.msra.mxu0 0.0
        %1174 = vmatprep.subr.mxu0 0.0
        %1175 = vmatpush1.xpose.msra.mxu0 0.0
        %1176 = vmatprep.subr.mxu0 0.0
        %1177 = vmatpush1.xpose.msra.mxu0 0.0
        %1178 = vmatprep.subr.mxu0 0.0
        %1179 = vmatpush1.xpose.msra.mxu0 0.0
        %1180 = vmatprep.subr.mxu0 0.0
        %1181 = vmatpush1.xpose.msra.mxu0 0.0
        %1182 = vmatprep.subr.mxu0 0.0
        %1183 = vmatpush1.xpose.msra.mxu0 0.0
        %1184 = vmatprep.subr.mxu0 0.0
        %1185 = vmatpush1.xpose.msra.mxu0 0.0
        %1186 = vmatprep.subr.mxu0 0.0
        %1187 = vmatpush1.xpose.msra.mxu0 0.0
        %1188 = vmatprep.subr.mxu0 0.0
        %1189 = vmatpush1.xpose.msra.mxu0 %v1157
        %1190 = vmatprep.subr.mxu0 0.0
        %1191 = vmatpush1.xpose.msra.mxu0 %v1156
        %1192 = vmatprep.subr.mxu0 0.0
        %1193 = vmatpush2.xpose.msra.mxu0 0.0
        %1194 = vmatprep.subr.mxu0 0.0
        %1195 = vmatpush2.xpose.msra.mxu0 0.0
        %1196 = vmatprep.subr.mxu0 0.0
        %1197 = vmatpush2.xpose.msra.mxu0 0.0
        %1198 = vmatprep.subr.mxu0 0.0
        %1199 = vmatpush2.xpose.msra.mxu0 0.0
        %1200 = vmatprep.subr.mxu0 0.0
        %1201 = vmatpush2.xpose.msra.mxu0 0.0
        %1202 = vmatprep.subr.mxu0 0.0
        %1203 = vmatpush2.xpose.msra.mxu0 0.0
        %1204 = vmatprep.subr.mxu0 0.0
        %1205 = vmatpush2.xpose.msra.mxu0 0.0
        %1206 = vmatprep.subr.mxu0 0.0
        %1207 = vmatpush2.xpose.msra.mxu0 0.0
        %1208 = vmatprep.subr.mxu0 0.0
        %1209 = vmatpush2.xpose.msra.mxu0 0.0
        %1210 = vmatprep.subr.mxu0 0.0
        %1211 = vmatpush2.xpose.msra.mxu0 0.0
        %1212 = vmatprep.subr.mxu0 0.0
        %1213 = vmatpush2.xpose.msra.mxu0 0.0
        %1214 = vmatprep.subr.mxu0 0.0
        %1215 = vmatpush2.xpose.msra.mxu0 0.0
        %1216 = vmatprep.subr.mxu0 0.0
        %1217 = vmatpush2.xpose.msra.mxu0 0.0
        %1218 = vmatprep.subr.mxu0 0.0
        %1219 = vmatpush2.xpose.msra.mxu0 0.0
        %1220 = vmatprep.subr.mxu0 0.0
        %1221 = vmatpush2.xpose.msra.mxu0 0.0
        %1222 = vmatprep.subr.mxu0 0.0
        %1223 = vmatpush2.xpose.msra.mxu0 0.0
        %1224 = vmatprep.mubr.f32.mxu0 0.0
        %1225 = vmatmul.mubr.f32.gmra.mxu0 %v996
        %v1226 = vpop.f32.mrf.mxu0
        %v1227 = vadd.f32 0.0, %v1226
        %v1228 = vpop.f32.mrf.mxu0
        %1229 = vdwg.mxu0
        %v1230 = vsel %vm1071, %v1227, -inf
        %1231 = vmax.xlane.f32.xlu0 %v1230
        %v1232 = vpop.xlane.xlu0 %1231
        %v1233 = vsub.f32 %v1227, %v1232
        %v1234 = vmul.f32 %v1233, 1.442695
        %v1235 = vpow.pop %v1234
        %v1236 = vsel %vm1071, %v1235, 0.0
        %1237 = vadd.xlane.f32.xlu0 %v1236
        %v1238 = vpop.xlane.xlu0 %1237
        %v1239 = vrcp.pop %v1238
        %v1240 = vmul.f32 %v1235, %v1239
        %v1242 = vsel %vm1071, %v1240, 0
        %1244 = vmatprep.subr.mxu0 0.0
        %1245 = vmatpush1.msra.mxu0 0.0
        %1246 = vmatprep.subr.mxu0 0.0
        %1247 = vmatpush1.msra.mxu0 0.0
        %1248 = vmatprep.subr.mxu0 0.0
        %1249 = vmatpush1.msra.mxu0 0.0
        %1250 = vmatprep.subr.mxu0 0.0
        %1251 = vmatpush1.msra.mxu0 0.0
        %1252 = vmatprep.subr.mxu0 0.0
        %1253 = vmatpush1.msra.mxu0 0.0
        %1254 = vmatprep.subr.mxu0 0.0
        %1255 = vmatpush1.msra.mxu0 0.0
        %1256 = vmatprep.subr.mxu0 0.0
        %1257 = vmatpush1.msra.mxu0 0.0
        %1258 = vmatprep.subr.mxu0 0.0
        %1259 = vmatpush1.msra.mxu0 0.0
        %1260 = vmatprep.subr.mxu0 0.0
        %1261 = vmatpush1.msra.mxu0 0.0
        %1262 = vmatprep.subr.mxu0 0.0
        %1263 = vmatpush1.msra.mxu0 0.0
        %1264 = vmatprep.subr.mxu0 0.0
        %1265 = vmatpush1.msra.mxu0 0.0
        %1266 = vmatprep.subr.mxu0 0.0
        %1267 = vmatpush1.msra.mxu0 0.0
        %1268 = vmatprep.subr.mxu0 0.0
        %1269 = vmatpush1.msra.mxu0 0.0
        %1270 = vmatprep.subr.mxu0 0.0
        %1271 = vmatpush1.msra.mxu0 0.0
        %1272 = vmatprep.subr.mxu0 0.0
        %1273 = vmatpush1.msra.mxu0 %v1159
        %1274 = vmatprep.subr.mxu0 0.0
        %1275 = vmatpush1.msra.mxu0 %v1158
        %1276 = vmatprep.subr.mxu0 0.0
        %1277 = vmatpush2.msra.mxu0 0.0
        %1278 = vmatprep.subr.mxu0 0.0
        %1279 = vmatpush2.msra.mxu0 0.0
        %1280 = vmatprep.subr.mxu0 0.0
        %1281 = vmatpush2.msra.mxu0 0.0
        %1282 = vmatprep.subr.mxu0 0.0
        %1283 = vmatpush2.msra.mxu0 0.0
        %1284 = vmatprep.subr.mxu0 0.0
        %1285 = vmatpush2.msra.mxu0 0.0
        %1286 = vmatprep.subr.mxu0 0.0
        %1287 = vmatpush2.msra.mxu0 0.0
        %1288 = vmatprep.subr.mxu0 0.0
        %1289 = vmatpush2.msra.mxu0 0.0
        %1290 = vmatprep.subr.mxu0 0.0
        %1291 = vmatpush2.msra.mxu0 0.0
        %1292 = vmatprep.subr.mxu0 0.0
        %1293 = vmatpush2.msra.mxu0 0.0
        %1294 = vmatprep.subr.mxu0 0.0
        %1295 = vmatpush2.msra.mxu0 0.0
        %1296 = vmatprep.subr.mxu0 0.0
        %1297 = vmatpush2.msra.mxu0 0.0
        %1298 = vmatprep.subr.mxu0 0.0
        %1299 = vmatpush2.msra.mxu0 0.0
        %1300 = vmatprep.subr.mxu0 0.0
        %1301 = vmatpush2.msra.mxu0 0.0
        %1302 = vmatprep.subr.mxu0 0.0
        %1303 = vmatpush2.msra.mxu0 0.0
        %1304 = vmatprep.subr.mxu0 0.0
        %1305 = vmatpush2.msra.mxu0 0.0
        %1306 = vmatprep.subr.mxu0 0.0
        %1307 = vmatpush2.msra.mxu0 0.0
        %1308 = vmatprep.mubr.f32.mxu0 0.0
        %1309 = vmatmul.mubr.f32.gmra.mxu0 %v1242
        %v1310 = vpop.f32.mrf.mxu0
        %v1311 = vadd.f32 0.0, %v1310
        %v1312 = vpop.f32.mrf.mxu0
        %1313 = vdwg.mxu0
        %v1314 = vld [vmem:[#allocation13] sm:$0xff]
        %v1315 = vld [vmem:[#allocation13 + $0x8] sm:$0xff]
        %v1316 = vld [vmem:[#allocation13 + $0x10] sm:$0xff]
        %v1317 = vld [vmem:[#allocation13 + $0x18] sm:$0xff]
        %v1318 = vld [vmem:[#allocation13 + $0x20] sm:$0xff]
        %v1319 = vld [vmem:[#allocation13 + $0x28] sm:$0xff]
        %v1320 = vld [vmem:[#allocation13 + $0x30] sm:$0xff]
        %v1321 = vld [vmem:[#allocation13 + $0x38] sm:$0xff]
        %v1322 = vld [vmem:[#allocation13 + $0x40] sm:$0xff]
        %v1323 = vld [vmem:[#allocation13 + $0x48] sm:$0xff]
        %v1324 = vld [vmem:[#allocation13 + $0x50] sm:$0xff]
        %v1325 = vld [vmem:[#allocation13 + $0x58] sm:$0xff]
        %v1326 = vld [vmem:[#allocation13 + $0x60] sm:$0xff]
        %v1327 = vld [vmem:[#allocation13 + $0x68] sm:$0xff]
        %v1328 = vld [vmem:[#allocation13 + $0x70] sm:$0xff]
        %v1329 = vld [vmem:[#allocation13 + $0x78] sm:$0xff]
        %v1330 = vld [vmem:[#allocation13 + $0x80] sm:$0xff]
        %v1331 = vld [vmem:[#allocation13 + $0x88] sm:$0xff]
        %v1332 = vld [vmem:[#allocation13 + $0x90] sm:$0xff]
        %v1333 = vld [vmem:[#allocation13 + $0x98] sm:$0xff]
        %v1334 = vld [vmem:[#allocation13 + $0xa0] sm:$0xff]
        %v1335 = vld [vmem:[#allocation13 + $0xa8] sm:$0xff]
        %v1336 = vld [vmem:[#allocation13 + $0xb0] sm:$0xff]
        %v1337 = vld [vmem:[#allocation13 + $0xb8] sm:$0xff]
        %v1338 = vld [vmem:[#allocation13 + $0xc0] sm:$0xff]
        %v1339 = vld [vmem:[#allocation13 + $0xc8] sm:$0xff]
        %v1340 = vld [vmem:[#allocation13 + $0xd0] sm:$0xff]
        %v1341 = vld [vmem:[#allocation13 + $0xd8] sm:$0xff]
        %v1342 = vld [vmem:[#allocation13 + $0xe0] sm:$0xff]
        %v1343 = vld [vmem:[#allocation13 + $0xe8] sm:$0xff]
        %v1344 = vld [vmem:[#allocation13 + $0xf0] sm:$0xff]
        %v1345 = vld [vmem:[#allocation13 + $0xf8] sm:$0xff]
        %v1346 = vld [vmem:[%s7] sm:$0x1]
        %v1348 = vlaneseq
        %v1349 = vshrl.u32 %v1348, 7
        %v1350 = vsub.s32 0, %v1349
        %v1351 = vrot.slane %v1346, %v1350
        %1353 = vmatprep.subr.mxu0 0.0
        %1354 = vmatpush1.msra.mxu0 %v1329
        %1355 = vmatprep.subr.mxu0 0.0
        %1356 = vmatpush1.msra.mxu0 %v1328
        %1357 = vmatprep.subr.mxu0 0.0
        %1358 = vmatpush1.msra.mxu0 %v1327
        %1359 = vmatprep.subr.mxu0 0.0
        %1360 = vmatpush1.msra.mxu0 %v1326
        %1361 = vmatprep.subr.mxu0 0.0
        %1362 = vmatpush1.msra.mxu0 %v1325
        %1363 = vmatprep.subr.mxu0 0.0
        %1364 = vmatpush1.msra.mxu0 %v1324
        %1365 = vmatprep.subr.mxu0 0.0
        %1366 = vmatpush1.msra.mxu0 %v1323
        %1367 = vmatprep.subr.mxu0 0.0
        %1368 = vmatpush1.msra.mxu0 %v1322
        %1369 = vmatprep.subr.mxu0 0.0
        %1370 = vmatpush1.msra.mxu0 %v1321
        %1371 = vmatprep.subr.mxu0 0.0
        %1372 = vmatpush1.msra.mxu0 %v1320
        %1373 = vmatprep.subr.mxu0 0.0
        %1374 = vmatpush1.msra.mxu0 %v1319
        %1375 = vmatprep.subr.mxu0 0.0
        %1376 = vmatpush1.msra.mxu0 %v1318
        %1377 = vmatprep.subr.mxu0 0.0
        %1378 = vmatpush1.msra.mxu0 %v1317
        %1379 = vmatprep.subr.mxu0 0.0
        %1380 = vmatpush1.msra.mxu0 %v1316
        %1381 = vmatprep.subr.mxu0 0.0
        %1382 = vmatpush1.msra.mxu0 %v1315
        %1383 = vmatprep.subr.mxu0 0.0
        %1384 = vmatpush1.msra.mxu0 %v1314
        %1385 = vmatprep.subr.mxu0 0.0
        %1386 = vmatpush2.msra.mxu0 %v1345
        %1387 = vmatprep.subr.mxu0 0.0
        %1388 = vmatpush2.msra.mxu0 %v1344
        %1389 = vmatprep.subr.mxu0 0.0
        %1390 = vmatpush2.msra.mxu0 %v1343
        %1391 = vmatprep.subr.mxu0 0.0
        %1392 = vmatpush2.msra.mxu0 %v1342
        %1393 = vmatprep.subr.mxu0 0.0
        %1394 = vmatpush2.msra.mxu0 %v1341
        %1395 = vmatprep.subr.mxu0 0.0
        %1396 = vmatpush2.msra.mxu0 %v1340
        %1397 = vmatprep.subr.mxu0 0.0
        %1398 = vmatpush2.msra.mxu0 %v1339
        %1399 = vmatprep.subr.mxu0 0.0
        %1400 = vmatpush2.msra.mxu0 %v1338
        %1401 = vmatprep.subr.mxu0 0.0
        %1402 = vmatpush2.msra.mxu0 %v1337
        %1403 = vmatprep.subr.mxu0 0.0
        %1404 = vmatpush2.msra.mxu0 %v1336
        %1405 = vmatprep.subr.mxu0 0.0
        %1406 = vmatpush2.msra.mxu0 %v1335
        %1407 = vmatprep.subr.mxu0 0.0
        %1408 = vmatpush2.msra.mxu0 %v1334
        %1409 = vmatprep.subr.mxu0 0.0
        %1410 = vmatpush2.msra.mxu0 %v1333
        %1411 = vmatprep.subr.mxu0 0.0
        %1412 = vmatpush2.msra.mxu0 %v1332
        %1413 = vmatprep.subr.mxu0 0.0
        %1414 = vmatpush2.msra.mxu0 %v1331
        %1415 = vmatprep.subr.mxu0 0.0
        %1416 = vmatpush2.msra.mxu0 %v1330
        %1417 = vmatprep.mubr.f32.mxu0 %v1311
        %1418 = vmatmul.mubr.f32.gmra.mxu0 %v1153
        %v1419 = vpop.f32.mrf.mxu0
        %v1420 = vadd.f32 %v1351, %v1419
        %v1421 = vpop.f32.mrf.mxu0
        %1422 = vdwg.mxu0
        %v1423 = vadd.f32 %v888, %v1420
        %v1424 = vld [vmem:[%s8] sm:$0x1]
        %v1425 = vld [vmem:[%s9] sm:$0x1]
        %1426 = vadd.xlane.f32.xlu0 %v1423
        %v1427 = vpop.xlane.xlu0 %1426
        %v1428 = vrcp.pop 128.0
        %v1429 = vmul.f32 %v1427, %v1428
        %v1430 = vsub.f32 %v1423, %v1429
        %v1431 = vmul.f32 %v1430, %v1430
        %1432 = vadd.xlane.f32.xlu0 %v1431
        %v1433 = vpop.xlane.xlu0 %1432
        %v1434 = vmul.f32 %v1433, %v1428
        %v1435 = vadd.f32 %v1434, 1e-05
        %v1436 = vrsqrt.pop %v1435
        %v1437 = vmul.f32 %v1430, %v1436
        %v1439 = vlaneseq
        %v1440 = vshrl.u32 %v1439, 7
        %v1441 = vsub.s32 0, %v1440
        %v1442 = vrot.slane %v1424, %v1441
        %v1444 = vmul.f32 %v1437, %v1442
        %v1446 = vlaneseq
        %v1447 = vshrl.u32 %v1446, 7
        %v1448 = vsub.s32 0, %v1447
        %v1449 = vrot.slane %v1425, %v1448
        %v1451 = vadd.f32 %v1444, %v1449
        %v1452 = vld [vmem:[#allocation14] sm:$0xff]
        %v1453 = vld [vmem:[#allocation14 + $0x8] sm:$0xff]
        %v1454 = vld [vmem:[#allocation14 + $0x10] sm:$0xff]
        %v1455 = vld [vmem:[#allocation14 + $0x18] sm:$0xff]
        %v1456 = vld [vmem:[#allocation14 + $0x20] sm:$0xff]
        %v1457 = vld [vmem:[#allocation14 + $0x28] sm:$0xff]
        %v1458 = vld [vmem:[#allocation14 + $0x30] sm:$0xff]
        %v1459 = vld [vmem:[#allocation14 + $0x38] sm:$0xff]
        %v1460 = vld [vmem:[#allocation14 + $0x40] sm:$0xff]
        %v1461 = vld [vmem:[#allocation14 + $0x48] sm:$0xff]
        %v1462 = vld [vmem:[#allocation14 + $0x50] sm:$0xff]
        %v1463 = vld [vmem:[#allocation14 + $0x58] sm:$0xff]
        %v1464 = vld [vmem:[#allocation14 + $0x60] sm:$0xff]
        %v1465 = vld [vmem:[#allocation14 + $0x68] sm:$0xff]
        %v1466 = vld [vmem:[#allocation14 + $0x70] sm:$0xff]
        %v1467 = vld [vmem:[#allocation14 + $0x78] sm:$0xff]
        %v1468 = vld [vmem:[#allocation14 + $0x80] sm:$0xff]
        %v1469 = vld [vmem:[#allocation14 + $0x88] sm:$0xff]
        %v1470 = vld [vmem:[#allocation14 + $0x90] sm:$0xff]
        %v1471 = vld [vmem:[#allocation14 + $0x98] sm:$0xff]
        %v1472 = vld [vmem:[#allocation14 + $0xa0] sm:$0xff]
        %v1473 = vld [vmem:[#allocation14 + $0xa8] sm:$0xff]
        %v1474 = vld [vmem:[#allocation14 + $0xb0] sm:$0xff]
        %v1475 = vld [vmem:[#allocation14 + $0xb8] sm:$0xff]
        %v1476 = vld [vmem:[#allocation14 + $0xc0] sm:$0xff]
        %v1477 = vld [vmem:[#allocation14 + $0xc8] sm:$0xff]
        %v1478 = vld [vmem:[#allocation14 + $0xd0] sm:$0xff]
        %v1479 = vld [vmem:[#allocation14 + $0xd8] sm:$0xff]
        %v1480 = vld [vmem:[#allocation14 + $0xe0] sm:$0xff]
        %v1481 = vld [vmem:[#allocation14 + $0xe8] sm:$0xff]
        %v1482 = vld [vmem:[#allocation14 + $0xf0] sm:$0xff]
        %v1483 = vld [vmem:[#allocation14 + $0xf8] sm:$0xff]
        %v1484 = vld [vmem:[%s11] sm:$0x3]
        %v1486 = vlaneseq
        %v1487 = vshrl.u32 %v1486, 7
        %v1488 = vsub.s32 0, %v1487
        %v1489 = vrot.slane %v1484, %v1488
        %v1490 = vlaneseq
        %v1491 = vshrl.u32 %v1490, 7
        %v1492 = vsub.s32 1, %v1491
        %v1493 = vrot.slane %v1484, %v1492
        %1496 = vmatprep.subr.mxu0 %v1483
        %1497 = vmatpush1.msra.mxu0 %v1482
        %1498 = vmatprep.subr.mxu0 %v1481
        %1499 = vmatpush1.msra.mxu0 %v1480
        %1500 = vmatprep.subr.mxu0 %v1479
        %1501 = vmatpush1.msra.mxu0 %v1478
        %1502 = vmatprep.subr.mxu0 %v1477
        %1503 = vmatpush1.msra.mxu0 %v1476
        %1504 = vmatprep.subr.mxu0 %v1475
        %1505 = vmatpush1.msra.mxu0 %v1474
        %1506 = vmatprep.subr.mxu0 %v1473
        %1507 = vmatpush1.msra.mxu0 %v1472
        %1508 = vmatprep.subr.mxu0 %v1471
        %1509 = vmatpush1.msra.mxu0 %v1470
        %1510 = vmatprep.subr.mxu0 %v1469
        %1511 = vmatpush1.msra.mxu0 %v1468
        %1512 = vmatprep.subr.mxu0 %v1467
        %1513 = vmatpush1.msra.mxu0 %v1466
        %1514 = vmatprep.subr.mxu0 %v1465
        %1515 = vmatpush1.msra.mxu0 %v1464
        %1516 = vmatprep.subr.mxu0 %v1463
        %1517 = vmatpush1.msra.mxu0 %v1462
        %1518 = vmatprep.subr.mxu0 %v1461
        %1519 = vmatpush1.msra.mxu0 %v1460
        %1520 = vmatprep.subr.mxu0 %v1459
        %1521 = vmatpush1.msra.mxu0 %v1458
        %1522 = vmatprep.subr.mxu0 %v1457
        %1523 = vmatpush1.msra.mxu0 %v1456
        %1524 = vmatprep.subr.mxu0 %v1455
        %1525 = vmatpush1.msra.mxu0 %v1454
        %1526 = vmatprep.subr.mxu0 %v1453
        %1527 = vmatpush1.msra.mxu0 %v1452
        %1528 = vmatprep.subr.mxu0 0.0
        %1529 = vmatpush2.msra.mxu0 0.0
        %1530 = vmatprep.subr.mxu0 0.0
        %1531 = vmatpush2.msra.mxu0 0.0
        %1532 = vmatprep.subr.mxu0 0.0
        %1533 = vmatpush2.msra.mxu0 0.0
        %1534 = vmatprep.subr.mxu0 0.0
        %1535 = vmatpush2.msra.mxu0 0.0
        %1536 = vmatprep.subr.mxu0 0.0
        %1537 = vmatpush2.msra.mxu0 0.0
        %1538 = vmatprep.subr.mxu0 0.0
        %1539 = vmatpush2.msra.mxu0 0.0
        %1540 = vmatprep.subr.mxu0 0.0
        %1541 = vmatpush2.msra.mxu0 0.0
        %1542 = vmatprep.subr.mxu0 0.0
        %1543 = vmatpush2.msra.mxu0 0.0
        %1544 = vmatprep.subr.mxu0 0.0
        %1545 = vmatpush2.msra.mxu0 0.0
        %1546 = vmatprep.subr.mxu0 0.0
        %1547 = vmatpush2.msra.mxu0 0.0
        %1548 = vmatprep.subr.mxu0 0.0
        %1549 = vmatpush2.msra.mxu0 0.0
        %1550 = vmatprep.subr.mxu0 0.0
        %1551 = vmatpush2.msra.mxu0 0.0
        %1552 = vmatprep.subr.mxu0 0.0
        %1553 = vmatpush2.msra.mxu0 0.0
        %1554 = vmatprep.subr.mxu0 0.0
        %1555 = vmatpush2.msra.mxu0 0.0
        %1556 = vmatprep.subr.mxu0 0.0
        %1557 = vmatpush2.msra.mxu0 0.0
        %1558 = vmatprep.subr.mxu0 0.0
        %1559 = vmatpush2.msra.mxu0 0.0
        %1560 = vmatprep.mubr.f32.mxu0 0.0
        %1561 = vmatmul.mubr.f32.gmra.mxu0 %v1451
        %v1562 = vpop.f32.mrf.mxu0
        %v1563 = vadd.f32 %v1489, %v1562
        %v1564 = vpop.f32.mrf.mxu0
        %v1565 = vadd.f32 %v1493, %v1564
        %1566 = vdwg.mxu0
        %v1567 = vmul.f32 %v1563, 0.5
        %v1568 = vmul.f32 %v1565, 0.5
        %v1569 = vmul.f32 %v1563, 0.70710677
        %v1570 = vmul.f32 %v1565, 0.70710677
        %v1571 = verf.f32.pop %v1569
        %v1572 = verf.f32.pop %v1570
        %v1573 = vadd.f32 %v1571, 1.0
        %v1574 = vadd.f32 %v1572, 1.0
        %v1575 = vmul.f32 %v1567, %v1573
        %v1576 = vmul.f32 %v1568, %v1574
        %v1577 = vld [vmem:[#allocation16] sm:$0xff]
        %v1578 = vld [vmem:[#allocation16 + $0x8] sm:$0xff]
        %v1579 = vld [vmem:[#allocation16 + $0x10] sm:$0xff]
        %v1580 = vld [vmem:[#allocation16 + $0x18] sm:$0xff]
        %v1581 = vld [vmem:[#allocation16 + $0x20] sm:$0xff]
        %v1582 = vld [vmem:[#allocation16 + $0x28] sm:$0xff]
        %v1583 = vld [vmem:[#allocation16 + $0x30] sm:$0xff]
        %v1584 = vld [vmem:[#allocation16 + $0x38] sm:$0xff]
        %v1585 = vld [vmem:[#allocation16 + $0x40] sm:$0xff]
        %v1586 = vld [vmem:[#allocation16 + $0x48] sm:$0xff]
        %v1587 = vld [vmem:[#allocation16 + $0x50] sm:$0xff]
        %v1588 = vld [vmem:[#allocation16 + $0x58] sm:$0xff]
        %v1589 = vld [vmem:[#allocation16 + $0x60] sm:$0xff]
        %v1590 = vld [vmem:[#allocation16 + $0x68] sm:$0xff]
        %v1591 = vld [vmem:[#allocation16 + $0x70] sm:$0xff]
        %v1592 = vld [vmem:[#allocation16 + $0x78] sm:$0xff]
        %v1593 = vld [vmem:[#allocation16 + $0x80] sm:$0xff]
        %v1594 = vld [vmem:[#allocation16 + $0x88] sm:$0xff]
        %v1595 = vld [vmem:[#allocation16 + $0x90] sm:$0xff]
        %v1596 = vld [vmem:[#allocation16 + $0x98] sm:$0xff]
        %v1597 = vld [vmem:[#allocation16 + $0xa0] sm:$0xff]
        %v1598 = vld [vmem:[#allocation16 + $0xa8] sm:$0xff]
        %v1599 = vld [vmem:[#allocation16 + $0xb0] sm:$0xff]
        %v1600 = vld [vmem:[#allocation16 + $0xb8] sm:$0xff]
        %v1601 = vld [vmem:[#allocation16 + $0xc0] sm:$0xff]
        %v1602 = vld [vmem:[#allocation16 + $0xc8] sm:$0xff]
        %v1603 = vld [vmem:[#allocation16 + $0xd0] sm:$0xff]
        %v1604 = vld [vmem:[#allocation16 + $0xd8] sm:$0xff]
        %v1605 = vld [vmem:[#allocation16 + $0xe0] sm:$0xff]
        %v1606 = vld [vmem:[#allocation16 + $0xe8] sm:$0xff]
        %v1607 = vld [vmem:[#allocation16 + $0xf0] sm:$0xff]
        %v1608 = vld [vmem:[#allocation16 + $0xf8] sm:$0xff]
        %v1609 = vld [vmem:[%s13] sm:$0x1]
        %v1611 = vlaneseq
        %v1612 = vshrl.u32 %v1611, 7
        %v1613 = vsub.s32 0, %v1612
        %v1614 = vrot.slane %v1609, %v1613
        %1616 = vmatprep.subr.mxu0 0.0
        %1617 = vmatpush1.msra.mxu0 %v1592
        %1618 = vmatprep.subr.mxu0 0.0
        %1619 = vmatpush1.msra.mxu0 %v1591
        %1620 = vmatprep.subr.mxu0 0.0
        %1621 = vmatpush1.msra.mxu0 %v1590
        %1622 = vmatprep.subr.mxu0 0.0
        %1623 = vmatpush1.msra.mxu0 %v1589
        %1624 = vmatprep.subr.mxu0 0.0
        %1625 = vmatpush1.msra.mxu0 %v1588
        %1626 = vmatprep.subr.mxu0 0.0
        %1627 = vmatpush1.msra.mxu0 %v1587
        %1628 = vmatprep.subr.mxu0 0.0
        %1629 = vmatpush1.msra.mxu0 %v1586
        %1630 = vmatprep.subr.mxu0 0.0
        %1631 = vmatpush1.msra.mxu0 %v1585
        %1632 = vmatprep.subr.mxu0 0.0
        %1633 = vmatpush1.msra.mxu0 %v1584
        %1634 = vmatprep.subr.mxu0 0.0
        %1635 = vmatpush1.msra.mxu0 %v1583
        %1636 = vmatprep.subr.mxu0 0.0
        %1637 = vmatpush1.msra.mxu0 %v1582
        %1638 = vmatprep.subr.mxu0 0.0
        %1639 = vmatpush1.msra.mxu0 %v1581
        %1640 = vmatprep.subr.mxu0 0.0
        %1641 = vmatpush1.msra.mxu0 %v1580
        %1642 = vmatprep.subr.mxu0 0.0
        %1643 = vmatpush1.msra.mxu0 %v1579
        %1644 = vmatprep.subr.mxu0 0.0
        %1645 = vmatpush1.msra.mxu0 %v1578
        %1646 = vmatprep.subr.mxu0 0.0
        %1647 = vmatpush1.msra.mxu0 %v1577
        %1648 = vmatprep.subr.mxu0 0.0
        %1649 = vmatpush2.msra.mxu0 %v1608
        %1650 = vmatprep.subr.mxu0 0.0
        %1651 = vmatpush2.msra.mxu0 %v1607
        %1652 = vmatprep.subr.mxu0 0.0
        %1653 = vmatpush2.msra.mxu0 %v1606
        %1654 = vmatprep.subr.mxu0 0.0
        %1655 = vmatpush2.msra.mxu0 %v1605
        %1656 = vmatprep.subr.mxu0 0.0
        %1657 = vmatpush2.msra.mxu0 %v1604
        %1658 = vmatprep.subr.mxu0 0.0
        %1659 = vmatpush2.msra.mxu0 %v1603
        %1660 = vmatprep.subr.mxu0 0.0
        %1661 = vmatpush2.msra.mxu0 %v1602
        %1662 = vmatprep.subr.mxu0 0.0
        %1663 = vmatpush2.msra.mxu0 %v1601
        %1664 = vmatprep.subr.mxu0 0.0
        %1665 = vmatpush2.msra.mxu0 %v1600
        %1666 = vmatprep.subr.mxu0 0.0
        %1667 = vmatpush2.msra.mxu0 %v1599
        %1668 = vmatprep.subr.mxu0 0.0
        %1669 = vmatpush2.msra.mxu0 %v1598
        %1670 = vmatprep.subr.mxu0 0.0
        %1671 = vmatpush2.msra.mxu0 %v1597
        %1672 = vmatprep.subr.mxu0 0.0
        %1673 = vmatpush2.msra.mxu0 %v1596
        %1674 = vmatprep.subr.mxu0 0.0
        %1675 = vmatpush2.msra.mxu0 %v1595
        %1676 = vmatprep.subr.mxu0 0.0
        %1677 = vmatpush2.msra.mxu0 %v1594
        %1678 = vmatprep.subr.mxu0 0.0
        %1679 = vmatpush2.msra.mxu0 %v1593
        %1680 = vmatprep.mubr.f32.mxu0 %v1576
        %1681 = vmatmul.mubr.f32.gmra.mxu0 %v1575
        %v1682 = vpop.f32.mrf.mxu0
        %v1683 = vadd.f32 %v1614, %v1682
        %v1684 = vpop.f32.mrf.mxu0
        %1685 = vdwg.mxu0
        %v1686 = vadd.f32 %v1423, %v1683
        %1687 = vst [vmem:[%s612] sm:$0xff] %v1686
        %s1688 = sand.u32 %s364, 1
        %s1689 = scalar_lea.sflag [#allocation7], %s1688
        %s1690 = sand.u32 %s364, 1
        %s1691 = smul.addr %s1690, 8
        %s1692 = scalar_lea.vmem [#allocation17], %s1691
        // Predicated region
        $region109: #{tpu_custom_call.1} parent=75 // pred_check
          %p1693 = pneg %p374
        $region110: #{tpu_custom_call.1} parent=75 // pred_check_branch
          %1695 = sbr.rel (%p1693) target = $region112
        $region111: #{tpu_custom_call.1} parent=75 // pred_region
          %s1697 = ssub.s32 128, 128
          %1698 = vsyncadd %s1689, %s1697
          %s1699 = smul.addr %s40, 2
          %s1700 = sadd.s32 %s41, %s1699
          %s1701 = smul.addr %s1700, 128
          %s1702 = scalar_lea.hbm %s14, %s1701
          %s1704 = sshll.u32 %s1692, 4
          %s1705 = int_to_ptr.vmem [resolvable:$true] %s1704
          %1707 = dma.vmem_to_hbm [thread:$0]  %s1705, 128, %s1702, %s1689
        $region112: #{tpu_custom_call.1} parent=75 // pred_fallthru
          _
      $region76: #{tpu_custom_call.1} parent=5 // pred_fallthru
        _
      %p1708 = scmp.le.s32.totalorder 2, %s31
      // Predicated region
      $region113: #{tpu_custom_call.1} parent=5 // pred_check
        %p1709 = pneg %p1708
      $region114: #{tpu_custom_call.1} parent=5 // pred_check_branch
        %1711 = sbr.rel (%p1709) target = $region116
      $region115: #{tpu_custom_call.1} parent=5 // pred_region
        %s1712 = ssub.s32 %s31, 2
        // Predicated region
        $region117: #{tpu_custom_call.1} parent=115 // pred_check
          %p1713 = pneg %p380
        $region118: #{tpu_custom_call.1} parent=115 // pred_check_branch
          %1715 = sbr.rel (%p1713) target = $region120
        $region119: #{tpu_custom_call.1} parent=115 // pred_region
          %s1716 = sand.u32 %s365, 1
          %s1717 = scalar_lea.sflag [#allocation7], %s1716
          %s1718 = sand.u32 %s365, 1
          %s1719 = smul.addr %s1718, 8
          %s1720 = scalar_lea.vmem [#allocation17], %s1719
          %1721 = dma.done %s1717, 128
        $region120: #{tpu_custom_call.1} parent=115 // pred_fallthru
          _
      $region116: #{tpu_custom_call.1} parent=5 // pred_fallthru
        _
    $region6: #{tpu_custom_call.1} parent=1 // loop_footer
      %s35 = sadd.s32 1, %s31
    $region7: #{tpu_custom_call.1} parent=1 // loop_footer_branch
      %30 = sbr.rel target = $region3
    $region8: #{tpu_custom_call.1} parent=1 // loop_exit
      _
    %1722 = vsyncpa [#allocation6], 1
    %s1723 = scalar_lea.sflag [#allocation6], 1
    %1724 = vsyncpa %s1723, 1
    %1725 = vsyncpa [#allocation9], 1
    %s1726 = scalar_lea.sflag [#allocation9], 1
    %1727 = vsyncpa %s1726, 1
    %1728 = vsyncpa [#allocation12], 1
    %1729 = vsyncpa [#allocation15], 1
    %1730 = vsyncpa [#allocation7], 1
    %s1731 = scalar_lea.sflag [#allocation7], 1
    %1732 = vsyncpa %s1731, 1

</llo_original>
